<compile_context>
chip_gen: v7x
topology: tpu7x:2x2x1
jax: 0.10.0
libtpu: 0.0.40
codegen_flags: <defaults>
</compile_context>

<pallas_src>
import jax
import jax.numpy as jnp
from jax import lax
from jax.experimental import pallas as pl
from jax.experimental.pallas import tpu as pltpu  # noqa: F401  (TPU backend)
import numpy as np

H = 128  # hidden size (fixed by the module)


def _lstm_recurrence_kernel(gin_ref, whh0_ref, wcat1_ref, b1_ref,
                            h1_all_ref, hn_ref, cn_ref):
    """Two-layer LSTM recurrence over the whole sequence in a single invocation.

    gin_ref    : (T, B, 4H)  precomputed x_t @ W_ih0 + (b_ih0 + b_hh0)
    whh0_ref   : (H, 4H)     layer-0 recurrent weight
    wcat1_ref  : (2H, 4H)    fused layer-1 weight [W_ih1 ; W_hh1]
    b1_ref     : (1, 4H)     layer-1 bias (b_ih1 + b_hh1)
    h1_all_ref : (T, B, H)   layer-1 hidden per timestep (lane-dense output)
    hn_ref     : (2, B, H)   final hidden states (layer0, layer1)
    cn_ref     : (2, B, H)   final cell states  (layer0, layer1)
    """
    T, B = gin_ref.shape[0], gin_ref.shape[1]

    # Weights resident for the whole sequence (loaded once).
    whh0 = whh0_ref[...]
    wcat1 = wcat1_ref[...]
    b1 = b1_ref[...]

    def gates_to_hc(gates, c):
        # PyTorch gate order [i, f, g, o].
        i = jax.nn.sigmoid(gates[:, 0 * H:1 * H])
        f = jax.nn.sigmoid(gates[:, 1 * H:2 * H])
        g = jnp.tanh(gates[:, 2 * H:3 * H])
        o = jax.nn.sigmoid(gates[:, 3 * H:4 * H])
        c_new = f * c + i * g
        h_new = o * jnp.tanh(c_new)
        return h_new, c_new

    def step(t, carry):
        h0, c0, h1, c1 = carry
        # Layer 0: input projection already hoisted -> single matmul on the
        # serial dependency chain.
        g0 = gin_ref[t] + jnp.dot(h0, whh0, preferred_element_type=jnp.float32)
        h0, c0 = gates_to_hc(g0, c0)
        # Layer 1: single fused matmul [h0 ; h1] @ [W_ih1 ; W_hh1] + b1.
        xh = jnp.concatenate([h0, h1], axis=1)              # (B, 2H)
        g1 = jnp.dot(xh, wcat1, preferred_element_type=jnp.float32) + b1
        h1, c1 = gates_to_hc(g1, c1)
        h1_all_ref[t] = h1                                   # lane-dense (B, 128) store
        return (h0, c0, h1, c1)

    zeros = jnp.zeros((B, H), jnp.float32)  # PyTorch default zero init (hidden=None)
    init = (zeros, zeros, zeros, zeros)
    if T <= 16:
        h0, c0, h1, c1 = lax.fori_loop(0, T, step, init, unroll=True)
    else:
        h0, c0, h1, c1 = lax.fori_loop(0, T, step, init)

    # Final states written exactly once.
    hn_ref[0] = h0
    hn_ref[1] = h1
    cn_ref[0] = c0
    cn_ref[1] = c1


def lstmnet_forward(x, params):
    """x: (B, T, in_size) float32, batch_first (PyTorch convention).
    Returns (fc_out (B, T, out_size), (h_n (2, B, H), c_n (2, B, H)))."""
    w_ih0, w_hh0, b0, w_ih1, w_hh1, b1, w_fc, b_fc = params
    B, T, I = x.shape
    O = w_fc.shape[1]

    x_tm = jnp.transpose(x, (1, 0, 2))                               # (T, B, I)
    # Hoisted layer-0 input projection: one (T*B, I) @ (I, 4H) matmul.
    gin = (jnp.dot(x_tm.reshape(T * B, I), w_ih0) + b0).reshape(T, B, 4 * H)
    # Fused layer-1 weight [W_ih1 ; W_hh1] -> (2H, 4H).
    w_cat1 = jnp.concatenate([w_ih1, w_hh1], axis=0)

    # Single-invocation kernel: every operand/result is a full VMEM-resident
    # block (total footprint ~1 MiB), so no grid / BlockSpec tiling is needed.
    h1_all, h_n, c_n = pl.pallas_call(
        _lstm_recurrence_kernel,
        out_shape=(
            jax.ShapeDtypeStruct((T, B, H), jnp.float32),
            jax.ShapeDtypeStruct((2, B, H), jnp.float32),
            jax.ShapeDtypeStruct((2, B, H), jnp.float32),
        ),
    )(gin, w_hh0, w_cat1, b1)

    # Hoisted FC head: one (T*B, H) @ (H, O) matmul over the whole trajectory.
    y = (jnp.dot(h1_all.reshape(T * B, H), w_fc) + b_fc).reshape(T, B, O)
    return jnp.transpose(y, (1, 0, 2)), (h_n, c_n)


def init_params(key, in_size, out_size):
    """Deterministic parameter init mirroring PyTorch shapes (uniform +-1/sqrt(H)),
    stored pre-transposed for right-multiplication, biases pre-summed (b_ih + b_hh)."""
    k = 1.0 / np.sqrt(H)
    ks = jax.random.split(key, 8)
    u = lambda kk, shape: jax.random.uniform(kk, shape, jnp.float32, -k, k)
    w_ih0 = u(ks[0], (in_size, 4 * H))
    w_hh0 = u(ks[1], (H, 4 * H))
    b0 = u(ks[2], (1, 4 * H)) + u(ks[3], (1, 4 * H))     # bias_ih + bias_hh
    w_ih1 = u(ks[4], (H, 4 * H))
    w_hh1 = u(ks[5], (H, 4 * H))
    b1 = u(ks[6], (1, 4 * H)) + u(ks[7], (1, 4 * H))
    kfc_w, kfc_b = jax.random.split(jax.random.fold_in(key, 123))
    w_fc = u(kfc_w, (H, out_size))
    b_fc = u(kfc_b, (1, out_size))
    return (w_ih0, w_hh0, b0, w_ih1, w_hh1, b1, w_fc, b_fc)


def lstmnet_reference(x, params):
    """Pure-JAX reference with identical semantics (for verification)."""
    w_ih0, w_hh0, b0, w_ih1, w_hh1, b1, w_fc, b_fc = params
    B = x.shape[0]

    def cell(x_in, h, c, wih, whh, b):
        gates = x_in @ wih + h @ whh + b
        i, f, g, o = jnp.split(gates, 4, axis=-1)
        c_new = jax.nn.sigmoid(f) * c + jax.nn.sigmoid(i) * jnp.tanh(g)
        h_new = jax.nn.sigmoid(o) * jnp.tanh(c_new)
        return h_new, c_new

    def step(carry, x_t):
        h0, c0, h1, c1 = carry
        h0, c0 = cell(x_t, h0, c0, w_ih0, w_hh0, b0)
        h1, c1 = cell(h0, h1, c1, w_ih1, w_hh1, b1)
        return (h0, c0, h1, c1), h1

    init = tuple(jnp.zeros((B, H), jnp.float32) for _ in range(4))
    (h0, c0, h1, c1), outs = lax.scan(step, init, jnp.transpose(x, (1, 0, 2)))
    y = outs @ w_fc + b_fc                               # (T, B, O)
    return (jnp.transpose(y, (1, 0, 2)),
            (jnp.stack([h0, h1]), jnp.stack([c0, c1])))


if __name__ == "__main__":
    B, T, IN_SIZE, OUT_SIZE = 2, 8, 4, 4  # small bandit-style shapes

    key = jax.random.PRNGKey(0)
    kx, kp = jax.random.split(key)
    x = jax.random.normal(kx, (B, T, IN_SIZE), dtype=jnp.float32)
    params = init_params(kp, IN_SIZE, OUT_SIZE)

    y, (h_n, c_n) = jax.jit(lstmnet_forward)(x, params)
    jax.block_until_ready((y, h_n, c_n))

    y_ref, (h_ref, c_ref) = lstmnet_reference(x, params)
    np.testing.assert_allclose(np.asarray(y), np.asarray(y_ref), rtol=1e-3, atol=1e-3)
    np.testing.assert_allclose(np.asarray(h_n), np.asarray(h_ref), rtol=1e-3, atol=1e-3)
    np.testing.assert_allclose(np.asarray(c_n), np.asarray(c_ref), rtol=1e-3, atol=1e-3)

    assert y.shape == (B, T, OUT_SIZE) and h_n.shape == (2, B, H) and c_n.shape == (2, B, H)
    print("KERNEL_OK")
</pallas_src>

<mosaic_0001>
module attributes {stable_mosaic.version = 11 : i64} {
  func.func @_lstm_recurrence_kernel(%arg0: memref<8x2x512xf32, #tpu.memory_space<vmem>>, %arg1: memref<128x512xf32, #tpu.memory_space<vmem>>, %arg2: memref<256x512xf32, #tpu.memory_space<vmem>>, %arg3: memref<1x512xf32, #tpu.memory_space<vmem>>, %arg4: memref<8x2x128xf32, #tpu.memory_space<vmem>>, %arg5: memref<2x2x128xf32, #tpu.memory_space<vmem>>, %arg6: memref<2x2x128xf32, #tpu.memory_space<vmem>>) attributes {dimension_semantics = [], scalar_prefetch = 0 : i64, scratch_operands = 0 : i64, tpu.core_type = #tpu.core_type<tc>} {
    %c0 = arith.constant 0 : index
    %c0_0 = arith.constant 0 : index
    %0 = vector.load %arg1[%c0, %c0_0] : memref<128x512xf32, #tpu.memory_space<vmem>>, vector<128x512xf32>
    %c0_1 = arith.constant 0 : index
    %c0_2 = arith.constant 0 : index
    %1 = vector.load %arg2[%c0_1, %c0_2] : memref<256x512xf32, #tpu.memory_space<vmem>>, vector<256x512xf32>
    %c0_3 = arith.constant 0 : index
    %c0_4 = arith.constant 0 : index
    %2 = vector.load %arg3[%c0_3, %c0_4] : memref<1x512xf32, #tpu.memory_space<vmem>>, vector<1x512xf32>
    %cst = arith.constant 0.000000e+00 : f32
    %3 = vector.broadcast %cst : f32 to vector<2x128xf32>
    %c0_i32 = arith.constant 0 : i32
    %4 = arith.index_cast %c0_i32 : i32 to index
    %c0_5 = arith.constant 0 : index
    %c0_6 = arith.constant 0 : index
    %5 = vector.load %arg0[%4, %c0_5, %c0_6] : memref<8x2x512xf32, #tpu.memory_space<vmem>>, vector<1x2x512xf32>
    %6 = vector.shape_cast %5 : vector<1x2x512xf32> to vector<2x512xf32>
    %cst_7 = arith.constant dense<0.000000e+00> : vector<2x512xf32>
    %7 = tpu.matmul %3, %0, %cst_7 {dimension_numbers = #tpu.dot_dimension_numbers<[1], [0], [0], [1], [0, 0, 1, 1], [], []>} : vector<2x128xf32>, vector<128x512xf32>, vector<2x512xf32> -> vector<2x512xf32>
    %8 = arith.addf %6, %7 : vector<2x512xf32>
    %9 = vector.extract_strided_slice %8 {offsets = [0, 0], sizes = [2, 128], strides = [1, 1]} : vector<2x512xf32> to vector<2x128xf32>
    %10 = arith.negf %9 : vector<2x128xf32>
    %11 = math.exp %10 : vector<2x128xf32>
    %cst_8 = arith.constant 1.000000e+00 : f32
    %12 = vector.broadcast %cst_8 : f32 to vector<2x128xf32>
    %13 = arith.addf %12, %11 : vector<2x128xf32>
    %14 = arith.divf %12, %13 : vector<2x128xf32>
    %15 = vector.extract_strided_slice %8 {offsets = [0, 128], sizes = [2, 128], strides = [1, 1]} : vector<2x512xf32> to vector<2x128xf32>
    %16 = arith.negf %15 : vector<2x128xf32>
    %17 = math.exp %16 : vector<2x128xf32>
    %cst_9 = arith.constant 1.000000e+00 : f32
    %18 = vector.broadcast %cst_9 : f32 to vector<2x128xf32>
    %19 = arith.addf %18, %17 : vector<2x128xf32>
    %20 = arith.divf %18, %19 : vector<2x128xf32>
    %21 = vector.extract_strided_slice %8 {offsets = [0, 256], sizes = [2, 128], strides = [1, 1]} : vector<2x512xf32> to vector<2x128xf32>
    %22 = math.tanh %21 : vector<2x128xf32>
    %23 = vector.extract_strided_slice %8 {offsets = [0, 384], sizes = [2, 128], strides = [1, 1]} : vector<2x512xf32> to vector<2x128xf32>
    %24 = arith.negf %23 : vector<2x128xf32>
    %25 = math.exp %24 : vector<2x128xf32>
    %cst_10 = arith.constant 1.000000e+00 : f32
    %26 = vector.broadcast %cst_10 : f32 to vector<2x128xf32>
    %27 = arith.addf %26, %25 : vector<2x128xf32>
    %28 = arith.divf %26, %27 : vector<2x128xf32>
    %29 = arith.mulf %20, %3 : vector<2x128xf32>
    %30 = arith.mulf %14, %22 : vector<2x128xf32>
    %31 = arith.addf %29, %30 : vector<2x128xf32>
    %32 = math.tanh %31 : vector<2x128xf32>
    %33 = arith.mulf %28, %32 : vector<2x128xf32>
    %34 = tpu.concatenate %33, %3 in 1 : vector<2x128xf32>, vector<2x128xf32> -> vector<2x256xf32>
    %cst_11 = arith.constant dense<0.000000e+00> : vector<2x512xf32>
    %35 = tpu.matmul %34, %1, %cst_11 {dimension_numbers = #tpu.dot_dimension_numbers<[1], [0], [0], [1], [0, 0, 1, 1], [], []>} : vector<2x256xf32>, vector<256x512xf32>, vector<2x512xf32> -> vector<2x512xf32>
    %36 = vector.broadcast %2 : vector<1x512xf32> to vector<2x512xf32>
    %37 = arith.addf %35, %36 : vector<2x512xf32>
    %38 = vector.extract_strided_slice %37 {offsets = [0, 0], sizes = [2, 128], strides = [1, 1]} : vector<2x512xf32> to vector<2x128xf32>
    %39 = arith.negf %38 : vector<2x128xf32>
    %40 = math.exp %39 : vector<2x128xf32>
    %cst_12 = arith.constant 1.000000e+00 : f32
    %41 = vector.broadcast %cst_12 : f32 to vector<2x128xf32>
    %42 = arith.addf %41, %40 : vector<2x128xf32>
    %43 = arith.divf %41, %42 : vector<2x128xf32>
    %44 = vector.extract_strided_slice %37 {offsets = [0, 128], sizes = [2, 128], strides = [1, 1]} : vector<2x512xf32> to vector<2x128xf32>
    %45 = arith.negf %44 : vector<2x128xf32>
    %46 = math.exp %45 : vector<2x128xf32>
    %cst_13 = arith.constant 1.000000e+00 : f32
    %47 = vector.broadcast %cst_13 : f32 to vector<2x128xf32>
    %48 = arith.addf %47, %46 : vector<2x128xf32>
    %49 = arith.divf %47, %48 : vector<2x128xf32>
    %50 = vector.extract_strided_slice %37 {offsets = [0, 256], sizes = [2, 128], strides = [1, 1]} : vector<2x512xf32> to vector<2x128xf32>
    %51 = math.tanh %50 : vector<2x128xf32>
    %52 = vector.extract_strided_slice %37 {offsets = [0, 384], sizes = [2, 128], strides = [1, 1]} : vector<2x512xf32> to vector<2x128xf32>
    %53 = arith.negf %52 : vector<2x128xf32>
    %54 = math.exp %53 : vector<2x128xf32>
    %cst_14 = arith.constant 1.000000e+00 : f32
    %55 = vector.broadcast %cst_14 : f32 to vector<2x128xf32>
    %56 = arith.addf %55, %54 : vector<2x128xf32>
    %57 = arith.divf %55, %56 : vector<2x128xf32>
    %58 = arith.mulf %49, %3 : vector<2x128xf32>
    %59 = arith.mulf %43, %51 : vector<2x128xf32>
    %60 = arith.addf %58, %59 : vector<2x128xf32>
    %61 = math.tanh %60 : vector<2x128xf32>
    %62 = arith.mulf %57, %61 : vector<2x128xf32>
    %63 = arith.index_cast %c0_i32 : i32 to index
    %c0_15 = arith.constant 0 : index
    %c0_16 = arith.constant 0 : index
    %64 = vector.load %arg4[%63, %c0_15, %c0_16] : memref<8x2x128xf32, #tpu.memory_space<vmem>>, vector<1x2x128xf32>
    %65 = vector.shape_cast %64 : vector<1x2x128xf32> to vector<2x128xf32>
    %66 = vector.shape_cast %62 : vector<2x128xf32> to vector<1x2x128xf32>
    tpu.vector_store %arg4[%63, %c0_15, %c0_16], %66 {strides = array<i32>} : memref<8x2x128xf32, #tpu.memory_space<vmem>>, vector<1x2x128xf32>,
    %c1_i32 = arith.constant 1 : i32
    %67 = arith.index_cast %c1_i32 : i32 to index
    %c0_17 = arith.constant 0 : index
    %c0_18 = arith.constant 0 : index
    %68 = vector.load %arg0[%67, %c0_17, %c0_18] : memref<8x2x512xf32, #tpu.memory_space<vmem>>, vector<1x2x512xf32>
    %69 = vector.shape_cast %68 : vector<1x2x512xf32> to vector<2x512xf32>
    %cst_19 = arith.constant dense<0.000000e+00> : vector<2x512xf32>
    %70 = tpu.matmul %33, %0, %cst_19 {dimension_numbers = #tpu.dot_dimension_numbers<[1], [0], [0], [1], [0, 0, 1, 1], [], []>} : vector<2x128xf32>, vector<128x512xf32>, vector<2x512xf32> -> vector<2x512xf32>
    %71 = arith.addf %69, %70 : vector<2x512xf32>
    %72 = vector.extract_strided_slice %71 {offsets = [0, 0], sizes = [2, 128], strides = [1, 1]} : vector<2x512xf32> to vector<2x128xf32>
    %73 = arith.negf %72 : vector<2x128xf32>
    %74 = math.exp %73 : vector<2x128xf32>
    %cst_20 = arith.constant 1.000000e+00 : f32
    %75 = vector.broadcast %cst_20 : f32 to vector<2x128xf32>
    %76 = arith.addf %75, %74 : vector<2x128xf32>
    %77 = arith.divf %75, %76 : vector<2x128xf32>
    %78 = vector.extract_strided_slice %71 {offsets = [0, 128], sizes = [2, 128], strides = [1, 1]} : vector<2x512xf32> to vector<2x128xf32>
    %79 = arith.negf %78 : vector<2x128xf32>
    %80 = math.exp %79 : vector<2x128xf32>
    %cst_21 = arith.constant 1.000000e+00 : f32
    %81 = vector.broadcast %cst_21 : f32 to vector<2x128xf32>
    %82 = arith.addf %81, %80 : vector<2x128xf32>
    %83 = arith.divf %81, %82 : vector<2x128xf32>
    %84 = vector.extract_strided_slice %71 {offsets = [0, 256], sizes = [2, 128], strides = [1, 1]} : vector<2x512xf32> to vector<2x128xf32>
    %85 = math.tanh %84 : vector<2x128xf32>
    %86 = vector.extract_strided_slice %71 {offsets = [0, 384], sizes = [2, 128], strides = [1, 1]} : vector<2x512xf32> to vector<2x128xf32>
    %87 = arith.negf %86 : vector<2x128xf32>
    %88 = math.exp %87 : vector<2x128xf32>
    %cst_22 = arith.constant 1.000000e+00 : f32
    %89 = vector.broadcast %cst_22 : f32 to vector<2x128xf32>
    %90 = arith.addf %89, %88 : vector<2x128xf32>
    %91 = arith.divf %89, %90 : vector<2x128xf32>
    %92 = arith.mulf %83, %31 : vector<2x128xf32>
    %93 = arith.mulf %77, %85 : vector<2x128xf32>
    %94 = arith.addf %92, %93 : vector<2x128xf32>
    %95 = math.tanh %94 : vector<2x128xf32>
    %96 = arith.mulf %91, %95 : vector<2x128xf32>
    %97 = tpu.concatenate %96, %62 in 1 : vector<2x128xf32>, vector<2x128xf32> -> vector<2x256xf32>
    %cst_23 = arith.constant dense<0.000000e+00> : vector<2x512xf32>
    %98 = tpu.matmul %97, %1, %cst_23 {dimension_numbers = #tpu.dot_dimension_numbers<[1], [0], [0], [1], [0, 0, 1, 1], [], []>} : vector<2x256xf32>, vector<256x512xf32>, vector<2x512xf32> -> vector<2x512xf32>
    %99 = vector.broadcast %2 : vector<1x512xf32> to vector<2x512xf32>
    %100 = arith.addf %98, %99 : vector<2x512xf32>
    %101 = vector.extract_strided_slice %100 {offsets = [0, 0], sizes = [2, 128], strides = [1, 1]} : vector<2x512xf32> to vector<2x128xf32>
    %102 = arith.negf %101 : vector<2x128xf32>
    %103 = math.exp %102 : vector<2x128xf32>
    %cst_24 = arith.constant 1.000000e+00 : f32
    %104 = vector.broadcast %cst_24 : f32 to vector<2x128xf32>
    %105 = arith.addf %104, %103 : vector<2x128xf32>
    %106 = arith.divf %104, %105 : vector<2x128xf32>
    %107 = vector.extract_strided_slice %100 {offsets = [0, 128], sizes = [2, 128], strides = [1, 1]} : vector<2x512xf32> to vector<2x128xf32>
    %108 = arith.negf %107 : vector<2x128xf32>
    %109 = math.exp %108 : vector<2x128xf32>
    %cst_25 = arith.constant 1.000000e+00 : f32
    %110 = vector.broadcast %cst_25 : f32 to vector<2x128xf32>
    %111 = arith.addf %110, %109 : vector<2x128xf32>
    %112 = arith.divf %110, %111 : vector<2x128xf32>
    %113 = vector.extract_strided_slice %100 {offsets = [0, 256], sizes = [2, 128], strides = [1, 1]} : vector<2x512xf32> to vector<2x128xf32>
    %114 = math.tanh %113 : vector<2x128xf32>
    %115 = vector.extract_strided_slice %100 {offsets = [0, 384], sizes = [2, 128], strides = [1, 1]} : vector<2x512xf32> to vector<2x128xf32>
    %116 = arith.negf %115 : vector<2x128xf32>
    %117 = math.exp %116 : vector<2x128xf32>
    %cst_26 = arith.constant 1.000000e+00 : f32
    %118 = vector.broadcast %cst_26 : f32 to vector<2x128xf32>
    %119 = arith.addf %118, %117 : vector<2x128xf32>
    %120 = arith.divf %118, %119 : vector<2x128xf32>
    %121 = arith.mulf %112, %60 : vector<2x128xf32>
    %122 = arith.mulf %106, %114 : vector<2x128xf32>
    %123 = arith.addf %121, %122 : vector<2x128xf32>
    %124 = math.tanh %123 : vector<2x128xf32>
    %125 = arith.mulf %120, %124 : vector<2x128xf32>
    %126 = arith.index_cast %c1_i32 : i32 to index
    %c0_27 = arith.constant 0 : index
    %c0_28 = arith.constant 0 : index
    %127 = vector.load %arg4[%126, %c0_27, %c0_28] : memref<8x2x128xf32, #tpu.memory_space<vmem>>, vector<1x2x128xf32>
    %128 = vector.shape_cast %127 : vector<1x2x128xf32> to vector<2x128xf32>
    %129 = vector.shape_cast %125 : vector<2x128xf32> to vector<1x2x128xf32>
    tpu.vector_store %arg4[%126, %c0_27, %c0_28], %129 {strides = array<i32>} : memref<8x2x128xf32, #tpu.memory_space<vmem>>, vector<1x2x128xf32>,
    %c2_i32 = arith.constant 2 : i32
    %130 = arith.index_cast %c2_i32 : i32 to index
    %c0_29 = arith.constant 0 : index
    %c0_30 = arith.constant 0 : index
    %131 = vector.load %arg0[%130, %c0_29, %c0_30] : memref<8x2x512xf32, #tpu.memory_space<vmem>>, vector<1x2x512xf32>
    %132 = vector.shape_cast %131 : vector<1x2x512xf32> to vector<2x512xf32>
    %cst_31 = arith.constant dense<0.000000e+00> : vector<2x512xf32>
    %133 = tpu.matmul %96, %0, %cst_31 {dimension_numbers = #tpu.dot_dimension_numbers<[1], [0], [0], [1], [0, 0, 1, 1], [], []>} : vector<2x128xf32>, vector<128x512xf32>, vector<2x512xf32> -> vector<2x512xf32>
    %134 = arith.addf %132, %133 : vector<2x512xf32>
    %135 = vector.extract_strided_slice %134 {offsets = [0, 0], sizes = [2, 128], strides = [1, 1]} : vector<2x512xf32> to vector<2x128xf32>
    %136 = arith.negf %135 : vector<2x128xf32>
    %137 = math.exp %136 : vector<2x128xf32>
    %cst_32 = arith.constant 1.000000e+00 : f32
    %138 = vector.broadcast %cst_32 : f32 to vector<2x128xf32>
    %139 = arith.addf %138, %137 : vector<2x128xf32>
    %140 = arith.divf %138, %139 : vector<2x128xf32>
    %141 = vector.extract_strided_slice %134 {offsets = [0, 128], sizes = [2, 128], strides = [1, 1]} : vector<2x512xf32> to vector<2x128xf32>
    %142 = arith.negf %141 : vector<2x128xf32>
    %143 = math.exp %142 : vector<2x128xf32>
    %cst_33 = arith.constant 1.000000e+00 : f32
    %144 = vector.broadcast %cst_33 : f32 to vector<2x128xf32>
    %145 = arith.addf %144, %143 : vector<2x128xf32>
    %146 = arith.divf %144, %145 : vector<2x128xf32>
    %147 = vector.extract_strided_slice %134 {offsets = [0, 256], sizes = [2, 128], strides = [1, 1]} : vector<2x512xf32> to vector<2x128xf32>
    %148 = math.tanh %147 : vector<2x128xf32>
    %149 = vector.extract_strided_slice %134 {offsets = [0, 384], sizes = [2, 128], strides = [1, 1]} : vector<2x512xf32> to vector<2x128xf32>
    %150 = arith.negf %149 : vector<2x128xf32>
    %151 = math.exp %150 : vector<2x128xf32>
    %cst_34 = arith.constant 1.000000e+00 : f32
    %152 = vector.broadcast %cst_34 : f32 to vector<2x128xf32>
    %153 = arith.addf %152, %151 : vector<2x128xf32>
    %154 = arith.divf %152, %153 : vector<2x128xf32>
    %155 = arith.mulf %146, %94 : vector<2x128xf32>
    %156 = arith.mulf %140, %148 : vector<2x128xf32>
    %157 = arith.addf %155, %156 : vector<2x128xf32>
    %158 = math.tanh %157 : vector<2x128xf32>
    %159 = arith.mulf %154, %158 : vector<2x128xf32>
    %160 = tpu.concatenate %159, %125 in 1 : vector<2x128xf32>, vector<2x128xf32> -> vector<2x256xf32>
    %cst_35 = arith.constant dense<0.000000e+00> : vector<2x512xf32>
    %161 = tpu.matmul %160, %1, %cst_35 {dimension_numbers = #tpu.dot_dimension_numbers<[1], [0], [0], [1], [0, 0, 1, 1], [], []>} : vector<2x256xf32>, vector<256x512xf32>, vector<2x512xf32> -> vector<2x512xf32>
    %162 = vector.broadcast %2 : vector<1x512xf32> to vector<2x512xf32>
    %163 = arith.addf %161, %162 : vector<2x512xf32>
    %164 = vector.extract_strided_slice %163 {offsets = [0, 0], sizes = [2, 128], strides = [1, 1]} : vector<2x512xf32> to vector<2x128xf32>
    %165 = arith.negf %164 : vector<2x128xf32>
    %166 = math.exp %165 : vector<2x128xf32>
    %cst_36 = arith.constant 1.000000e+00 : f32
    %167 = vector.broadcast %cst_36 : f32 to vector<2x128xf32>
    %168 = arith.addf %167, %166 : vector<2x128xf32>
    %169 = arith.divf %167, %168 : vector<2x128xf32>
    %170 = vector.extract_strided_slice %163 {offsets = [0, 128], sizes = [2, 128], strides = [1, 1]} : vector<2x512xf32> to vector<2x128xf32>
    %171 = arith.negf %170 : vector<2x128xf32>
    %172 = math.exp %171 : vector<2x128xf32>
    %cst_37 = arith.constant 1.000000e+00 : f32
    %173 = vector.broadcast %cst_37 : f32 to vector<2x128xf32>
    %174 = arith.addf %173, %172 : vector<2x128xf32>
    %175 = arith.divf %173, %174 : vector<2x128xf32>
    %176 = vector.extract_strided_slice %163 {offsets = [0, 256], sizes = [2, 128], strides = [1, 1]} : vector<2x512xf32> to vector<2x128xf32>
    %177 = math.tanh %176 : vector<2x128xf32>
    %178 = vector.extract_strided_slice %163 {offsets = [0, 384], sizes = [2, 128], strides = [1, 1]} : vector<2x512xf32> to vector<2x128xf32>
    %179 = arith.negf %178 : vector<2x128xf32>
    %180 = math.exp %179 : vector<2x128xf32>
    %cst_38 = arith.constant 1.000000e+00 : f32
    %181 = vector.broadcast %cst_38 : f32 to vector<2x128xf32>
    %182 = arith.addf %181, %180 : vector<2x128xf32>
    %183 = arith.divf %181, %182 : vector<2x128xf32>
    %184 = arith.mulf %175, %123 : vector<2x128xf32>
    %185 = arith.mulf %169, %177 : vector<2x128xf32>
    %186 = arith.addf %184, %185 : vector<2x128xf32>
    %187 = math.tanh %186 : vector<2x128xf32>
    %188 = arith.mulf %183, %187 : vector<2x128xf32>
    %189 = arith.index_cast %c2_i32 : i32 to index
    %c0_39 = arith.constant 0 : index
    %c0_40 = arith.constant 0 : index
    %190 = vector.load %arg4[%189, %c0_39, %c0_40] : memref<8x2x128xf32, #tpu.memory_space<vmem>>, vector<1x2x128xf32>
    %191 = vector.shape_cast %190 : vector<1x2x128xf32> to vector<2x128xf32>
    %192 = vector.shape_cast %188 : vector<2x128xf32> to vector<1x2x128xf32>
    tpu.vector_store %arg4[%189, %c0_39, %c0_40], %192 {strides = array<i32>} : memref<8x2x128xf32, #tpu.memory_space<vmem>>, vector<1x2x128xf32>,
    %c3_i32 = arith.constant 3 : i32
    %193 = arith.index_cast %c3_i32 : i32 to index
    %c0_41 = arith.constant 0 : index
    %c0_42 = arith.constant 0 : index
    %194 = vector.load %arg0[%193, %c0_41, %c0_42] : memref<8x2x512xf32, #tpu.memory_space<vmem>>, vector<1x2x512xf32>
    %195 = vector.shape_cast %194 : vector<1x2x512xf32> to vector<2x512xf32>
    %cst_43 = arith.constant dense<0.000000e+00> : vector<2x512xf32>
    %196 = tpu.matmul %159, %0, %cst_43 {dimension_numbers = #tpu.dot_dimension_numbers<[1], [0], [0], [1], [0, 0, 1, 1], [], []>} : vector<2x128xf32>, vector<128x512xf32>, vector<2x512xf32> -> vector<2x512xf32>
    %197 = arith.addf %195, %196 : vector<2x512xf32>
    %198 = vector.extract_strided_slice %197 {offsets = [0, 0], sizes = [2, 128], strides = [1, 1]} : vector<2x512xf32> to vector<2x128xf32>
    %199 = arith.negf %198 : vector<2x128xf32>
    %200 = math.exp %199 : vector<2x128xf32>
    %cst_44 = arith.constant 1.000000e+00 : f32
    %201 = vector.broadcast %cst_44 : f32 to vector<2x128xf32>
    %202 = arith.addf %201, %200 : vector<2x128xf32>
    %203 = arith.divf %201, %202 : vector<2x128xf32>
    %204 = vector.extract_strided_slice %197 {offsets = [0, 128], sizes = [2, 128], strides = [1, 1]} : vector<2x512xf32> to vector<2x128xf32>
    %205 = arith.negf %204 : vector<2x128xf32>
    %206 = math.exp %205 : vector<2x128xf32>
    %cst_45 = arith.constant 1.000000e+00 : f32
    %207 = vector.broadcast %cst_45 : f32 to vector<2x128xf32>
    %208 = arith.addf %207, %206 : vector<2x128xf32>
    %209 = arith.divf %207, %208 : vector<2x128xf32>
    %210 = vector.extract_strided_slice %197 {offsets = [0, 256], sizes = [2, 128], strides = [1, 1]} : vector<2x512xf32> to vector<2x128xf32>
    %211 = math.tanh %210 : vector<2x128xf32>
    %212 = vector.extract_strided_slice %197 {offsets = [0, 384], sizes = [2, 128], strides = [1, 1]} : vector<2x512xf32> to vector<2x128xf32>
    %213 = arith.negf %212 : vector<2x128xf32>
    %214 = math.exp %213 : vector<2x128xf32>
    %cst_46 = arith.constant 1.000000e+00 : f32
    %215 = vector.broadcast %cst_46 : f32 to vector<2x128xf32>
    %216 = arith.addf %215, %214 : vector<2x128xf32>
    %217 = arith.divf %215, %216 : vector<2x128xf32>
    %218 = arith.mulf %209, %157 : vector<2x128xf32>
    %219 = arith.mulf %203, %211 : vector<2x128xf32>
    %220 = arith.addf %218, %219 : vector<2x128xf32>
    %221 = math.tanh %220 : vector<2x128xf32>
    %222 = arith.mulf %217, %221 : vector<2x128xf32>
    %223 = tpu.concatenate %222, %188 in 1 : vector<2x128xf32>, vector<2x128xf32> -> vector<2x256xf32>
    %cst_47 = arith.constant dense<0.000000e+00> : vector<2x512xf32>
    %224 = tpu.matmul %223, %1, %cst_47 {dimension_numbers = #tpu.dot_dimension_numbers<[1], [0], [0], [1], [0, 0, 1, 1], [], []>} : vector<2x256xf32>, vector<256x512xf32>, vector<2x512xf32> -> vector<2x512xf32>
    %225 = vector.broadcast %2 : vector<1x512xf32> to vector<2x512xf32>
    %226 = arith.addf %224, %225 : vector<2x512xf32>
    %227 = vector.extract_strided_slice %226 {offsets = [0, 0], sizes = [2, 128], strides = [1, 1]} : vector<2x512xf32> to vector<2x128xf32>
    %228 = arith.negf %227 : vector<2x128xf32>
    %229 = math.exp %228 : vector<2x128xf32>
    %cst_48 = arith.constant 1.000000e+00 : f32
    %230 = vector.broadcast %cst_48 : f32 to vector<2x128xf32>
    %231 = arith.addf %230, %229 : vector<2x128xf32>
    %232 = arith.divf %230, %231 : vector<2x128xf32>
    %233 = vector.extract_strided_slice %226 {offsets = [0, 128], sizes = [2, 128], strides = [1, 1]} : vector<2x512xf32> to vector<2x128xf32>
    %234 = arith.negf %233 : vector<2x128xf32>
    %235 = math.exp %234 : vector<2x128xf32>
    %cst_49 = arith.constant 1.000000e+00 : f32
    %236 = vector.broadcast %cst_49 : f32 to vector<2x128xf32>
    %237 = arith.addf %236, %235 : vector<2x128xf32>
    %238 = arith.divf %236, %237 : vector<2x128xf32>
    %239 = vector.extract_strided_slice %226 {offsets = [0, 256], sizes = [2, 128], strides = [1, 1]} : vector<2x512xf32> to vector<2x128xf32>
    %240 = math.tanh %239 : vector<2x128xf32>
    %241 = vector.extract_strided_slice %226 {offsets = [0, 384], sizes = [2, 128], strides = [1, 1]} : vector<2x512xf32> to vector<2x128xf32>
    %242 = arith.negf %241 : vector<2x128xf32>
    %243 = math.exp %242 : vector<2x128xf32>
    %cst_50 = arith.constant 1.000000e+00 : f32
    %244 = vector.broadcast %cst_50 : f32 to vector<2x128xf32>
    %245 = arith.addf %244, %243 : vector<2x128xf32>
    %246 = arith.divf %244, %245 : vector<2x128xf32>
    %247 = arith.mulf %238, %186 : vector<2x128xf32>
    %248 = arith.mulf %232, %240 : vector<2x128xf32>
    %249 = arith.addf %247, %248 : vector<2x128xf32>
    %250 = math.tanh %249 : vector<2x128xf32>
    %251 = arith.mulf %246, %250 : vector<2x128xf32>
    %252 = arith.index_cast %c3_i32 : i32 to index
    %c0_51 = arith.constant 0 : index
    %c0_52 = arith.constant 0 : index
    %253 = vector.load %arg4[%252, %c0_51, %c0_52] : memref<8x2x128xf32, #tpu.memory_space<vmem>>, vector<1x2x128xf32>
    %254 = vector.shape_cast %253 : vector<1x2x128xf32> to vector<2x128xf32>
    %255 = vector.shape_cast %251 : vector<2x128xf32> to vector<1x2x128xf32>
    tpu.vector_store %arg4[%252, %c0_51, %c0_52], %255 {strides = array<i32>} : memref<8x2x128xf32, #tpu.memory_space<vmem>>, vector<1x2x128xf32>,
    %c4_i32 = arith.constant 4 : i32
    %256 = arith.index_cast %c4_i32 : i32 to index
    %c0_53 = arith.constant 0 : index
    %c0_54 = arith.constant 0 : index
    %257 = vector.load %arg0[%256, %c0_53, %c0_54] : memref<8x2x512xf32, #tpu.memory_space<vmem>>, vector<1x2x512xf32>
    %258 = vector.shape_cast %257 : vector<1x2x512xf32> to vector<2x512xf32>
    %cst_55 = arith.constant dense<0.000000e+00> : vector<2x512xf32>
    %259 = tpu.matmul %222, %0, %cst_55 {dimension_numbers = #tpu.dot_dimension_numbers<[1], [0], [0], [1], [0, 0, 1, 1], [], []>} : vector<2x128xf32>, vector<128x512xf32>, vector<2x512xf32> -> vector<2x512xf32>
    %260 = arith.addf %258, %259 : vector<2x512xf32>
    %261 = vector.extract_strided_slice %260 {offsets = [0, 0], sizes = [2, 128], strides = [1, 1]} : vector<2x512xf32> to vector<2x128xf32>
    %262 = arith.negf %261 : vector<2x128xf32>
    %263 = math.exp %262 : vector<2x128xf32>
    %cst_56 = arith.constant 1.000000e+00 : f32
    %264 = vector.broadcast %cst_56 : f32 to vector<2x128xf32>
    %265 = arith.addf %264, %263 : vector<2x128xf32>
    %266 = arith.divf %264, %265 : vector<2x128xf32>
    %267 = vector.extract_strided_slice %260 {offsets = [0, 128], sizes = [2, 128], strides = [1, 1]} : vector<2x512xf32> to vector<2x128xf32>
    %268 = arith.negf %267 : vector<2x128xf32>
    %269 = math.exp %268 : vector<2x128xf32>
    %cst_57 = arith.constant 1.000000e+00 : f32
    %270 = vector.broadcast %cst_57 : f32 to vector<2x128xf32>
    %271 = arith.addf %270, %269 : vector<2x128xf32>
    %272 = arith.divf %270, %271 : vector<2x128xf32>
    %273 = vector.extract_strided_slice %260 {offsets = [0, 256], sizes = [2, 128], strides = [1, 1]} : vector<2x512xf32> to vector<2x128xf32>
    %274 = math.tanh %273 : vector<2x128xf32>
    %275 = vector.extract_strided_slice %260 {offsets = [0, 384], sizes = [2, 128], strides = [1, 1]} : vector<2x512xf32> to vector<2x128xf32>
    %276 = arith.negf %275 : vector<2x128xf32>
    %277 = math.exp %276 : vector<2x128xf32>
    %cst_58 = arith.constant 1.000000e+00 : f32
    %278 = vector.broadcast %cst_58 : f32 to vector<2x128xf32>
    %279 = arith.addf %278, %277 : vector<2x128xf32>
    %280 = arith.divf %278, %279 : vector<2x128xf32>
    %281 = arith.mulf %272, %220 : vector<2x128xf32>
    %282 = arith.mulf %266, %274 : vector<2x128xf32>
    %283 = arith.addf %281, %282 : vector<2x128xf32>
    %284 = math.tanh %283 : vector<2x128xf32>
    %285 = arith.mulf %280, %284 : vector<2x128xf32>
    %286 = tpu.concatenate %285, %251 in 1 : vector<2x128xf32>, vector<2x128xf32> -> vector<2x256xf32>
    %cst_59 = arith.constant dense<0.000000e+00> : vector<2x512xf32>
    %287 = tpu.matmul %286, %1, %cst_59 {dimension_numbers = #tpu.dot_dimension_numbers<[1], [0], [0], [1], [0, 0, 1, 1], [], []>} : vector<2x256xf32>, vector<256x512xf32>, vector<2x512xf32> -> vector<2x512xf32>
    %288 = vector.broadcast %2 : vector<1x512xf32> to vector<2x512xf32>
    %289 = arith.addf %287, %288 : vector<2x512xf32>
    %290 = vector.extract_strided_slice %289 {offsets = [0, 0], sizes = [2, 128], strides = [1, 1]} : vector<2x512xf32> to vector<2x128xf32>
    %291 = arith.negf %290 : vector<2x128xf32>
    %292 = math.exp %291 : vector<2x128xf32>
    %cst_60 = arith.constant 1.000000e+00 : f32
    %293 = vector.broadcast %cst_60 : f32 to vector<2x128xf32>
    %294 = arith.addf %293, %292 : vector<2x128xf32>
    %295 = arith.divf %293, %294 : vector<2x128xf32>
    %296 = vector.extract_strided_slice %289 {offsets = [0, 128], sizes = [2, 128], strides = [1, 1]} : vector<2x512xf32> to vector<2x128xf32>
    %297 = arith.negf %296 : vector<2x128xf32>
    %298 = math.exp %297 : vector<2x128xf32>
    %cst_61 = arith.constant 1.000000e+00 : f32
    %299 = vector.broadcast %cst_61 : f32 to vector<2x128xf32>
    %300 = arith.addf %299, %298 : vector<2x128xf32>
    %301 = arith.divf %299, %300 : vector<2x128xf32>
    %302 = vector.extract_strided_slice %289 {offsets = [0, 256], sizes = [2, 128], strides = [1, 1]} : vector<2x512xf32> to vector<2x128xf32>
    %303 = math.tanh %302 : vector<2x128xf32>
    %304 = vector.extract_strided_slice %289 {offsets = [0, 384], sizes = [2, 128], strides = [1, 1]} : vector<2x512xf32> to vector<2x128xf32>
    %305 = arith.negf %304 : vector<2x128xf32>
    %306 = math.exp %305 : vector<2x128xf32>
    %cst_62 = arith.constant 1.000000e+00 : f32
    %307 = vector.broadcast %cst_62 : f32 to vector<2x128xf32>
    %308 = arith.addf %307, %306 : vector<2x128xf32>
    %309 = arith.divf %307, %308 : vector<2x128xf32>
    %310 = arith.mulf %301, %249 : vector<2x128xf32>
    %311 = arith.mulf %295, %303 : vector<2x128xf32>
    %312 = arith.addf %310, %311 : vector<2x128xf32>
    %313 = math.tanh %312 : vector<2x128xf32>
    %314 = arith.mulf %309, %313 : vector<2x128xf32>
    %315 = arith.index_cast %c4_i32 : i32 to index
    %c0_63 = arith.constant 0 : index
    %c0_64 = arith.constant 0 : index
    %316 = vector.load %arg4[%315, %c0_63, %c0_64] : memref<8x2x128xf32, #tpu.memory_space<vmem>>, vector<1x2x128xf32>
    %317 = vector.shape_cast %316 : vector<1x2x128xf32> to vector<2x128xf32>
    %318 = vector.shape_cast %314 : vector<2x128xf32> to vector<1x2x128xf32>
    tpu.vector_store %arg4[%315, %c0_63, %c0_64], %318 {strides = array<i32>} : memref<8x2x128xf32, #tpu.memory_space<vmem>>, vector<1x2x128xf32>,
    %c5_i32 = arith.constant 5 : i32
    %319 = arith.index_cast %c5_i32 : i32 to index
    %c0_65 = arith.constant 0 : index
    %c0_66 = arith.constant 0 : index
    %320 = vector.load %arg0[%319, %c0_65, %c0_66] : memref<8x2x512xf32, #tpu.memory_space<vmem>>, vector<1x2x512xf32>
    %321 = vector.shape_cast %320 : vector<1x2x512xf32> to vector<2x512xf32>
    %cst_67 = arith.constant dense<0.000000e+00> : vector<2x512xf32>
    %322 = tpu.matmul %285, %0, %cst_67 {dimension_numbers = #tpu.dot_dimension_numbers<[1], [0], [0], [1], [0, 0, 1, 1], [], []>} : vector<2x128xf32>, vector<128x512xf32>, vector<2x512xf32> -> vector<2x512xf32>
    %323 = arith.addf %321, %322 : vector<2x512xf32>
    %324 = vector.extract_strided_slice %323 {offsets = [0, 0], sizes = [2, 128], strides = [1, 1]} : vector<2x512xf32> to vector<2x128xf32>
    %325 = arith.negf %324 : vector<2x128xf32>
    %326 = math.exp %325 : vector<2x128xf32>
    %cst_68 = arith.constant 1.000000e+00 : f32
    %327 = vector.broadcast %cst_68 : f32 to vector<2x128xf32>
    %328 = arith.addf %327, %326 : vector<2x128xf32>
    %329 = arith.divf %327, %328 : vector<2x128xf32>
    %330 = vector.extract_strided_slice %323 {offsets = [0, 128], sizes = [2, 128], strides = [1, 1]} : vector<2x512xf32> to vector<2x128xf32>
    %331 = arith.negf %330 : vector<2x128xf32>
    %332 = math.exp %331 : vector<2x128xf32>
    %cst_69 = arith.constant 1.000000e+00 : f32
    %333 = vector.broadcast %cst_69 : f32 to vector<2x128xf32>
    %334 = arith.addf %333, %332 : vector<2x128xf32>
    %335 = arith.divf %333, %334 : vector<2x128xf32>
    %336 = vector.extract_strided_slice %323 {offsets = [0, 256], sizes = [2, 128], strides = [1, 1]} : vector<2x512xf32> to vector<2x128xf32>
    %337 = math.tanh %336 : vector<2x128xf32>
    %338 = vector.extract_strided_slice %323 {offsets = [0, 384], sizes = [2, 128], strides = [1, 1]} : vector<2x512xf32> to vector<2x128xf32>
    %339 = arith.negf %338 : vector<2x128xf32>
    %340 = math.exp %339 : vector<2x128xf32>
    %cst_70 = arith.constant 1.000000e+00 : f32
    %341 = vector.broadcast %cst_70 : f32 to vector<2x128xf32>
    %342 = arith.addf %341, %340 : vector<2x128xf32>
    %343 = arith.divf %341, %342 : vector<2x128xf32>
    %344 = arith.mulf %335, %283 : vector<2x128xf32>
    %345 = arith.mulf %329, %337 : vector<2x128xf32>
    %346 = arith.addf %344, %345 : vector<2x128xf32>
    %347 = math.tanh %346 : vector<2x128xf32>
    %348 = arith.mulf %343, %347 : vector<2x128xf32>
    %349 = tpu.concatenate %348, %314 in 1 : vector<2x128xf32>, vector<2x128xf32> -> vector<2x256xf32>
    %cst_71 = arith.constant dense<0.000000e+00> : vector<2x512xf32>
    %350 = tpu.matmul %349, %1, %cst_71 {dimension_numbers = #tpu.dot_dimension_numbers<[1], [0], [0], [1], [0, 0, 1, 1], [], []>} : vector<2x256xf32>, vector<256x512xf32>, vector<2x512xf32> -> vector<2x512xf32>
    %351 = vector.broadcast %2 : vector<1x512xf32> to vector<2x512xf32>
    %352 = arith.addf %350, %351 : vector<2x512xf32>
    %353 = vector.extract_strided_slice %352 {offsets = [0, 0], sizes = [2, 128], strides = [1, 1]} : vector<2x512xf32> to vector<2x128xf32>
    %354 = arith.negf %353 : vector<2x128xf32>
    %355 = math.exp %354 : vector<2x128xf32>
    %cst_72 = arith.constant 1.000000e+00 : f32
    %356 = vector.broadcast %cst_72 : f32 to vector<2x128xf32>
    %357 = arith.addf %356, %355 : vector<2x128xf32>
    %358 = arith.divf %356, %357 : vector<2x128xf32>
    %359 = vector.extract_strided_slice %352 {offsets = [0, 128], sizes = [2, 128], strides = [1, 1]} : vector<2x512xf32> to vector<2x128xf32>
    %360 = arith.negf %359 : vector<2x128xf32>
    %361 = math.exp %360 : vector<2x128xf32>
    %cst_73 = arith.constant 1.000000e+00 : f32
    %362 = vector.broadcast %cst_73 : f32 to vector<2x128xf32>
    %363 = arith.addf %362, %361 : vector<2x128xf32>
    %364 = arith.divf %362, %363 : vector<2x128xf32>
    %365 = vector.extract_strided_slice %352 {offsets = [0, 256], sizes = [2, 128], strides = [1, 1]} : vector<2x512xf32> to vector<2x128xf32>
    %366 = math.tanh %365 : vector<2x128xf32>
    %367 = vector.extract_strided_slice %352 {offsets = [0, 384], sizes = [2, 128], strides = [1, 1]} : vector<2x512xf32> to vector<2x128xf32>
    %368 = arith.negf %367 : vector<2x128xf32>
    %369 = math.exp %368 : vector<2x128xf32>
    %cst_74 = arith.constant 1.000000e+00 : f32
    %370 = vector.broadcast %cst_74 : f32 to vector<2x128xf32>
    %371 = arith.addf %370, %369 : vector<2x128xf32>
    %372 = arith.divf %370, %371 : vector<2x128xf32>
    %373 = arith.mulf %364, %312 : vector<2x128xf32>
    %374 = arith.mulf %358, %366 : vector<2x128xf32>
    %375 = arith.addf %373, %374 : vector<2x128xf32>
    %376 = math.tanh %375 : vector<2x128xf32>
    %377 = arith.mulf %372, %376 : vector<2x128xf32>
    %378 = arith.index_cast %c5_i32 : i32 to index
    %c0_75 = arith.constant 0 : index
    %c0_76 = arith.constant 0 : index
    %379 = vector.load %arg4[%378, %c0_75, %c0_76] : memref<8x2x128xf32, #tpu.memory_space<vmem>>, vector<1x2x128xf32>
    %380 = vector.shape_cast %379 : vector<1x2x128xf32> to vector<2x128xf32>
    %381 = vector.shape_cast %377 : vector<2x128xf32> to vector<1x2x128xf32>
    tpu.vector_store %arg4[%378, %c0_75, %c0_76], %381 {strides = array<i32>} : memref<8x2x128xf32, #tpu.memory_space<vmem>>, vector<1x2x128xf32>,
    %c6_i32 = arith.constant 6 : i32
    %382 = arith.index_cast %c6_i32 : i32 to index
    %c0_77 = arith.constant 0 : index
    %c0_78 = arith.constant 0 : index
    %383 = vector.load %arg0[%382, %c0_77, %c0_78] : memref<8x2x512xf32, #tpu.memory_space<vmem>>, vector<1x2x512xf32>
    %384 = vector.shape_cast %383 : vector<1x2x512xf32> to vector<2x512xf32>
    %cst_79 = arith.constant dense<0.000000e+00> : vector<2x512xf32>
    %385 = tpu.matmul %348, %0, %cst_79 {dimension_numbers = #tpu.dot_dimension_numbers<[1], [0], [0], [1], [0, 0, 1, 1], [], []>} : vector<2x128xf32>, vector<128x512xf32>, vector<2x512xf32> -> vector<2x512xf32>
    %386 = arith.addf %384, %385 : vector<2x512xf32>
    %387 = vector.extract_strided_slice %386 {offsets = [0, 0], sizes = [2, 128], strides = [1, 1]} : vector<2x512xf32> to vector<2x128xf32>
    %388 = arith.negf %387 : vector<2x128xf32>
    %389 = math.exp %388 : vector<2x128xf32>
    %cst_80 = arith.constant 1.000000e+00 : f32
    %390 = vector.broadcast %cst_80 : f32 to vector<2x128xf32>
    %391 = arith.addf %390, %389 : vector<2x128xf32>
    %392 = arith.divf %390, %391 : vector<2x128xf32>
    %393 = vector.extract_strided_slice %386 {offsets = [0, 128], sizes = [2, 128], strides = [1, 1]} : vector<2x512xf32> to vector<2x128xf32>
    %394 = arith.negf %393 : vector<2x128xf32>
    %395 = math.exp %394 : vector<2x128xf32>
    %cst_81 = arith.constant 1.000000e+00 : f32
    %396 = vector.broadcast %cst_81 : f32 to vector<2x128xf32>
    %397 = arith.addf %396, %395 : vector<2x128xf32>
    %398 = arith.divf %396, %397 : vector<2x128xf32>
    %399 = vector.extract_strided_slice %386 {offsets = [0, 256], sizes = [2, 128], strides = [1, 1]} : vector<2x512xf32> to vector<2x128xf32>
    %400 = math.tanh %399 : vector<2x128xf32>
    %401 = vector.extract_strided_slice %386 {offsets = [0, 384], sizes = [2, 128], strides = [1, 1]} : vector<2x512xf32> to vector<2x128xf32>
    %402 = arith.negf %401 : vector<2x128xf32>
    %403 = math.exp %402 : vector<2x128xf32>
    %cst_82 = arith.constant 1.000000e+00 : f32
    %404 = vector.broadcast %cst_82 : f32 to vector<2x128xf32>
    %405 = arith.addf %404, %403 : vector<2x128xf32>
    %406 = arith.divf %404, %405 : vector<2x128xf32>
    %407 = arith.mulf %398, %346 : vector<2x128xf32>
    %408 = arith.mulf %392, %400 : vector<2x128xf32>
    %409 = arith.addf %407, %408 : vector<2x128xf32>
    %410 = math.tanh %409 : vector<2x128xf32>
    %411 = arith.mulf %406, %410 : vector<2x128xf32>
    %412 = tpu.concatenate %411, %377 in 1 : vector<2x128xf32>, vector<2x128xf32> -> vector<2x256xf32>
    %cst_83 = arith.constant dense<0.000000e+00> : vector<2x512xf32>
    %413 = tpu.matmul %412, %1, %cst_83 {dimension_numbers = #tpu.dot_dimension_numbers<[1], [0], [0], [1], [0, 0, 1, 1], [], []>} : vector<2x256xf32>, vector<256x512xf32>, vector<2x512xf32> -> vector<2x512xf32>
    %414 = vector.broadcast %2 : vector<1x512xf32> to vector<2x512xf32>
    %415 = arith.addf %413, %414 : vector<2x512xf32>
    %416 = vector.extract_strided_slice %415 {offsets = [0, 0], sizes = [2, 128], strides = [1, 1]} : vector<2x512xf32> to vector<2x128xf32>
    %417 = arith.negf %416 : vector<2x128xf32>
    %418 = math.exp %417 : vector<2x128xf32>
    %cst_84 = arith.constant 1.000000e+00 : f32
    %419 = vector.broadcast %cst_84 : f32 to vector<2x128xf32>
    %420 = arith.addf %419, %418 : vector<2x128xf32>
    %421 = arith.divf %419, %420 : vector<2x128xf32>
    %422 = vector.extract_strided_slice %415 {offsets = [0, 128], sizes = [2, 128], strides = [1, 1]} : vector<2x512xf32> to vector<2x128xf32>
    %423 = arith.negf %422 : vector<2x128xf32>
    %424 = math.exp %423 : vector<2x128xf32>
    %cst_85 = arith.constant 1.000000e+00 : f32
    %425 = vector.broadcast %cst_85 : f32 to vector<2x128xf32>
    %426 = arith.addf %425, %424 : vector<2x128xf32>
    %427 = arith.divf %425, %426 : vector<2x128xf32>
    %428 = vector.extract_strided_slice %415 {offsets = [0, 256], sizes = [2, 128], strides = [1, 1]} : vector<2x512xf32> to vector<2x128xf32>
    %429 = math.tanh %428 : vector<2x128xf32>
    %430 = vector.extract_strided_slice %415 {offsets = [0, 384], sizes = [2, 128], strides = [1, 1]} : vector<2x512xf32> to vector<2x128xf32>
    %431 = arith.negf %430 : vector<2x128xf32>
    %432 = math.exp %431 : vector<2x128xf32>
    %cst_86 = arith.constant 1.000000e+00 : f32
    %433 = vector.broadcast %cst_86 : f32 to vector<2x128xf32>
    %434 = arith.addf %433, %432 : vector<2x128xf32>
    %435 = arith.divf %433, %434 : vector<2x128xf32>
    %436 = arith.mulf %427, %375 : vector<2x128xf32>
    %437 = arith.mulf %421, %429 : vector<2x128xf32>
    %438 = arith.addf %436, %437 : vector<2x128xf32>
    %439 = math.tanh %438 : vector<2x128xf32>
    %440 = arith.mulf %435, %439 : vector<2x128xf32>
    %441 = arith.index_cast %c6_i32 : i32 to index
    %c0_87 = arith.constant 0 : index
    %c0_88 = arith.constant 0 : index
    %442 = vector.load %arg4[%441, %c0_87, %c0_88] : memref<8x2x128xf32, #tpu.memory_space<vmem>>, vector<1x2x128xf32>
    %443 = vector.shape_cast %442 : vector<1x2x128xf32> to vector<2x128xf32>
    %444 = vector.shape_cast %440 : vector<2x128xf32> to vector<1x2x128xf32>
    tpu.vector_store %arg4[%441, %c0_87, %c0_88], %444 {strides = array<i32>} : memref<8x2x128xf32, #tpu.memory_space<vmem>>, vector<1x2x128xf32>,
    %c7_i32 = arith.constant 7 : i32
    %445 = arith.index_cast %c7_i32 : i32 to index
    %c0_89 = arith.constant 0 : index
    %c0_90 = arith.constant 0 : index
    %446 = vector.load %arg0[%445, %c0_89, %c0_90] : memref<8x2x512xf32, #tpu.memory_space<vmem>>, vector<1x2x512xf32>
    %447 = vector.shape_cast %446 : vector<1x2x512xf32> to vector<2x512xf32>
    %cst_91 = arith.constant dense<0.000000e+00> : vector<2x512xf32>
    %448 = tpu.matmul %411, %0, %cst_91 {dimension_numbers = #tpu.dot_dimension_numbers<[1], [0], [0], [1], [0, 0, 1, 1], [], []>} : vector<2x128xf32>, vector<128x512xf32>, vector<2x512xf32> -> vector<2x512xf32>
    %449 = arith.addf %447, %448 : vector<2x512xf32>
    %450 = vector.extract_strided_slice %449 {offsets = [0, 0], sizes = [2, 128], strides = [1, 1]} : vector<2x512xf32> to vector<2x128xf32>
    %451 = arith.negf %450 : vector<2x128xf32>
    %452 = math.exp %451 : vector<2x128xf32>
    %cst_92 = arith.constant 1.000000e+00 : f32
    %453 = vector.broadcast %cst_92 : f32 to vector<2x128xf32>
    %454 = arith.addf %453, %452 : vector<2x128xf32>
    %455 = arith.divf %453, %454 : vector<2x128xf32>
    %456 = vector.extract_strided_slice %449 {offsets = [0, 128], sizes = [2, 128], strides = [1, 1]} : vector<2x512xf32> to vector<2x128xf32>
    %457 = arith.negf %456 : vector<2x128xf32>
    %458 = math.exp %457 : vector<2x128xf32>
    %cst_93 = arith.constant 1.000000e+00 : f32
    %459 = vector.broadcast %cst_93 : f32 to vector<2x128xf32>
    %460 = arith.addf %459, %458 : vector<2x128xf32>
    %461 = arith.divf %459, %460 : vector<2x128xf32>
    %462 = vector.extract_strided_slice %449 {offsets = [0, 256], sizes = [2, 128], strides = [1, 1]} : vector<2x512xf32> to vector<2x128xf32>
    %463 = math.tanh %462 : vector<2x128xf32>
    %464 = vector.extract_strided_slice %449 {offsets = [0, 384], sizes = [2, 128], strides = [1, 1]} : vector<2x512xf32> to vector<2x128xf32>
    %465 = arith.negf %464 : vector<2x128xf32>
    %466 = math.exp %465 : vector<2x128xf32>
    %cst_94 = arith.constant 1.000000e+00 : f32
    %467 = vector.broadcast %cst_94 : f32 to vector<2x128xf32>
    %468 = arith.addf %467, %466 : vector<2x128xf32>
    %469 = arith.divf %467, %468 : vector<2x128xf32>
    %470 = arith.mulf %461, %409 : vector<2x128xf32>
    %471 = arith.mulf %455, %463 : vector<2x128xf32>
    %472 = arith.addf %470, %471 : vector<2x128xf32>
    %473 = math.tanh %472 : vector<2x128xf32>
    %474 = arith.mulf %469, %473 : vector<2x128xf32>
    %475 = tpu.concatenate %474, %440 in 1 : vector<2x128xf32>, vector<2x128xf32> -> vector<2x256xf32>
    %cst_95 = arith.constant dense<0.000000e+00> : vector<2x512xf32>
    %476 = tpu.matmul %475, %1, %cst_95 {dimension_numbers = #tpu.dot_dimension_numbers<[1], [0], [0], [1], [0, 0, 1, 1], [], []>} : vector<2x256xf32>, vector<256x512xf32>, vector<2x512xf32> -> vector<2x512xf32>
    %477 = vector.broadcast %2 : vector<1x512xf32> to vector<2x512xf32>
    %478 = arith.addf %476, %477 : vector<2x512xf32>
    %479 = vector.extract_strided_slice %478 {offsets = [0, 0], sizes = [2, 128], strides = [1, 1]} : vector<2x512xf32> to vector<2x128xf32>
    %480 = arith.negf %479 : vector<2x128xf32>
    %481 = math.exp %480 : vector<2x128xf32>
    %cst_96 = arith.constant 1.000000e+00 : f32
    %482 = vector.broadcast %cst_96 : f32 to vector<2x128xf32>
    %483 = arith.addf %482, %481 : vector<2x128xf32>
    %484 = arith.divf %482, %483 : vector<2x128xf32>
    %485 = vector.extract_strided_slice %478 {offsets = [0, 128], sizes = [2, 128], strides = [1, 1]} : vector<2x512xf32> to vector<2x128xf32>
    %486 = arith.negf %485 : vector<2x128xf32>
    %487 = math.exp %486 : vector<2x128xf32>
    %cst_97 = arith.constant 1.000000e+00 : f32
    %488 = vector.broadcast %cst_97 : f32 to vector<2x128xf32>
    %489 = arith.addf %488, %487 : vector<2x128xf32>
    %490 = arith.divf %488, %489 : vector<2x128xf32>
    %491 = vector.extract_strided_slice %478 {offsets = [0, 256], sizes = [2, 128], strides = [1, 1]} : vector<2x512xf32> to vector<2x128xf32>
    %492 = math.tanh %491 : vector<2x128xf32>
    %493 = vector.extract_strided_slice %478 {offsets = [0, 384], sizes = [2, 128], strides = [1, 1]} : vector<2x512xf32> to vector<2x128xf32>
    %494 = arith.negf %493 : vector<2x128xf32>
    %495 = math.exp %494 : vector<2x128xf32>
    %cst_98 = arith.constant 1.000000e+00 : f32
    %496 = vector.broadcast %cst_98 : f32 to vector<2x128xf32>
    %497 = arith.addf %496, %495 : vector<2x128xf32>
    %498 = arith.divf %496, %497 : vector<2x128xf32>
    %499 = arith.mulf %490, %438 : vector<2x128xf32>
    %500 = arith.mulf %484, %492 : vector<2x128xf32>
    %501 = arith.addf %499, %500 : vector<2x128xf32>
    %502 = math.tanh %501 : vector<2x128xf32>
    %503 = arith.mulf %498, %502 : vector<2x128xf32>
    %504 = arith.index_cast %c7_i32 : i32 to index
    %c0_99 = arith.constant 0 : index
    %c0_100 = arith.constant 0 : index
    %505 = vector.load %arg4[%504, %c0_99, %c0_100] : memref<8x2x128xf32, #tpu.memory_space<vmem>>, vector<1x2x128xf32>
    %506 = vector.shape_cast %505 : vector<1x2x128xf32> to vector<2x128xf32>
    %507 = vector.shape_cast %503 : vector<2x128xf32> to vector<1x2x128xf32>
    tpu.vector_store %arg4[%504, %c0_99, %c0_100], %507 {strides = array<i32>} : memref<8x2x128xf32, #tpu.memory_space<vmem>>, vector<1x2x128xf32>,
    %c8_i32 = arith.constant 8 : i32
    %c0_101 = arith.constant 0 : index
    %c0_102 = arith.constant 0 : index
    %c0_103 = arith.constant 0 : index
    %508 = vector.load %arg5[%c0_101, %c0_102, %c0_103] : memref<2x2x128xf32, #tpu.memory_space<vmem>>, vector<1x2x128xf32>
    %509 = vector.shape_cast %508 : vector<1x2x128xf32> to vector<2x128xf32>
    %510 = vector.shape_cast %474 : vector<2x128xf32> to vector<1x2x128xf32>
    tpu.vector_store %arg5[%c0_101, %c0_102, %c0_103], %510 {strides = array<i32>} : memref<2x2x128xf32, #tpu.memory_space<vmem>>, vector<1x2x128xf32>,
    %c1 = arith.constant 1 : index
    %c0_104 = arith.constant 0 : index
    %c0_105 = arith.constant 0 : index
    %511 = vector.load %arg5[%c1, %c0_104, %c0_105] : memref<2x2x128xf32, #tpu.memory_space<vmem>>, vector<1x2x128xf32>
    %512 = vector.shape_cast %511 : vector<1x2x128xf32> to vector<2x128xf32>
    %513 = vector.shape_cast %503 : vector<2x128xf32> to vector<1x2x128xf32>
    tpu.vector_store %arg5[%c1, %c0_104, %c0_105], %513 {strides = array<i32>} : memref<2x2x128xf32, #tpu.memory_space<vmem>>, vector<1x2x128xf32>,
    %c0_106 = arith.constant 0 : index
    %c0_107 = arith.constant 0 : index
    %c0_108 = arith.constant 0 : index
    %514 = vector.load %arg6[%c0_106, %c0_107, %c0_108] : memref<2x2x128xf32, #tpu.memory_space<vmem>>, vector<1x2x128xf32>
    %515 = vector.shape_cast %514 : vector<1x2x128xf32> to vector<2x128xf32>
    %516 = vector.shape_cast %472 : vector<2x128xf32> to vector<1x2x128xf32>
    tpu.vector_store %arg6[%c0_106, %c0_107, %c0_108], %516 {strides = array<i32>} : memref<2x2x128xf32, #tpu.memory_space<vmem>>, vector<1x2x128xf32>,
    %c1_109 = arith.constant 1 : index
    %c0_110 = arith.constant 0 : index
    %c0_111 = arith.constant 0 : index
    %517 = vector.load %arg6[%c1_109, %c0_110, %c0_111] : memref<2x2x128xf32, #tpu.memory_space<vmem>>, vector<1x2x128xf32>
    %518 = vector.shape_cast %517 : vector<1x2x128xf32> to vector<2x128xf32>
    %519 = vector.shape_cast %501 : vector<2x128xf32> to vector<1x2x128xf32>
    tpu.vector_store %arg6[%c1_109, %c0_110, %c0_111], %519 {strides = array<i32>} : memref<2x2x128xf32, #tpu.memory_space<vmem>>, vector<1x2x128xf32>,
    return
  }
}

</mosaic_0001>

<llo_original>
// kernel: lstmnet_forward.1
$region0: #{lstmnet_forward.1}
  #allocation0 [shape = 'u32[]', space=smem, size = 0x4, offset = 0x4, fixed_abs, tag = 'smem constant byte address 0x4 - core index']
  #allocation1 [shape = 'u32[144,128]{1,0:T(1,128)}', space=vmem, size = 0x12000, scoped, tag = 'internal scratch']
  %s0 = inlined_call_operand.vmem [shape: f32[8,2,512], index: 0, kind: input, shape index: {}]
  %s1 = inlined_call_operand.vmem [shape: f32[128,512], index: 1, kind: input, shape index: {}]
  %s2 = inlined_call_operand.vmem [shape: f32[256,512], index: 2, kind: input, shape index: {}]
  %s3 = inlined_call_operand.vmem [shape: f32[1,512], index: 3, kind: input, shape index: {}]
  %s4 = inlined_call_operand.vmem [shape: f32[8,2,128], index: 4, kind: output, shape index: {0}]
  %s5 = inlined_call_operand.hbm [shape: f32[2,2,128], index: 5, kind: output, shape index: {1}]
  %s6 = inlined_call_operand.hbm [shape: f32[2,2,128], index: 6, kind: output, shape index: {2}]
  %7 = xla_tuple %s4, %s5, %s6
  %s8 = sld [smem:[#allocation0]]
  $region42: #{lstmnet_forward.1} parent=0
    _
  %s10 = ssub.s32 1, %s8
  %s11 = scalar_select 0, %s10, %s8
  $region1: #{lstmnet_forward.1} parent=0
    #allocation2 [shape = 'u8[2048]{0}', space=vmem, size = 0x800, scoped, tag = 'output window, operand 1, single buffered']
    #allocation3 [shape = 's32[1]{0}', space=sflag, size = 0x4, scoped, tag = 'scoped memory for lstmnet_forward.1']
    #allocation4 [shape = 'u8[2048]{0}', space=vmem, size = 0x800, scoped, tag = 'output window, operand 2, single buffered']
    #allocation5 [shape = 's32[1]{0}', space=sflag, size = 0x4, scoped, tag = 'scoped memory for lstmnet_forward.1']
    %12 = vsyncpa [#allocation3], 0
    %13 = vsyncpa [#allocation5], 0
    // Predicated region
    $region2: #{lstmnet_forward.1} parent=1 // pred_check
      _
    $region3: #{lstmnet_forward.1} parent=1 // pred_check_branch
      %15 = sbr.rel (0) target = $region5
    $region4: #{lstmnet_forward.1} parent=1 // pred_region
      _
    $region5: #{lstmnet_forward.1} parent=1 // pred_fallthru
      _
    // Predicated region
    $region6: #{lstmnet_forward.1} parent=1 // pred_check
      _
    $region7: #{lstmnet_forward.1} parent=1 // pred_check_branch
      %17 = sbr.rel (0) target = $region9
    $region8: #{lstmnet_forward.1} parent=1 // pred_region
      _
    $region9: #{lstmnet_forward.1} parent=1 // pred_fallthru
      _
    // Predicated region
    $region10: #{lstmnet_forward.1} parent=1 // pred_check
      _
    $region11: #{lstmnet_forward.1} parent=1 // pred_check_branch
      %19 = sbr.rel (0) target = $region13
    $region12: #{lstmnet_forward.1} parent=1 // pred_region
      _
    $region13: #{lstmnet_forward.1} parent=1 // pred_fallthru
      _
    // Predicated region
    $region14: #{lstmnet_forward.1} parent=1 // pred_check
      _
    $region15: #{lstmnet_forward.1} parent=1 // pred_check_branch
      %21 = sbr.rel (0) target = $region17
    $region16: #{lstmnet_forward.1} parent=1 // pred_region
      _
    $region17: #{lstmnet_forward.1} parent=1 // pred_fallthru
      _
    %v22 = vld [vmem:[%s1] sm:$0xff]
    %v23 = vld [vmem:[%s1 + $0x8] sm:$0xff]
    %v24 = vld [vmem:[%s1 + $0x10] sm:$0xff]
    %v25 = vld [vmem:[%s1 + $0x18] sm:$0xff]
    %v26 = vld [vmem:[%s1 + $0x20] sm:$0xff]
    %v27 = vld [vmem:[%s1 + $0x28] sm:$0xff]
    %v28 = vld [vmem:[%s1 + $0x30] sm:$0xff]
    %v29 = vld [vmem:[%s1 + $0x38] sm:$0xff]
    %v30 = vld [vmem:[%s1 + $0x40] sm:$0xff]
    %v31 = vld [vmem:[%s1 + $0x48] sm:$0xff]
    %v32 = vld [vmem:[%s1 + $0x50] sm:$0xff]
    %v33 = vld [vmem:[%s1 + $0x58] sm:$0xff]
    %v34 = vld [vmem:[%s1 + $0x60] sm:$0xff]
    %v35 = vld [vmem:[%s1 + $0x68] sm:$0xff]
    %v36 = vld [vmem:[%s1 + $0x70] sm:$0xff]
    %v37 = vld [vmem:[%s1 + $0x78] sm:$0xff]
    %v38 = vld [vmem:[%s1 + $0x80] sm:$0xff]
    %v39 = vld [vmem:[%s1 + $0x88] sm:$0xff]
    %v40 = vld [vmem:[%s1 + $0x90] sm:$0xff]
    %v41 = vld [vmem:[%s1 + $0x98] sm:$0xff]
    %v42 = vld [vmem:[%s1 + $0xa0] sm:$0xff]
    %v43 = vld [vmem:[%s1 + $0xa8] sm:$0xff]
    %v44 = vld [vmem:[%s1 + $0xb0] sm:$0xff]
    %v45 = vld [vmem:[%s1 + $0xb8] sm:$0xff]
    %v46 = vld [vmem:[%s1 + $0xc0] sm:$0xff]
    %v47 = vld [vmem:[%s1 + $0xc8] sm:$0xff]
    %v48 = vld [vmem:[%s1 + $0xd0] sm:$0xff]
    %v49 = vld [vmem:[%s1 + $0xd8] sm:$0xff]
    %v50 = vld [vmem:[%s1 + $0xe0] sm:$0xff]
    %v51 = vld [vmem:[%s1 + $0xe8] sm:$0xff]
    %v52 = vld [vmem:[%s1 + $0xf0] sm:$0xff]
    %v53 = vld [vmem:[%s1 + $0xf8] sm:$0xff]
    %v54 = vld [vmem:[%s1 + $0x100] sm:$0xff]
    %v55 = vld [vmem:[%s1 + $0x108] sm:$0xff]
    %v56 = vld [vmem:[%s1 + $0x110] sm:$0xff]
    %v57 = vld [vmem:[%s1 + $0x118] sm:$0xff]
    %v58 = vld [vmem:[%s1 + $0x120] sm:$0xff]
    %v59 = vld [vmem:[%s1 + $0x128] sm:$0xff]
    %v60 = vld [vmem:[%s1 + $0x130] sm:$0xff]
    %v61 = vld [vmem:[%s1 + $0x138] sm:$0xff]
    %v62 = vld [vmem:[%s1 + $0x140] sm:$0xff]
    %v63 = vld [vmem:[%s1 + $0x148] sm:$0xff]
    %v64 = vld [vmem:[%s1 + $0x150] sm:$0xff]
    %v65 = vld [vmem:[%s1 + $0x158] sm:$0xff]
    %v66 = vld [vmem:[%s1 + $0x160] sm:$0xff]
    %v67 = vld [vmem:[%s1 + $0x168] sm:$0xff]
    %v68 = vld [vmem:[%s1 + $0x170] sm:$0xff]
    %v69 = vld [vmem:[%s1 + $0x178] sm:$0xff]
    %v70 = vld [vmem:[%s1 + $0x180] sm:$0xff]
    %v71 = vld [vmem:[%s1 + $0x188] sm:$0xff]
    %v72 = vld [vmem:[%s1 + $0x190] sm:$0xff]
    %v73 = vld [vmem:[%s1 + $0x198] sm:$0xff]
    %v74 = vld [vmem:[%s1 + $0x1a0] sm:$0xff]
    %v75 = vld [vmem:[%s1 + $0x1a8] sm:$0xff]
    %v76 = vld [vmem:[%s1 + $0x1b0] sm:$0xff]
    %v77 = vld [vmem:[%s1 + $0x1b8] sm:$0xff]
    %v78 = vld [vmem:[%s1 + $0x1c0] sm:$0xff]
    %v79 = vld [vmem:[%s1 + $0x1c8] sm:$0xff]
    %v80 = vld [vmem:[%s1 + $0x1d0] sm:$0xff]
    %v81 = vld [vmem:[%s1 + $0x1d8] sm:$0xff]
    %v82 = vld [vmem:[%s1 + $0x1e0] sm:$0xff]
    %v83 = vld [vmem:[%s1 + $0x1e8] sm:$0xff]
    %v84 = vld [vmem:[%s1 + $0x1f0] sm:$0xff]
    %v85 = vld [vmem:[%s1 + $0x1f8] sm:$0xff]
    %v86 = vld [vmem:[%s2] sm:$0xff]
    %v87 = vld [vmem:[%s2 + $0x8] sm:$0xff]
    %v88 = vld [vmem:[%s2 + $0x10] sm:$0xff]
    %v89 = vld [vmem:[%s2 + $0x18] sm:$0xff]
    %v90 = vld [vmem:[%s2 + $0x20] sm:$0xff]
    %v91 = vld [vmem:[%s2 + $0x28] sm:$0xff]
    %v92 = vld [vmem:[%s2 + $0x30] sm:$0xff]
    %v93 = vld [vmem:[%s2 + $0x38] sm:$0xff]
    %v94 = vld [vmem:[%s2 + $0x40] sm:$0xff]
    %v95 = vld [vmem:[%s2 + $0x48] sm:$0xff]
    %v96 = vld [vmem:[%s2 + $0x50] sm:$0xff]
    %v97 = vld [vmem:[%s2 + $0x58] sm:$0xff]
    %v98 = vld [vmem:[%s2 + $0x60] sm:$0xff]
    %v99 = vld [vmem:[%s2 + $0x68] sm:$0xff]
    %v100 = vld [vmem:[%s2 + $0x70] sm:$0xff]
    %v101 = vld [vmem:[%s2 + $0x78] sm:$0xff]
    %v102 = vld [vmem:[%s2 + $0x80] sm:$0xff]
    %v103 = vld [vmem:[%s2 + $0x88] sm:$0xff]
    %v104 = vld [vmem:[%s2 + $0x90] sm:$0xff]
    %v105 = vld [vmem:[%s2 + $0x98] sm:$0xff]
    %v106 = vld [vmem:[%s2 + $0xa0] sm:$0xff]
    %v107 = vld [vmem:[%s2 + $0xa8] sm:$0xff]
    %v108 = vld [vmem:[%s2 + $0xb0] sm:$0xff]
    %v109 = vld [vmem:[%s2 + $0xb8] sm:$0xff]
    %v110 = vld [vmem:[%s2 + $0xc0] sm:$0xff]
    %v111 = vld [vmem:[%s2 + $0xc8] sm:$0xff]
    %v112 = vld [vmem:[%s2 + $0xd0] sm:$0xff]
    %v113 = vld [vmem:[%s2 + $0xd8] sm:$0xff]
    %v114 = vld [vmem:[%s2 + $0xe0] sm:$0xff]
    %v115 = vld [vmem:[%s2 + $0xe8] sm:$0xff]
    %v116 = vld [vmem:[%s2 + $0xf0] sm:$0xff]
    %v117 = vld [vmem:[%s2 + $0xf8] sm:$0xff]
    %v118 = vld [vmem:[%s2 + $0x100] sm:$0xff]
    %v119 = vld [vmem:[%s2 + $0x108] sm:$0xff]
    %v120 = vld [vmem:[%s2 + $0x110] sm:$0xff]
    %v121 = vld [vmem:[%s2 + $0x118] sm:$0xff]
    %v122 = vld [vmem:[%s2 + $0x120] sm:$0xff]
    %v123 = vld [vmem:[%s2 + $0x128] sm:$0xff]
    %v124 = vld [vmem:[%s2 + $0x130] sm:$0xff]
    %v125 = vld [vmem:[%s2 + $0x138] sm:$0xff]
    %v126 = vld [vmem:[%s2 + $0x140] sm:$0xff]
    %v127 = vld [vmem:[%s2 + $0x148] sm:$0xff]
    %v128 = vld [vmem:[%s2 + $0x150] sm:$0xff]
    %v129 = vld [vmem:[%s2 + $0x158] sm:$0xff]
    %v130 = vld [vmem:[%s2 + $0x160] sm:$0xff]
    %v131 = vld [vmem:[%s2 + $0x168] sm:$0xff]
    %v132 = vld [vmem:[%s2 + $0x170] sm:$0xff]
    %v133 = vld [vmem:[%s2 + $0x178] sm:$0xff]
    %v134 = vld [vmem:[%s2 + $0x180] sm:$0xff]
    %v135 = vld [vmem:[%s2 + $0x188] sm:$0xff]
    %v136 = vld [vmem:[%s2 + $0x190] sm:$0xff]
    %v137 = vld [vmem:[%s2 + $0x198] sm:$0xff]
    %v138 = vld [vmem:[%s2 + $0x1a0] sm:$0xff]
    %v139 = vld [vmem:[%s2 + $0x1a8] sm:$0xff]
    %v140 = vld [vmem:[%s2 + $0x1b0] sm:$0xff]
    %v141 = vld [vmem:[%s2 + $0x1b8] sm:$0xff]
    %v142 = vld [vmem:[%s2 + $0x1c0] sm:$0xff]
    %v143 = vld [vmem:[%s2 + $0x1c8] sm:$0xff]
    %v144 = vld [vmem:[%s2 + $0x1d0] sm:$0xff]
    %v145 = vld [vmem:[%s2 + $0x1d8] sm:$0xff]
    %v146 = vld [vmem:[%s2 + $0x1e0] sm:$0xff]
    %v147 = vld [vmem:[%s2 + $0x1e8] sm:$0xff]
    %v148 = vld [vmem:[%s2 + $0x1f0] sm:$0xff]
    %v149 = vld [vmem:[%s2 + $0x1f8] sm:$0xff]
    %v150 = vld [vmem:[%s2 + $0x200] sm:$0xff]
    %v151 = vld [vmem:[%s2 + $0x208] sm:$0xff]
    %v152 = vld [vmem:[%s2 + $0x210] sm:$0xff]
    %v153 = vld [vmem:[%s2 + $0x218] sm:$0xff]
    %v154 = vld [vmem:[%s2 + $0x220] sm:$0xff]
    %v155 = vld [vmem:[%s2 + $0x228] sm:$0xff]
    %v156 = vld [vmem:[%s2 + $0x230] sm:$0xff]
    %v157 = vld [vmem:[%s2 + $0x238] sm:$0xff]
    %v158 = vld [vmem:[%s2 + $0x240] sm:$0xff]
    %v159 = vld [vmem:[%s2 + $0x248] sm:$0xff]
    %v160 = vld [vmem:[%s2 + $0x250] sm:$0xff]
    %v161 = vld [vmem:[%s2 + $0x258] sm:$0xff]
    %v162 = vld [vmem:[%s2 + $0x260] sm:$0xff]
    %v163 = vld [vmem:[%s2 + $0x268] sm:$0xff]
    %v164 = vld [vmem:[%s2 + $0x270] sm:$0xff]
    %v165 = vld [vmem:[%s2 + $0x278] sm:$0xff]
    %v166 = vld [vmem:[%s2 + $0x280] sm:$0xff]
    %v167 = vld [vmem:[%s2 + $0x288] sm:$0xff]
    %v168 = vld [vmem:[%s2 + $0x290] sm:$0xff]
    %v169 = vld [vmem:[%s2 + $0x298] sm:$0xff]
    %v170 = vld [vmem:[%s2 + $0x2a0] sm:$0xff]
    %v171 = vld [vmem:[%s2 + $0x2a8] sm:$0xff]
    %v172 = vld [vmem:[%s2 + $0x2b0] sm:$0xff]
    %v173 = vld [vmem:[%s2 + $0x2b8] sm:$0xff]
    %v174 = vld [vmem:[%s2 + $0x2c0] sm:$0xff]
    %v175 = vld [vmem:[%s2 + $0x2c8] sm:$0xff]
    %v176 = vld [vmem:[%s2 + $0x2d0] sm:$0xff]
    %v177 = vld [vmem:[%s2 + $0x2d8] sm:$0xff]
    %v178 = vld [vmem:[%s2 + $0x2e0] sm:$0xff]
    %v179 = vld [vmem:[%s2 + $0x2e8] sm:$0xff]
    %v180 = vld [vmem:[%s2 + $0x2f0] sm:$0xff]
    %v181 = vld [vmem:[%s2 + $0x2f8] sm:$0xff]
    %v182 = vld [vmem:[%s2 + $0x300] sm:$0xff]
    %v183 = vld [vmem:[%s2 + $0x308] sm:$0xff]
    %v184 = vld [vmem:[%s2 + $0x310] sm:$0xff]
    %v185 = vld [vmem:[%s2 + $0x318] sm:$0xff]
    %v186 = vld [vmem:[%s2 + $0x320] sm:$0xff]
    %v187 = vld [vmem:[%s2 + $0x328] sm:$0xff]
    %v188 = vld [vmem:[%s2 + $0x330] sm:$0xff]
    %v189 = vld [vmem:[%s2 + $0x338] sm:$0xff]
    %v190 = vld [vmem:[%s2 + $0x340] sm:$0xff]
    %v191 = vld [vmem:[%s2 + $0x348] sm:$0xff]
    %v192 = vld [vmem:[%s2 + $0x350] sm:$0xff]
    %v193 = vld [vmem:[%s2 + $0x358] sm:$0xff]
    %v194 = vld [vmem:[%s2 + $0x360] sm:$0xff]
    %v195 = vld [vmem:[%s2 + $0x368] sm:$0xff]
    %v196 = vld [vmem:[%s2 + $0x370] sm:$0xff]
    %v197 = vld [vmem:[%s2 + $0x378] sm:$0xff]
    %v198 = vld [vmem:[%s2 + $0x380] sm:$0xff]
    %v199 = vld [vmem:[%s2 + $0x388] sm:$0xff]
    %v200 = vld [vmem:[%s2 + $0x390] sm:$0xff]
    %v201 = vld [vmem:[%s2 + $0x398] sm:$0xff]
    %v202 = vld [vmem:[%s2 + $0x3a0] sm:$0xff]
    %v203 = vld [vmem:[%s2 + $0x3a8] sm:$0xff]
    %v204 = vld [vmem:[%s2 + $0x3b0] sm:$0xff]
    %v205 = vld [vmem:[%s2 + $0x3b8] sm:$0xff]
    %v206 = vld [vmem:[%s2 + $0x3c0] sm:$0xff]
    %v207 = vld [vmem:[%s2 + $0x3c8] sm:$0xff]
    %v208 = vld [vmem:[%s2 + $0x3d0] sm:$0xff]
    %v209 = vld [vmem:[%s2 + $0x3d8] sm:$0xff]
    %v210 = vld [vmem:[%s2 + $0x3e0] sm:$0xff]
    %v211 = vld [vmem:[%s2 + $0x3e8] sm:$0xff]
    %v212 = vld [vmem:[%s2 + $0x3f0] sm:$0xff]
    %v213 = vld [vmem:[%s2 + $0x3f8] sm:$0xff]
    %v214 = vld [vmem:[%s3] sm:$0xf]
    %v215 = vld [vmem:[%s0] sm:$0xff]
    %216 = vmatprep.subr.mxu0 %v23
    %217 = vmatpush1.msra.mxu0 %v22
    %218 = vmatprep.subr.mxu0 %v27
    %219 = vmatpush1.msra.mxu0 %v26
    %220 = vmatprep.subr.mxu0 %v31
    %221 = vmatpush1.msra.mxu0 %v30
    %222 = vmatprep.subr.mxu0 %v35
    %223 = vmatpush1.msra.mxu0 %v34
    %224 = vmatprep.subr.mxu0 %v39
    %225 = vmatpush1.msra.mxu0 %v38
    %226 = vmatprep.subr.mxu0 %v43
    %227 = vmatpush1.msra.mxu0 %v42
    %228 = vmatprep.subr.mxu0 %v47
    %229 = vmatpush1.msra.mxu0 %v46
    %230 = vmatprep.subr.mxu0 %v51
    %231 = vmatpush1.msra.mxu0 %v50
    %232 = vmatprep.subr.mxu0 %v55
    %233 = vmatpush1.msra.mxu0 %v54
    %234 = vmatprep.subr.mxu0 %v59
    %235 = vmatpush1.msra.mxu0 %v58
    %236 = vmatprep.subr.mxu0 %v63
    %237 = vmatpush1.msra.mxu0 %v62
    %238 = vmatprep.subr.mxu0 %v67
    %239 = vmatpush1.msra.mxu0 %v66
    %240 = vmatprep.subr.mxu0 %v71
    %241 = vmatpush1.msra.mxu0 %v70
    %242 = vmatprep.subr.mxu0 %v75
    %243 = vmatpush1.msra.mxu0 %v74
    %244 = vmatprep.subr.mxu0 %v79
    %245 = vmatpush1.msra.mxu0 %v78
    %246 = vmatprep.subr.mxu0 %v83
    %247 = vmatpush1.msra.mxu0 %v82
    %248 = vmatprep.subr.mxu0 0.0
    %249 = vmatpush1.msra.mxu0 0.0
    %250 = vmatprep.subr.mxu0 0.0
    %251 = vmatpush1.msra.mxu0 0.0
    %252 = vmatprep.subr.mxu0 0.0
    %253 = vmatpush1.msra.mxu0 0.0
    %254 = vmatprep.subr.mxu0 0.0
    %255 = vmatpush1.msra.mxu0 0.0
    %256 = vmatprep.subr.mxu0 0.0
    %257 = vmatpush1.msra.mxu0 0.0
    %258 = vmatprep.subr.mxu0 0.0
    %259 = vmatpush1.msra.mxu0 0.0
    %260 = vmatprep.subr.mxu0 0.0
    %261 = vmatpush1.msra.mxu0 0.0
    %262 = vmatprep.subr.mxu0 0.0
    %263 = vmatpush1.msra.mxu0 0.0
    %264 = vmatprep.subr.mxu0 0.0
    %265 = vmatpush1.msra.mxu0 0.0
    %266 = vmatprep.subr.mxu0 0.0
    %267 = vmatpush1.msra.mxu0 0.0
    %268 = vmatprep.subr.mxu0 0.0
    %269 = vmatpush1.msra.mxu0 0.0
    %270 = vmatprep.subr.mxu0 0.0
    %271 = vmatpush1.msra.mxu0 0.0
    %272 = vmatprep.subr.mxu0 0.0
    %273 = vmatpush1.msra.mxu0 0.0
    %274 = vmatprep.subr.mxu0 0.0
    %275 = vmatpush1.msra.mxu0 0.0
    %276 = vmatprep.subr.mxu0 0.0
    %277 = vmatpush1.msra.mxu0 0.0
    %278 = vmatprep.subr.mxu0 0.0
    %279 = vmatpush1.msra.mxu0 0.0
    %280 = vmatprep.mubr.f32.mxu0 0.0
    %281 = vmatmul.mubr.f32.gmra.mrb[0].mxu0 0.0
    %v282 = vpop.f32.mrb[0].mxu0
    %v283 = vadd.f32 0.0, %v282
    %v284 = vpop.f32.mrb[0].mxu0
    %v285 = vadd.f32 0.0, %v284
    %286 = vdwg.mxu0
    %287 = vmatprep.subr.mxu0 %v25
    %288 = vmatpush1.msra.mxu0 %v24
    %289 = vmatprep.subr.mxu0 %v29
    %290 = vmatpush1.msra.mxu0 %v28
    %291 = vmatprep.subr.mxu0 %v33
    %292 = vmatpush1.msra.mxu0 %v32
    %293 = vmatprep.subr.mxu0 %v37
    %294 = vmatpush1.msra.mxu0 %v36
    %295 = vmatprep.subr.mxu0 %v41
    %296 = vmatpush1.msra.mxu0 %v40
    %297 = vmatprep.subr.mxu0 %v45
    %298 = vmatpush1.msra.mxu0 %v44
    %299 = vmatprep.subr.mxu0 %v49
    %300 = vmatpush1.msra.mxu0 %v48
    %301 = vmatprep.subr.mxu0 %v53
    %302 = vmatpush1.msra.mxu0 %v52
    %303 = vmatprep.subr.mxu0 %v57
    %304 = vmatpush1.msra.mxu0 %v56
    %305 = vmatprep.subr.mxu0 %v61
    %306 = vmatpush1.msra.mxu0 %v60
    %307 = vmatprep.subr.mxu0 %v65
    %308 = vmatpush1.msra.mxu0 %v64
    %309 = vmatprep.subr.mxu0 %v69
    %310 = vmatpush1.msra.mxu0 %v68
    %311 = vmatprep.subr.mxu0 %v73
    %312 = vmatpush1.msra.mxu0 %v72
    %313 = vmatprep.subr.mxu0 %v77
    %314 = vmatpush1.msra.mxu0 %v76
    %315 = vmatprep.subr.mxu0 %v81
    %316 = vmatpush1.msra.mxu0 %v80
    %317 = vmatprep.subr.mxu0 %v85
    %318 = vmatpush1.msra.mxu0 %v84
    %319 = vmatprep.subr.mxu0 0.0
    %320 = vmatpush1.msra.mxu0 0.0
    %321 = vmatprep.subr.mxu0 0.0
    %322 = vmatpush1.msra.mxu0 0.0
    %323 = vmatprep.subr.mxu0 0.0
    %324 = vmatpush1.msra.mxu0 0.0
    %325 = vmatprep.subr.mxu0 0.0
    %326 = vmatpush1.msra.mxu0 0.0
    %327 = vmatprep.subr.mxu0 0.0
    %328 = vmatpush1.msra.mxu0 0.0
    %329 = vmatprep.subr.mxu0 0.0
    %330 = vmatpush1.msra.mxu0 0.0
    %331 = vmatprep.subr.mxu0 0.0
    %332 = vmatpush1.msra.mxu0 0.0
    %333 = vmatprep.subr.mxu0 0.0
    %334 = vmatpush1.msra.mxu0 0.0
    %335 = vmatprep.subr.mxu0 0.0
    %336 = vmatpush1.msra.mxu0 0.0
    %337 = vmatprep.subr.mxu0 0.0
    %338 = vmatpush1.msra.mxu0 0.0
    %339 = vmatprep.subr.mxu0 0.0
    %340 = vmatpush1.msra.mxu0 0.0
    %341 = vmatprep.subr.mxu0 0.0
    %342 = vmatpush1.msra.mxu0 0.0
    %343 = vmatprep.subr.mxu0 0.0
    %344 = vmatpush1.msra.mxu0 0.0
    %345 = vmatprep.subr.mxu0 0.0
    %346 = vmatpush1.msra.mxu0 0.0
    %347 = vmatprep.subr.mxu0 0.0
    %348 = vmatpush1.msra.mxu0 0.0
    %349 = vmatprep.subr.mxu0 0.0
    %350 = vmatpush1.msra.mxu0 0.0
    %351 = vmatprep.mubr.f32.mxu0 0.0
    %352 = vmatmul.mubr.f32.gmra.mrb[0].mxu0 0.0
    %v353 = vpop.f32.mrb[0].mxu0
    %v354 = vadd.f32 0.0, %v353
    %v355 = vpop.f32.mrb[0].mxu0
    %v356 = vadd.f32 0.0, %v355
    %357 = vdwg.mxu0
    %v362 = vcombine.low %v283, %v285
    %v363 = vcombine.low %v354, %v356
    %v365 = vunpack.c.l.s4 1983009808
    %v366 = vunpack.c.0.s8 %v365
    %v367 = vlaneseq
    %v368 = vshrl.u32 %v367, 7
    %v369 = vsub.s32 %v366, %v368
    %v370 = vrot.slane %v362, %v369
    %v372 = vunpack.c.l.s4 1983009808
    %v373 = vunpack.c.0.s8 %v372
    %v374 = vlaneseq
    %v375 = vshrl.u32 %v374, 7
    %v376 = vsub.s32 %v373, %v375
    %v377 = vrot.slane %v363, %v376
    %v378 = vcombine.low %v370, %v377
    %v380 = vadd.f32 %v215, %v378
    %v381 = vxor.u32 %v380, 2147483648
    %v382 = vmul.f32 %v381, 1.442695
    %v383 = vpow.pop %v382
    %v384 = vadd.f32 %v383, 1.0
    %v385 = vrcp.pop %v384
    %v386 = vmul.f32 1.0, %v385
    %v388 = vrot.slane %v380, 2
    %v390 = vxor.u32 %v388, 2147483648
    %v391 = vmul.f32 %v390, 1.442695
    %v392 = vpow.pop %v391
    %v393 = vadd.f32 %v392, 1.0
    %v394 = vrcp.pop %v393
    %v395 = vmul.f32 1.0, %v394
    %v396 = vrot.slane %v380, 4
    %v398 = vtanh.pop %v396
    %v399 = vrot.slane %v380, 6
    %v401 = vxor.u32 %v399, 2147483648
    %v402 = vmul.f32 %v401, 1.442695
    %v403 = vpow.pop %v402
    %v404 = vadd.f32 %v403, 1.0
    %v405 = vrcp.pop %v404
    %v406 = vmul.f32 1.0, %v405
    %v407 = vmul.f32 %v395, 0.0
    %v408 = vmul.f32 %v386, %v398
    %v409 = vadd.f32 %v407, %v408
    %v410 = vtanh.pop %v409
    %v411 = vmul.f32 %v406, %v410
    %v413 = vlaneseq
    %v414 = vshrl.u32 %v413, 7
    %v415 = vsub.s32 0, %v414
    %v416 = vrot.slane %v214, %v415
    %v417 = vlaneseq
    %v418 = vshrl.u32 %v417, 7
    %v419 = vsub.s32 1, %v418
    %v420 = vrot.slane %v214, %v419
    %v421 = vlaneseq
    %v422 = vshrl.u32 %v421, 7
    %v423 = vsub.s32 2, %v422
    %v424 = vrot.slane %v214, %v423
    %v425 = vlaneseq
    %v426 = vshrl.u32 %v425, 7
    %v427 = vsub.s32 3, %v426
    %v428 = vrot.slane %v214, %v427
    %433 = vmatprep.subr.mxu0 %v87
    %434 = vmatpush1.msra.mxu0 %v86
    %435 = vmatprep.subr.mxu0 %v91
    %436 = vmatpush1.msra.mxu0 %v90
    %437 = vmatprep.subr.mxu0 %v95
    %438 = vmatpush1.msra.mxu0 %v94
    %439 = vmatprep.subr.mxu0 %v99
    %440 = vmatpush1.msra.mxu0 %v98
    %441 = vmatprep.subr.mxu0 %v103
    %442 = vmatpush1.msra.mxu0 %v102
    %443 = vmatprep.subr.mxu0 %v107
    %444 = vmatpush1.msra.mxu0 %v106
    %445 = vmatprep.subr.mxu0 %v111
    %446 = vmatpush1.msra.mxu0 %v110
    %447 = vmatprep.subr.mxu0 %v115
    %448 = vmatpush1.msra.mxu0 %v114
    %449 = vmatprep.subr.mxu0 %v119
    %450 = vmatpush1.msra.mxu0 %v118
    %451 = vmatprep.subr.mxu0 %v123
    %452 = vmatpush1.msra.mxu0 %v122
    %453 = vmatprep.subr.mxu0 %v127
    %454 = vmatpush1.msra.mxu0 %v126
    %455 = vmatprep.subr.mxu0 %v131
    %456 = vmatpush1.msra.mxu0 %v130
    %457 = vmatprep.subr.mxu0 %v135
    %458 = vmatpush1.msra.mxu0 %v134
    %459 = vmatprep.subr.mxu0 %v139
    %460 = vmatpush1.msra.mxu0 %v138
    %461 = vmatprep.subr.mxu0 %v143
    %462 = vmatpush1.msra.mxu0 %v142
    %463 = vmatprep.subr.mxu0 %v147
    %464 = vmatpush1.msra.mxu0 %v146
    %465 = vmatprep.subr.mxu0 %v151
    %466 = vmatpush1.msra.mxu0 %v150
    %467 = vmatprep.subr.mxu0 %v155
    %468 = vmatpush1.msra.mxu0 %v154
    %469 = vmatprep.subr.mxu0 %v159
    %470 = vmatpush1.msra.mxu0 %v158
    %471 = vmatprep.subr.mxu0 %v163
    %472 = vmatpush1.msra.mxu0 %v162
    %473 = vmatprep.subr.mxu0 %v167
    %474 = vmatpush1.msra.mxu0 %v166
    %475 = vmatprep.subr.mxu0 %v171
    %476 = vmatpush1.msra.mxu0 %v170
    %477 = vmatprep.subr.mxu0 %v175
    %478 = vmatpush1.msra.mxu0 %v174
    %479 = vmatprep.subr.mxu0 %v179
    %480 = vmatpush1.msra.mxu0 %v178
    %481 = vmatprep.subr.mxu0 %v183
    %482 = vmatpush1.msra.mxu0 %v182
    %483 = vmatprep.subr.mxu0 %v187
    %484 = vmatpush1.msra.mxu0 %v186
    %485 = vmatprep.subr.mxu0 %v191
    %486 = vmatpush1.msra.mxu0 %v190
    %487 = vmatprep.subr.mxu0 %v195
    %488 = vmatpush1.msra.mxu0 %v194
    %489 = vmatprep.subr.mxu0 %v199
    %490 = vmatpush1.msra.mxu0 %v198
    %491 = vmatprep.subr.mxu0 %v203
    %492 = vmatpush1.msra.mxu0 %v202
    %493 = vmatprep.subr.mxu0 %v207
    %494 = vmatpush1.msra.mxu0 %v206
    %495 = vmatprep.subr.mxu0 %v211
    %496 = vmatpush1.msra.mxu0 %v210
    %497 = vmatprep.mubr.f32.mxu0 0.0
    %498 = vmatmul.mubr.f32.gmra.mrb[0].mxu0 %v411
    %v499 = vpop.f32.mrb[0].mxu0
    %v500 = vadd.f32 %v416, %v499
    %v501 = vpop.f32.mrb[0].mxu0
    %v502 = vadd.f32 %v420, %v501
    %503 = vdwg.mxu0
    %504 = vmatprep.subr.mxu0 %v89
    %505 = vmatpush1.msra.mxu0 %v88
    %506 = vmatprep.subr.mxu0 %v93
    %507 = vmatpush1.msra.mxu0 %v92
    %508 = vmatprep.subr.mxu0 %v97
    %509 = vmatpush1.msra.mxu0 %v96
    %510 = vmatprep.subr.mxu0 %v101
    %511 = vmatpush1.msra.mxu0 %v100
    %512 = vmatprep.subr.mxu0 %v105
    %513 = vmatpush1.msra.mxu0 %v104
    %514 = vmatprep.subr.mxu0 %v109
    %515 = vmatpush1.msra.mxu0 %v108
    %516 = vmatprep.subr.mxu0 %v113
    %517 = vmatpush1.msra.mxu0 %v112
    %518 = vmatprep.subr.mxu0 %v117
    %519 = vmatpush1.msra.mxu0 %v116
    %520 = vmatprep.subr.mxu0 %v121
    %521 = vmatpush1.msra.mxu0 %v120
    %522 = vmatprep.subr.mxu0 %v125
    %523 = vmatpush1.msra.mxu0 %v124
    %524 = vmatprep.subr.mxu0 %v129
    %525 = vmatpush1.msra.mxu0 %v128
    %526 = vmatprep.subr.mxu0 %v133
    %527 = vmatpush1.msra.mxu0 %v132
    %528 = vmatprep.subr.mxu0 %v137
    %529 = vmatpush1.msra.mxu0 %v136
    %530 = vmatprep.subr.mxu0 %v141
    %531 = vmatpush1.msra.mxu0 %v140
    %532 = vmatprep.subr.mxu0 %v145
    %533 = vmatpush1.msra.mxu0 %v144
    %534 = vmatprep.subr.mxu0 %v149
    %535 = vmatpush1.msra.mxu0 %v148
    %536 = vmatprep.subr.mxu0 %v153
    %537 = vmatpush1.msra.mxu0 %v152
    %538 = vmatprep.subr.mxu0 %v157
    %539 = vmatpush1.msra.mxu0 %v156
    %540 = vmatprep.subr.mxu0 %v161
    %541 = vmatpush1.msra.mxu0 %v160
    %542 = vmatprep.subr.mxu0 %v165
    %543 = vmatpush1.msra.mxu0 %v164
    %544 = vmatprep.subr.mxu0 %v169
    %545 = vmatpush1.msra.mxu0 %v168
    %546 = vmatprep.subr.mxu0 %v173
    %547 = vmatpush1.msra.mxu0 %v172
    %548 = vmatprep.subr.mxu0 %v177
    %549 = vmatpush1.msra.mxu0 %v176
    %550 = vmatprep.subr.mxu0 %v181
    %551 = vmatpush1.msra.mxu0 %v180
    %552 = vmatprep.subr.mxu0 %v185
    %553 = vmatpush1.msra.mxu0 %v184
    %554 = vmatprep.subr.mxu0 %v189
    %555 = vmatpush1.msra.mxu0 %v188
    %556 = vmatprep.subr.mxu0 %v193
    %557 = vmatpush1.msra.mxu0 %v192
    %558 = vmatprep.subr.mxu0 %v197
    %559 = vmatpush1.msra.mxu0 %v196
    %560 = vmatprep.subr.mxu0 %v201
    %561 = vmatpush1.msra.mxu0 %v200
    %562 = vmatprep.subr.mxu0 %v205
    %563 = vmatpush1.msra.mxu0 %v204
    %564 = vmatprep.subr.mxu0 %v209
    %565 = vmatpush1.msra.mxu0 %v208
    %566 = vmatprep.subr.mxu0 %v213
    %567 = vmatpush1.msra.mxu0 %v212
    %568 = vmatprep.mubr.f32.mxu0 0.0
    %569 = vmatmul.mubr.f32.gmra.mrb[0].mxu0 %v411
    %v570 = vpop.f32.mrb[0].mxu0
    %v571 = vadd.f32 %v424, %v570
    %v572 = vpop.f32.mrb[0].mxu0
    %v573 = vadd.f32 %v428, %v572
    %574 = vdwg.mxu0
    %v575 = vxor.u32 %v500, 2147483648
    %v576 = vmul.f32 %v575, 1.442695
    %v577 = vpow.pop %v576
    %v578 = vadd.f32 %v577, 1.0
    %v579 = vrcp.pop %v578
    %v580 = vmul.f32 1.0, %v579
    %v581 = vxor.u32 %v502, 2147483648
    %v582 = vmul.f32 %v581, 1.442695
    %v583 = vpow.pop %v582
    %v584 = vadd.f32 %v583, 1.0
    %v585 = vrcp.pop %v584
    %v586 = vmul.f32 1.0, %v585
    %v587 = vtanh.pop %v571
    %v588 = vxor.u32 %v573, 2147483648
    %v589 = vmul.f32 %v588, 1.442695
    %v590 = vpow.pop %v589
    %v591 = vadd.f32 %v590, 1.0
    %v592 = vrcp.pop %v591
    %v593 = vmul.f32 1.0, %v592
    %v594 = vmul.f32 %v586, 0.0
    %v595 = vmul.f32 %v580, %v587
    %v596 = vadd.f32 %v594, %v595
    %v597 = vtanh.pop %v596
    %v598 = vmul.f32 %v593, %v597
    %599 = vst [vmem:[%s4] sm:$0x3] %v598
    %s600 = scalar_lea.vmem %s0, 8
    %v601 = vld [vmem:[%s600] sm:$0xff]
    %602 = vmatprep.subr.mxu0 %v23
    %603 = vmatpush1.msra.mxu0 %v22
    %604 = vmatprep.subr.mxu0 %v27
    %605 = vmatpush1.msra.mxu0 %v26
    %606 = vmatprep.subr.mxu0 %v31
    %607 = vmatpush1.msra.mxu0 %v30
    %608 = vmatprep.subr.mxu0 %v35
    %609 = vmatpush1.msra.mxu0 %v34
    %610 = vmatprep.subr.mxu0 %v39
    %611 = vmatpush1.msra.mxu0 %v38
    %612 = vmatprep.subr.mxu0 %v43
    %613 = vmatpush1.msra.mxu0 %v42
    %614 = vmatprep.subr.mxu0 %v47
    %615 = vmatpush1.msra.mxu0 %v46
    %616 = vmatprep.subr.mxu0 %v51
    %617 = vmatpush1.msra.mxu0 %v50
    %618 = vmatprep.subr.mxu0 %v55
    %619 = vmatpush1.msra.mxu0 %v54
    %620 = vmatprep.subr.mxu0 %v59
    %621 = vmatpush1.msra.mxu0 %v58
    %622 = vmatprep.subr.mxu0 %v63
    %623 = vmatpush1.msra.mxu0 %v62
    %624 = vmatprep.subr.mxu0 %v67
    %625 = vmatpush1.msra.mxu0 %v66
    %626 = vmatprep.subr.mxu0 %v71
    %627 = vmatpush1.msra.mxu0 %v70
    %628 = vmatprep.subr.mxu0 %v75
    %629 = vmatpush1.msra.mxu0 %v74
    %630 = vmatprep.subr.mxu0 %v79
    %631 = vmatpush1.msra.mxu0 %v78
    %632 = vmatprep.subr.mxu0 %v83
    %633 = vmatpush1.msra.mxu0 %v82
    %634 = vmatprep.subr.mxu0 0.0
    %635 = vmatpush1.msra.mxu0 0.0
    %636 = vmatprep.subr.mxu0 0.0
    %637 = vmatpush1.msra.mxu0 0.0
    %638 = vmatprep.subr.mxu0 0.0
    %639 = vmatpush1.msra.mxu0 0.0
    %640 = vmatprep.subr.mxu0 0.0
    %641 = vmatpush1.msra.mxu0 0.0
    %642 = vmatprep.subr.mxu0 0.0
    %643 = vmatpush1.msra.mxu0 0.0
    %644 = vmatprep.subr.mxu0 0.0
    %645 = vmatpush1.msra.mxu0 0.0
    %646 = vmatprep.subr.mxu0 0.0
    %647 = vmatpush1.msra.mxu0 0.0
    %648 = vmatprep.subr.mxu0 0.0
    %649 = vmatpush1.msra.mxu0 0.0
    %650 = vmatprep.subr.mxu0 0.0
    %651 = vmatpush1.msra.mxu0 0.0
    %652 = vmatprep.subr.mxu0 0.0
    %653 = vmatpush1.msra.mxu0 0.0
    %654 = vmatprep.subr.mxu0 0.0
    %655 = vmatpush1.msra.mxu0 0.0
    %656 = vmatprep.subr.mxu0 0.0
    %657 = vmatpush1.msra.mxu0 0.0
    %658 = vmatprep.subr.mxu0 0.0
    %659 = vmatpush1.msra.mxu0 0.0
    %660 = vmatprep.subr.mxu0 0.0
    %661 = vmatpush1.msra.mxu0 0.0
    %662 = vmatprep.subr.mxu0 0.0
    %663 = vmatpush1.msra.mxu0 0.0
    %664 = vmatprep.subr.mxu0 0.0
    %665 = vmatpush1.msra.mxu0 0.0
    %666 = vmatprep.mubr.f32.mxu0 0.0
    %667 = vmatmul.mubr.f32.gmra.mrb[0].mxu0 %v411
    %v668 = vpop.f32.mrb[0].mxu0
    %v669 = vadd.f32 0.0, %v668
    %v670 = vpop.f32.mrb[0].mxu0
    %v671 = vadd.f32 0.0, %v670
    %672 = vdwg.mxu0
    %673 = vmatprep.subr.mxu0 %v25
    %674 = vmatpush1.msra.mxu0 %v24
    %675 = vmatprep.subr.mxu0 %v29
    %676 = vmatpush1.msra.mxu0 %v28
    %677 = vmatprep.subr.mxu0 %v33
    %678 = vmatpush1.msra.mxu0 %v32
    %679 = vmatprep.subr.mxu0 %v37
    %680 = vmatpush1.msra.mxu0 %v36
    %681 = vmatprep.subr.mxu0 %v41
    %682 = vmatpush1.msra.mxu0 %v40
    %683 = vmatprep.subr.mxu0 %v45
    %684 = vmatpush1.msra.mxu0 %v44
    %685 = vmatprep.subr.mxu0 %v49
    %686 = vmatpush1.msra.mxu0 %v48
    %687 = vmatprep.subr.mxu0 %v53
    %688 = vmatpush1.msra.mxu0 %v52
    %689 = vmatprep.subr.mxu0 %v57
    %690 = vmatpush1.msra.mxu0 %v56
    %691 = vmatprep.subr.mxu0 %v61
    %692 = vmatpush1.msra.mxu0 %v60
    %693 = vmatprep.subr.mxu0 %v65
    %694 = vmatpush1.msra.mxu0 %v64
    %695 = vmatprep.subr.mxu0 %v69
    %696 = vmatpush1.msra.mxu0 %v68
    %697 = vmatprep.subr.mxu0 %v73
    %698 = vmatpush1.msra.mxu0 %v72
    %699 = vmatprep.subr.mxu0 %v77
    %700 = vmatpush1.msra.mxu0 %v76
    %701 = vmatprep.subr.mxu0 %v81
    %702 = vmatpush1.msra.mxu0 %v80
    %703 = vmatprep.subr.mxu0 %v85
    %704 = vmatpush1.msra.mxu0 %v84
    %705 = vmatprep.subr.mxu0 0.0
    %706 = vmatpush1.msra.mxu0 0.0
    %707 = vmatprep.subr.mxu0 0.0
    %708 = vmatpush1.msra.mxu0 0.0
    %709 = vmatprep.subr.mxu0 0.0
    %710 = vmatpush1.msra.mxu0 0.0
    %711 = vmatprep.subr.mxu0 0.0
    %712 = vmatpush1.msra.mxu0 0.0
    %713 = vmatprep.subr.mxu0 0.0
    %714 = vmatpush1.msra.mxu0 0.0
    %715 = vmatprep.subr.mxu0 0.0
    %716 = vmatpush1.msra.mxu0 0.0
    %717 = vmatprep.subr.mxu0 0.0
    %718 = vmatpush1.msra.mxu0 0.0
    %719 = vmatprep.subr.mxu0 0.0
    %720 = vmatpush1.msra.mxu0 0.0
    %721 = vmatprep.subr.mxu0 0.0
    %722 = vmatpush1.msra.mxu0 0.0
    %723 = vmatprep.subr.mxu0 0.0
    %724 = vmatpush1.msra.mxu0 0.0
    %725 = vmatprep.subr.mxu0 0.0
    %726 = vmatpush1.msra.mxu0 0.0
    %727 = vmatprep.subr.mxu0 0.0
    %728 = vmatpush1.msra.mxu0 0.0
    %729 = vmatprep.subr.mxu0 0.0
    %730 = vmatpush1.msra.mxu0 0.0
    %731 = vmatprep.subr.mxu0 0.0
    %732 = vmatpush1.msra.mxu0 0.0
    %733 = vmatprep.subr.mxu0 0.0
    %734 = vmatpush1.msra.mxu0 0.0
    %735 = vmatprep.subr.mxu0 0.0
    %736 = vmatpush1.msra.mxu0 0.0
    %737 = vmatprep.mubr.f32.mxu0 0.0
    %738 = vmatmul.mubr.f32.gmra.mrb[0].mxu0 %v411
    %v739 = vpop.f32.mrb[0].mxu0
    %v740 = vadd.f32 0.0, %v739
    %v741 = vpop.f32.mrb[0].mxu0
    %v742 = vadd.f32 0.0, %v741
    %743 = vdwg.mxu0
    %v748 = vcombine.low %v669, %v671
    %v749 = vcombine.low %v740, %v742
    %v751 = vunpack.c.l.s4 1983009808
    %v752 = vunpack.c.0.s8 %v751
    %v753 = vlaneseq
    %v754 = vshrl.u32 %v753, 7
    %v755 = vsub.s32 %v752, %v754
    %v756 = vrot.slane %v748, %v755
    %v758 = vunpack.c.l.s4 1983009808
    %v759 = vunpack.c.0.s8 %v758
    %v760 = vlaneseq
    %v761 = vshrl.u32 %v760, 7
    %v762 = vsub.s32 %v759, %v761
    %v763 = vrot.slane %v749, %v762
    %v764 = vcombine.low %v756, %v763
    %v766 = vadd.f32 %v601, %v764
    %v767 = vxor.u32 %v766, 2147483648
    %v768 = vmul.f32 %v767, 1.442695
    %v769 = vpow.pop %v768
    %v770 = vadd.f32 %v769, 1.0
    %v771 = vrcp.pop %v770
    %v772 = vmul.f32 1.0, %v771
    %v774 = vrot.slane %v766, 2
    %v776 = vxor.u32 %v774, 2147483648
    %v777 = vmul.f32 %v776, 1.442695
    %v778 = vpow.pop %v777
    %v779 = vadd.f32 %v778, 1.0
    %v780 = vrcp.pop %v779
    %v781 = vmul.f32 1.0, %v780
    %v782 = vrot.slane %v766, 4
    %v784 = vtanh.pop %v782
    %v785 = vrot.slane %v766, 6
    %v787 = vxor.u32 %v785, 2147483648
    %v788 = vmul.f32 %v787, 1.442695
    %v789 = vpow.pop %v788
    %v790 = vadd.f32 %v789, 1.0
    %v791 = vrcp.pop %v790
    %v792 = vmul.f32 1.0, %v791
    %v793 = vmul.f32 %v781, %v409
    %v794 = vmul.f32 %v772, %v784
    %v795 = vadd.f32 %v793, %v794
    %v796 = vtanh.pop %v795
    %v797 = vmul.f32 %v792, %v796
    %798 = vmatprep.subr.mxu0 %v87
    %799 = vmatpush1.msra.mxu0 %v86
    %800 = vmatprep.subr.mxu0 %v91
    %801 = vmatpush1.msra.mxu0 %v90
    %802 = vmatprep.subr.mxu0 %v95
    %803 = vmatpush1.msra.mxu0 %v94
    %804 = vmatprep.subr.mxu0 %v99
    %805 = vmatpush1.msra.mxu0 %v98
    %806 = vmatprep.subr.mxu0 %v103
    %807 = vmatpush1.msra.mxu0 %v102
    %808 = vmatprep.subr.mxu0 %v107
    %809 = vmatpush1.msra.mxu0 %v106
    %810 = vmatprep.subr.mxu0 %v111
    %811 = vmatpush1.msra.mxu0 %v110
    %812 = vmatprep.subr.mxu0 %v115
    %813 = vmatpush1.msra.mxu0 %v114
    %814 = vmatprep.subr.mxu0 %v119
    %815 = vmatpush1.msra.mxu0 %v118
    %816 = vmatprep.subr.mxu0 %v123
    %817 = vmatpush1.msra.mxu0 %v122
    %818 = vmatprep.subr.mxu0 %v127
    %819 = vmatpush1.msra.mxu0 %v126
    %820 = vmatprep.subr.mxu0 %v131
    %821 = vmatpush1.msra.mxu0 %v130
    %822 = vmatprep.subr.mxu0 %v135
    %823 = vmatpush1.msra.mxu0 %v134
    %824 = vmatprep.subr.mxu0 %v139
    %825 = vmatpush1.msra.mxu0 %v138
    %826 = vmatprep.subr.mxu0 %v143
    %827 = vmatpush1.msra.mxu0 %v142
    %828 = vmatprep.subr.mxu0 %v147
    %829 = vmatpush1.msra.mxu0 %v146
    %830 = vmatprep.subr.mxu0 %v151
    %831 = vmatpush1.msra.mxu0 %v150
    %832 = vmatprep.subr.mxu0 %v155
    %833 = vmatpush1.msra.mxu0 %v154
    %834 = vmatprep.subr.mxu0 %v159
    %835 = vmatpush1.msra.mxu0 %v158
    %836 = vmatprep.subr.mxu0 %v163
    %837 = vmatpush1.msra.mxu0 %v162
    %838 = vmatprep.subr.mxu0 %v167
    %839 = vmatpush1.msra.mxu0 %v166
    %840 = vmatprep.subr.mxu0 %v171
    %841 = vmatpush1.msra.mxu0 %v170
    %842 = vmatprep.subr.mxu0 %v175
    %843 = vmatpush1.msra.mxu0 %v174
    %844 = vmatprep.subr.mxu0 %v179
    %845 = vmatpush1.msra.mxu0 %v178
    %846 = vmatprep.subr.mxu0 %v183
    %847 = vmatpush1.msra.mxu0 %v182
    %848 = vmatprep.subr.mxu0 %v187
    %849 = vmatpush1.msra.mxu0 %v186
    %850 = vmatprep.subr.mxu0 %v191
    %851 = vmatpush1.msra.mxu0 %v190
    %852 = vmatprep.subr.mxu0 %v195
    %853 = vmatpush1.msra.mxu0 %v194
    %854 = vmatprep.subr.mxu0 %v199
    %855 = vmatpush1.msra.mxu0 %v198
    %856 = vmatprep.subr.mxu0 %v203
    %857 = vmatpush1.msra.mxu0 %v202
    %858 = vmatprep.subr.mxu0 %v207
    %859 = vmatpush1.msra.mxu0 %v206
    %860 = vmatprep.subr.mxu0 %v211
    %861 = vmatpush1.msra.mxu0 %v210
    %862 = vmatprep.mubr.f32.mxu0 %v598
    %863 = vmatmul.mubr.f32.gmra.mrb[0].mxu0 %v797
    %v864 = vpop.f32.mrb[0].mxu0
    %v865 = vadd.f32 %v416, %v864
    %v866 = vpop.f32.mrb[0].mxu0
    %v867 = vadd.f32 %v420, %v866
    %868 = vdwg.mxu0
    %869 = vmatprep.subr.mxu0 %v89
    %870 = vmatpush1.msra.mxu0 %v88
    %871 = vmatprep.subr.mxu0 %v93
    %872 = vmatpush1.msra.mxu0 %v92
    %873 = vmatprep.subr.mxu0 %v97
    %874 = vmatpush1.msra.mxu0 %v96
    %875 = vmatprep.subr.mxu0 %v101
    %876 = vmatpush1.msra.mxu0 %v100
    %877 = vmatprep.subr.mxu0 %v105
    %878 = vmatpush1.msra.mxu0 %v104
    %879 = vmatprep.subr.mxu0 %v109
    %880 = vmatpush1.msra.mxu0 %v108
    %881 = vmatprep.subr.mxu0 %v113
    %882 = vmatpush1.msra.mxu0 %v112
    %883 = vmatprep.subr.mxu0 %v117
    %884 = vmatpush1.msra.mxu0 %v116
    %885 = vmatprep.subr.mxu0 %v121
    %886 = vmatpush1.msra.mxu0 %v120
    %887 = vmatprep.subr.mxu0 %v125
    %888 = vmatpush1.msra.mxu0 %v124
    %889 = vmatprep.subr.mxu0 %v129
    %890 = vmatpush1.msra.mxu0 %v128
    %891 = vmatprep.subr.mxu0 %v133
    %892 = vmatpush1.msra.mxu0 %v132
    %893 = vmatprep.subr.mxu0 %v137
    %894 = vmatpush1.msra.mxu0 %v136
    %895 = vmatprep.subr.mxu0 %v141
    %896 = vmatpush1.msra.mxu0 %v140
    %897 = vmatprep.subr.mxu0 %v145
    %898 = vmatpush1.msra.mxu0 %v144
    %899 = vmatprep.subr.mxu0 %v149
    %900 = vmatpush1.msra.mxu0 %v148
    %901 = vmatprep.subr.mxu0 %v153
    %902 = vmatpush1.msra.mxu0 %v152
    %903 = vmatprep.subr.mxu0 %v157
    %904 = vmatpush1.msra.mxu0 %v156
    %905 = vmatprep.subr.mxu0 %v161
    %906 = vmatpush1.msra.mxu0 %v160
    %907 = vmatprep.subr.mxu0 %v165
    %908 = vmatpush1.msra.mxu0 %v164
    %909 = vmatprep.subr.mxu0 %v169
    %910 = vmatpush1.msra.mxu0 %v168
    %911 = vmatprep.subr.mxu0 %v173
    %912 = vmatpush1.msra.mxu0 %v172
    %913 = vmatprep.subr.mxu0 %v177
    %914 = vmatpush1.msra.mxu0 %v176
    %915 = vmatprep.subr.mxu0 %v181
    %916 = vmatpush1.msra.mxu0 %v180
    %917 = vmatprep.subr.mxu0 %v185
    %918 = vmatpush1.msra.mxu0 %v184
    %919 = vmatprep.subr.mxu0 %v189
    %920 = vmatpush1.msra.mxu0 %v188
    %921 = vmatprep.subr.mxu0 %v193
    %922 = vmatpush1.msra.mxu0 %v192
    %923 = vmatprep.subr.mxu0 %v197
    %924 = vmatpush1.msra.mxu0 %v196
    %925 = vmatprep.subr.mxu0 %v201
    %926 = vmatpush1.msra.mxu0 %v200
    %927 = vmatprep.subr.mxu0 %v205
    %928 = vmatpush1.msra.mxu0 %v204
    %929 = vmatprep.subr.mxu0 %v209
    %930 = vmatpush1.msra.mxu0 %v208
    %931 = vmatprep.subr.mxu0 %v213
    %932 = vmatpush1.msra.mxu0 %v212
    %933 = vmatprep.mubr.f32.mxu0 %v598
    %934 = vmatmul.mubr.f32.gmra.mrb[0].mxu0 %v797
    %v935 = vpop.f32.mrb[0].mxu0
    %v936 = vadd.f32 %v424, %v935
    %v937 = vpop.f32.mrb[0].mxu0
    %v938 = vadd.f32 %v428, %v937
    %939 = vdwg.mxu0
    %v940 = vxor.u32 %v865, 2147483648
    %v941 = vmul.f32 %v940, 1.442695
    %v942 = vpow.pop %v941
    %v943 = vadd.f32 %v942, 1.0
    %v944 = vrcp.pop %v943
    %v945 = vmul.f32 1.0, %v944
    %v946 = vxor.u32 %v867, 2147483648
    %v947 = vmul.f32 %v946, 1.442695
    %v948 = vpow.pop %v947
    %v949 = vadd.f32 %v948, 1.0
    %v950 = vrcp.pop %v949
    %v951 = vmul.f32 1.0, %v950
    %v952 = vtanh.pop %v936
    %v953 = vxor.u32 %v938, 2147483648
    %v954 = vmul.f32 %v953, 1.442695
    %v955 = vpow.pop %v954
    %v956 = vadd.f32 %v955, 1.0
    %v957 = vrcp.pop %v956
    %v958 = vmul.f32 1.0, %v957
    %v959 = vmul.f32 %v951, %v596
    %v960 = vmul.f32 %v945, %v952
    %v961 = vadd.f32 %v959, %v960
    %v962 = vtanh.pop %v961
    %v963 = vmul.f32 %v958, %v962
    %s964 = scalar_lea.vmem %s4, 2
    %965 = vst [vmem:[%s964] sm:$0x3] %v963
    %s966 = scalar_lea.vmem %s0, 16
    %v967 = vld [vmem:[%s966] sm:$0xff]
    %968 = vmatprep.subr.mxu0 %v23
    %969 = vmatpush1.msra.mxu0 %v22
    %970 = vmatprep.subr.mxu0 %v27
    %971 = vmatpush1.msra.mxu0 %v26
    %972 = vmatprep.subr.mxu0 %v31
    %973 = vmatpush1.msra.mxu0 %v30
    %974 = vmatprep.subr.mxu0 %v35
    %975 = vmatpush1.msra.mxu0 %v34
    %976 = vmatprep.subr.mxu0 %v39
    %977 = vmatpush1.msra.mxu0 %v38
    %978 = vmatprep.subr.mxu0 %v43
    %979 = vmatpush1.msra.mxu0 %v42
    %980 = vmatprep.subr.mxu0 %v47
    %981 = vmatpush1.msra.mxu0 %v46
    %982 = vmatprep.subr.mxu0 %v51
    %983 = vmatpush1.msra.mxu0 %v50
    %984 = vmatprep.subr.mxu0 %v55
    %985 = vmatpush1.msra.mxu0 %v54
    %986 = vmatprep.subr.mxu0 %v59
    %987 = vmatpush1.msra.mxu0 %v58
    %988 = vmatprep.subr.mxu0 %v63
    %989 = vmatpush1.msra.mxu0 %v62
    %990 = vmatprep.subr.mxu0 %v67
    %991 = vmatpush1.msra.mxu0 %v66
    %992 = vmatprep.subr.mxu0 %v71
    %993 = vmatpush1.msra.mxu0 %v70
    %994 = vmatprep.subr.mxu0 %v75
    %995 = vmatpush1.msra.mxu0 %v74
    %996 = vmatprep.subr.mxu0 %v79
    %997 = vmatpush1.msra.mxu0 %v78
    %998 = vmatprep.subr.mxu0 %v83
    %999 = vmatpush1.msra.mxu0 %v82
    %1000 = vmatprep.subr.mxu0 0.0
    %1001 = vmatpush1.msra.mxu0 0.0
    %1002 = vmatprep.subr.mxu0 0.0
    %1003 = vmatpush1.msra.mxu0 0.0
    %1004 = vmatprep.subr.mxu0 0.0
    %1005 = vmatpush1.msra.mxu0 0.0
    %1006 = vmatprep.subr.mxu0 0.0
    %1007 = vmatpush1.msra.mxu0 0.0
    %1008 = vmatprep.subr.mxu0 0.0
    %1009 = vmatpush1.msra.mxu0 0.0
    %1010 = vmatprep.subr.mxu0 0.0
    %1011 = vmatpush1.msra.mxu0 0.0
    %1012 = vmatprep.subr.mxu0 0.0
    %1013 = vmatpush1.msra.mxu0 0.0
    %1014 = vmatprep.subr.mxu0 0.0
    %1015 = vmatpush1.msra.mxu0 0.0
    %1016 = vmatprep.subr.mxu0 0.0
    %1017 = vmatpush1.msra.mxu0 0.0
    %1018 = vmatprep.subr.mxu0 0.0
    %1019 = vmatpush1.msra.mxu0 0.0
    %1020 = vmatprep.subr.mxu0 0.0
    %1021 = vmatpush1.msra.mxu0 0.0
    %1022 = vmatprep.subr.mxu0 0.0
    %1023 = vmatpush1.msra.mxu0 0.0
    %1024 = vmatprep.subr.mxu0 0.0
    %1025 = vmatpush1.msra.mxu0 0.0
    %1026 = vmatprep.subr.mxu0 0.0
    %1027 = vmatpush1.msra.mxu0 0.0
    %1028 = vmatprep.subr.mxu0 0.0
    %1029 = vmatpush1.msra.mxu0 0.0
    %1030 = vmatprep.subr.mxu0 0.0
    %1031 = vmatpush1.msra.mxu0 0.0
    %1032 = vmatprep.mubr.f32.mxu0 0.0
    %1033 = vmatmul.mubr.f32.gmra.mrb[0].mxu0 %v797
    %v1034 = vpop.f32.mrb[0].mxu0
    %v1035 = vadd.f32 0.0, %v1034
    %v1036 = vpop.f32.mrb[0].mxu0
    %v1037 = vadd.f32 0.0, %v1036
    %1038 = vdwg.mxu0
    %1039 = vmatprep.subr.mxu0 %v25
    %1040 = vmatpush1.msra.mxu0 %v24
    %1041 = vmatprep.subr.mxu0 %v29
    %1042 = vmatpush1.msra.mxu0 %v28
    %1043 = vmatprep.subr.mxu0 %v33
    %1044 = vmatpush1.msra.mxu0 %v32
    %1045 = vmatprep.subr.mxu0 %v37
    %1046 = vmatpush1.msra.mxu0 %v36
    %1047 = vmatprep.subr.mxu0 %v41
    %1048 = vmatpush1.msra.mxu0 %v40
    %1049 = vmatprep.subr.mxu0 %v45
    %1050 = vmatpush1.msra.mxu0 %v44
    %1051 = vmatprep.subr.mxu0 %v49
    %1052 = vmatpush1.msra.mxu0 %v48
    %1053 = vmatprep.subr.mxu0 %v53
    %1054 = vmatpush1.msra.mxu0 %v52
    %1055 = vmatprep.subr.mxu0 %v57
    %1056 = vmatpush1.msra.mxu0 %v56
    %1057 = vmatprep.subr.mxu0 %v61
    %1058 = vmatpush1.msra.mxu0 %v60
    %1059 = vmatprep.subr.mxu0 %v65
    %1060 = vmatpush1.msra.mxu0 %v64
    %1061 = vmatprep.subr.mxu0 %v69
    %1062 = vmatpush1.msra.mxu0 %v68
    %1063 = vmatprep.subr.mxu0 %v73
    %1064 = vmatpush1.msra.mxu0 %v72
    %1065 = vmatprep.subr.mxu0 %v77
    %1066 = vmatpush1.msra.mxu0 %v76
    %1067 = vmatprep.subr.mxu0 %v81
    %1068 = vmatpush1.msra.mxu0 %v80
    %1069 = vmatprep.subr.mxu0 %v85
    %1070 = vmatpush1.msra.mxu0 %v84
    %1071 = vmatprep.subr.mxu0 0.0
    %1072 = vmatpush1.msra.mxu0 0.0
    %1073 = vmatprep.subr.mxu0 0.0
    %1074 = vmatpush1.msra.mxu0 0.0
    %1075 = vmatprep.subr.mxu0 0.0
    %1076 = vmatpush1.msra.mxu0 0.0
    %1077 = vmatprep.subr.mxu0 0.0
    %1078 = vmatpush1.msra.mxu0 0.0
    %1079 = vmatprep.subr.mxu0 0.0
    %1080 = vmatpush1.msra.mxu0 0.0
    %1081 = vmatprep.subr.mxu0 0.0
    %1082 = vmatpush1.msra.mxu0 0.0
    %1083 = vmatprep.subr.mxu0 0.0
    %1084 = vmatpush1.msra.mxu0 0.0
    %1085 = vmatprep.subr.mxu0 0.0
    %1086 = vmatpush1.msra.mxu0 0.0
    %1087 = vmatprep.subr.mxu0 0.0
    %1088 = vmatpush1.msra.mxu0 0.0
    %1089 = vmatprep.subr.mxu0 0.0
    %1090 = vmatpush1.msra.mxu0 0.0
    %1091 = vmatprep.subr.mxu0 0.0
    %1092 = vmatpush1.msra.mxu0 0.0
    %1093 = vmatprep.subr.mxu0 0.0
    %1094 = vmatpush1.msra.mxu0 0.0
    %1095 = vmatprep.subr.mxu0 0.0
    %1096 = vmatpush1.msra.mxu0 0.0
    %1097 = vmatprep.subr.mxu0 0.0
    %1098 = vmatpush1.msra.mxu0 0.0
    %1099 = vmatprep.subr.mxu0 0.0
    %1100 = vmatpush1.msra.mxu0 0.0
    %1101 = vmatprep.subr.mxu0 0.0
    %1102 = vmatpush1.msra.mxu0 0.0
    %1103 = vmatprep.mubr.f32.mxu0 0.0
    %1104 = vmatmul.mubr.f32.gmra.mrb[0].mxu0 %v797
    %v1105 = vpop.f32.mrb[0].mxu0
    %v1106 = vadd.f32 0.0, %v1105
    %v1107 = vpop.f32.mrb[0].mxu0
    %v1108 = vadd.f32 0.0, %v1107
    %1109 = vdwg.mxu0
    %v1114 = vcombine.low %v1035, %v1037
    %v1115 = vcombine.low %v1106, %v1108
    %v1117 = vunpack.c.l.s4 1983009808
    %v1118 = vunpack.c.0.s8 %v1117
    %v1119 = vlaneseq
    %v1120 = vshrl.u32 %v1119, 7
    %v1121 = vsub.s32 %v1118, %v1120
    %v1122 = vrot.slane %v1114, %v1121
    %v1124 = vunpack.c.l.s4 1983009808
    %v1125 = vunpack.c.0.s8 %v1124
    %v1126 = vlaneseq
    %v1127 = vshrl.u32 %v1126, 7
    %v1128 = vsub.s32 %v1125, %v1127
    %v1129 = vrot.slane %v1115, %v1128
    %v1130 = vcombine.low %v1122, %v1129
    %v1132 = vadd.f32 %v967, %v1130
    %v1133 = vxor.u32 %v1132, 2147483648
    %v1134 = vmul.f32 %v1133, 1.442695
    %v1135 = vpow.pop %v1134
    %v1136 = vadd.f32 %v1135, 1.0
    %v1137 = vrcp.pop %v1136
    %v1138 = vmul.f32 1.0, %v1137
    %v1140 = vrot.slane %v1132, 2
    %v1142 = vxor.u32 %v1140, 2147483648
    %v1143 = vmul.f32 %v1142, 1.442695
    %v1144 = vpow.pop %v1143
    %v1145 = vadd.f32 %v1144, 1.0
    %v1146 = vrcp.pop %v1145
    %v1147 = vmul.f32 1.0, %v1146
    %v1148 = vrot.slane %v1132, 4
    %v1150 = vtanh.pop %v1148
    %v1151 = vrot.slane %v1132, 6
    %v1153 = vxor.u32 %v1151, 2147483648
    %v1154 = vmul.f32 %v1153, 1.442695
    %v1155 = vpow.pop %v1154
    %v1156 = vadd.f32 %v1155, 1.0
    %v1157 = vrcp.pop %v1156
    %v1158 = vmul.f32 1.0, %v1157
    %v1159 = vmul.f32 %v1147, %v795
    %v1160 = vmul.f32 %v1138, %v1150
    %v1161 = vadd.f32 %v1159, %v1160
    %v1162 = vtanh.pop %v1161
    %v1163 = vmul.f32 %v1158, %v1162
    %1164 = vmatprep.subr.mxu0 %v87
    %1165 = vmatpush1.msra.mxu0 %v86
    %1166 = vmatprep.subr.mxu0 %v91
    %1167 = vmatpush1.msra.mxu0 %v90
    %1168 = vmatprep.subr.mxu0 %v95
    %1169 = vmatpush1.msra.mxu0 %v94
    %1170 = vmatprep.subr.mxu0 %v99
    %1171 = vmatpush1.msra.mxu0 %v98
    %1172 = vmatprep.subr.mxu0 %v103
    %1173 = vmatpush1.msra.mxu0 %v102
    %1174 = vmatprep.subr.mxu0 %v107
    %1175 = vmatpush1.msra.mxu0 %v106
    %1176 = vmatprep.subr.mxu0 %v111
    %1177 = vmatpush1.msra.mxu0 %v110
    %1178 = vmatprep.subr.mxu0 %v115
    %1179 = vmatpush1.msra.mxu0 %v114
    %1180 = vmatprep.subr.mxu0 %v119
    %1181 = vmatpush1.msra.mxu0 %v118
    %1182 = vmatprep.subr.mxu0 %v123
    %1183 = vmatpush1.msra.mxu0 %v122
    %1184 = vmatprep.subr.mxu0 %v127
    %1185 = vmatpush1.msra.mxu0 %v126
    %1186 = vmatprep.subr.mxu0 %v131
    %1187 = vmatpush1.msra.mxu0 %v130
    %1188 = vmatprep.subr.mxu0 %v135
    %1189 = vmatpush1.msra.mxu0 %v134
    %1190 = vmatprep.subr.mxu0 %v139
    %1191 = vmatpush1.msra.mxu0 %v138
    %1192 = vmatprep.subr.mxu0 %v143
    %1193 = vmatpush1.msra.mxu0 %v142
    %1194 = vmatprep.subr.mxu0 %v147
    %1195 = vmatpush1.msra.mxu0 %v146
    %1196 = vmatprep.subr.mxu0 %v151
    %1197 = vmatpush1.msra.mxu0 %v150
    %1198 = vmatprep.subr.mxu0 %v155
    %1199 = vmatpush1.msra.mxu0 %v154
    %1200 = vmatprep.subr.mxu0 %v159
    %1201 = vmatpush1.msra.mxu0 %v158
    %1202 = vmatprep.subr.mxu0 %v163
    %1203 = vmatpush1.msra.mxu0 %v162
    %1204 = vmatprep.subr.mxu0 %v167
    %1205 = vmatpush1.msra.mxu0 %v166
    %1206 = vmatprep.subr.mxu0 %v171
    %1207 = vmatpush1.msra.mxu0 %v170
    %1208 = vmatprep.subr.mxu0 %v175
    %1209 = vmatpush1.msra.mxu0 %v174
    %1210 = vmatprep.subr.mxu0 %v179
    %1211 = vmatpush1.msra.mxu0 %v178
    %1212 = vmatprep.subr.mxu0 %v183
    %1213 = vmatpush1.msra.mxu0 %v182
    %1214 = vmatprep.subr.mxu0 %v187
    %1215 = vmatpush1.msra.mxu0 %v186
    %1216 = vmatprep.subr.mxu0 %v191
    %1217 = vmatpush1.msra.mxu0 %v190
    %1218 = vmatprep.subr.mxu0 %v195
    %1219 = vmatpush1.msra.mxu0 %v194
    %1220 = vmatprep.subr.mxu0 %v199
    %1221 = vmatpush1.msra.mxu0 %v198
    %1222 = vmatprep.subr.mxu0 %v203
    %1223 = vmatpush1.msra.mxu0 %v202
    %1224 = vmatprep.subr.mxu0 %v207
    %1225 = vmatpush1.msra.mxu0 %v206
    %1226 = vmatprep.subr.mxu0 %v211
    %1227 = vmatpush1.msra.mxu0 %v210
    %1228 = vmatprep.mubr.f32.mxu0 %v963
    %1229 = vmatmul.mubr.f32.gmra.mrb[0].mxu0 %v1163
    %v1230 = vpop.f32.mrb[0].mxu0
    %v1231 = vadd.f32 %v416, %v1230
    %v1232 = vpop.f32.mrb[0].mxu0
    %v1233 = vadd.f32 %v420, %v1232
    %1234 = vdwg.mxu0
    %1235 = vmatprep.subr.mxu0 %v89
    %1236 = vmatpush1.msra.mxu0 %v88
    %1237 = vmatprep.subr.mxu0 %v93
    %1238 = vmatpush1.msra.mxu0 %v92
    %1239 = vmatprep.subr.mxu0 %v97
    %1240 = vmatpush1.msra.mxu0 %v96
    %1241 = vmatprep.subr.mxu0 %v101
    %1242 = vmatpush1.msra.mxu0 %v100
    %1243 = vmatprep.subr.mxu0 %v105
    %1244 = vmatpush1.msra.mxu0 %v104
    %1245 = vmatprep.subr.mxu0 %v109
    %1246 = vmatpush1.msra.mxu0 %v108
    %1247 = vmatprep.subr.mxu0 %v113
    %1248 = vmatpush1.msra.mxu0 %v112
    %1249 = vmatprep.subr.mxu0 %v117
    %1250 = vmatpush1.msra.mxu0 %v116
    %1251 = vmatprep.subr.mxu0 %v121
    %1252 = vmatpush1.msra.mxu0 %v120
    %1253 = vmatprep.subr.mxu0 %v125
    %1254 = vmatpush1.msra.mxu0 %v124
    %1255 = vmatprep.subr.mxu0 %v129
    %1256 = vmatpush1.msra.mxu0 %v128
    %1257 = vmatprep.subr.mxu0 %v133
    %1258 = vmatpush1.msra.mxu0 %v132
    %1259 = vmatprep.subr.mxu0 %v137
    %1260 = vmatpush1.msra.mxu0 %v136
    %1261 = vmatprep.subr.mxu0 %v141
    %1262 = vmatpush1.msra.mxu0 %v140
    %1263 = vmatprep.subr.mxu0 %v145
    %1264 = vmatpush1.msra.mxu0 %v144
    %1265 = vmatprep.subr.mxu0 %v149
    %1266 = vmatpush1.msra.mxu0 %v148
    %1267 = vmatprep.subr.mxu0 %v153
    %1268 = vmatpush1.msra.mxu0 %v152
    %1269 = vmatprep.subr.mxu0 %v157
    %1270 = vmatpush1.msra.mxu0 %v156
    %1271 = vmatprep.subr.mxu0 %v161
    %1272 = vmatpush1.msra.mxu0 %v160
    %1273 = vmatprep.subr.mxu0 %v165
    %1274 = vmatpush1.msra.mxu0 %v164
    %1275 = vmatprep.subr.mxu0 %v169
    %1276 = vmatpush1.msra.mxu0 %v168
    %1277 = vmatprep.subr.mxu0 %v173
    %1278 = vmatpush1.msra.mxu0 %v172
    %1279 = vmatprep.subr.mxu0 %v177
    %1280 = vmatpush1.msra.mxu0 %v176
    %1281 = vmatprep.subr.mxu0 %v181
    %1282 = vmatpush1.msra.mxu0 %v180
    %1283 = vmatprep.subr.mxu0 %v185
    %1284 = vmatpush1.msra.mxu0 %v184
    %1285 = vmatprep.subr.mxu0 %v189
    %1286 = vmatpush1.msra.mxu0 %v188
    %1287 = vmatprep.subr.mxu0 %v193
    %1288 = vmatpush1.msra.mxu0 %v192
    %1289 = vmatprep.subr.mxu0 %v197
    %1290 = vmatpush1.msra.mxu0 %v196
    %1291 = vmatprep.subr.mxu0 %v201
    %1292 = vmatpush1.msra.mxu0 %v200
    %1293 = vmatprep.subr.mxu0 %v205
    %1294 = vmatpush1.msra.mxu0 %v204
    %1295 = vmatprep.subr.mxu0 %v209
    %1296 = vmatpush1.msra.mxu0 %v208
    %1297 = vmatprep.subr.mxu0 %v213
    %1298 = vmatpush1.msra.mxu0 %v212
    %1299 = vmatprep.mubr.f32.mxu0 %v963
    %1300 = vmatmul.mubr.f32.gmra.mrb[0].mxu0 %v1163
    %v1301 = vpop.f32.mrb[0].mxu0
    %v1302 = vadd.f32 %v424, %v1301
    %v1303 = vpop.f32.mrb[0].mxu0
    %v1304 = vadd.f32 %v428, %v1303
    %1305 = vdwg.mxu0
    %v1306 = vxor.u32 %v1231, 2147483648
    %v1307 = vmul.f32 %v1306, 1.442695
    %v1308 = vpow.pop %v1307
    %v1309 = vadd.f32 %v1308, 1.0
    %v1310 = vrcp.pop %v1309
    %v1311 = vmul.f32 1.0, %v1310
    %v1312 = vxor.u32 %v1233, 2147483648
    %v1313 = vmul.f32 %v1312, 1.442695
    %v1314 = vpow.pop %v1313
    %v1315 = vadd.f32 %v1314, 1.0
    %v1316 = vrcp.pop %v1315
    %v1317 = vmul.f32 1.0, %v1316
    %v1318 = vtanh.pop %v1302
    %v1319 = vxor.u32 %v1304, 2147483648
    %v1320 = vmul.f32 %v1319, 1.442695
    %v1321 = vpow.pop %v1320
    %v1322 = vadd.f32 %v1321, 1.0
    %v1323 = vrcp.pop %v1322
    %v1324 = vmul.f32 1.0, %v1323
    %v1325 = vmul.f32 %v1317, %v961
    %v1326 = vmul.f32 %v1311, %v1318
    %v1327 = vadd.f32 %v1325, %v1326
    %v1328 = vtanh.pop %v1327
    %v1329 = vmul.f32 %v1324, %v1328
    %s1330 = scalar_lea.vmem %s4, 4
    %1331 = vst [vmem:[%s1330] sm:$0x3] %v1329
    %s1332 = scalar_lea.vmem %s0, 24
    %v1333 = vld [vmem:[%s1332] sm:$0xff]
    %1334 = vmatprep.subr.mxu0 %v23
    %1335 = vmatpush1.msra.mxu0 %v22
    %1336 = vmatprep.subr.mxu0 %v27
    %1337 = vmatpush1.msra.mxu0 %v26
    %1338 = vmatprep.subr.mxu0 %v31
    %1339 = vmatpush1.msra.mxu0 %v30
    %1340 = vmatprep.subr.mxu0 %v35
    %1341 = vmatpush1.msra.mxu0 %v34
    %1342 = vmatprep.subr.mxu0 %v39
    %1343 = vmatpush1.msra.mxu0 %v38
    %1344 = vmatprep.subr.mxu0 %v43
    %1345 = vmatpush1.msra.mxu0 %v42
    %1346 = vmatprep.subr.mxu0 %v47
    %1347 = vmatpush1.msra.mxu0 %v46
    %1348 = vmatprep.subr.mxu0 %v51
    %1349 = vmatpush1.msra.mxu0 %v50
    %1350 = vmatprep.subr.mxu0 %v55
    %1351 = vmatpush1.msra.mxu0 %v54
    %1352 = vmatprep.subr.mxu0 %v59
    %1353 = vmatpush1.msra.mxu0 %v58
    %1354 = vmatprep.subr.mxu0 %v63
    %1355 = vmatpush1.msra.mxu0 %v62
    %1356 = vmatprep.subr.mxu0 %v67
    %1357 = vmatpush1.msra.mxu0 %v66
    %1358 = vmatprep.subr.mxu0 %v71
    %1359 = vmatpush1.msra.mxu0 %v70
    %1360 = vmatprep.subr.mxu0 %v75
    %1361 = vmatpush1.msra.mxu0 %v74
    %1362 = vmatprep.subr.mxu0 %v79
    %1363 = vmatpush1.msra.mxu0 %v78
    %1364 = vmatprep.subr.mxu0 %v83
    %1365 = vmatpush1.msra.mxu0 %v82
    %1366 = vmatprep.subr.mxu0 0.0
    %1367 = vmatpush1.msra.mxu0 0.0
    %1368 = vmatprep.subr.mxu0 0.0
    %1369 = vmatpush1.msra.mxu0 0.0
    %1370 = vmatprep.subr.mxu0 0.0
    %1371 = vmatpush1.msra.mxu0 0.0
    %1372 = vmatprep.subr.mxu0 0.0
    %1373 = vmatpush1.msra.mxu0 0.0
    %1374 = vmatprep.subr.mxu0 0.0
    %1375 = vmatpush1.msra.mxu0 0.0
    %1376 = vmatprep.subr.mxu0 0.0
    %1377 = vmatpush1.msra.mxu0 0.0
    %1378 = vmatprep.subr.mxu0 0.0
    %1379 = vmatpush1.msra.mxu0 0.0
    %1380 = vmatprep.subr.mxu0 0.0
    %1381 = vmatpush1.msra.mxu0 0.0
    %1382 = vmatprep.subr.mxu0 0.0
    %1383 = vmatpush1.msra.mxu0 0.0
    %1384 = vmatprep.subr.mxu0 0.0
    %1385 = vmatpush1.msra.mxu0 0.0
    %1386 = vmatprep.subr.mxu0 0.0
    %1387 = vmatpush1.msra.mxu0 0.0
    %1388 = vmatprep.subr.mxu0 0.0
    %1389 = vmatpush1.msra.mxu0 0.0
    %1390 = vmatprep.subr.mxu0 0.0
    %1391 = vmatpush1.msra.mxu0 0.0
    %1392 = vmatprep.subr.mxu0 0.0
    %1393 = vmatpush1.msra.mxu0 0.0
    %1394 = vmatprep.subr.mxu0 0.0
    %1395 = vmatpush1.msra.mxu0 0.0
    %1396 = vmatprep.subr.mxu0 0.0
    %1397 = vmatpush1.msra.mxu0 0.0
    %1398 = vmatprep.mubr.f32.mxu0 0.0
    %1399 = vmatmul.mubr.f32.gmra.mrb[0].mxu0 %v1163
    %v1400 = vpop.f32.mrb[0].mxu0
    %v1401 = vadd.f32 0.0, %v1400
    %v1402 = vpop.f32.mrb[0].mxu0
    %v1403 = vadd.f32 0.0, %v1402
    %1404 = vdwg.mxu0
    %1405 = vmatprep.subr.mxu0 %v25
    %1406 = vmatpush1.msra.mxu0 %v24
    %1407 = vmatprep.subr.mxu0 %v29
    %1408 = vmatpush1.msra.mxu0 %v28
    %1409 = vmatprep.subr.mxu0 %v33
    %1410 = vmatpush1.msra.mxu0 %v32
    %1411 = vmatprep.subr.mxu0 %v37
    %1412 = vmatpush1.msra.mxu0 %v36
    %1413 = vmatprep.subr.mxu0 %v41
    %1414 = vmatpush1.msra.mxu0 %v40
    %1415 = vmatprep.subr.mxu0 %v45
    %1416 = vmatpush1.msra.mxu0 %v44
    %1417 = vmatprep.subr.mxu0 %v49
    %1418 = vmatpush1.msra.mxu0 %v48
    %1419 = vmatprep.subr.mxu0 %v53
    %1420 = vmatpush1.msra.mxu0 %v52
    %1421 = vmatprep.subr.mxu0 %v57
    %1422 = vmatpush1.msra.mxu0 %v56
    %1423 = vmatprep.subr.mxu0 %v61
    %1424 = vmatpush1.msra.mxu0 %v60
    %1425 = vmatprep.subr.mxu0 %v65
    %1426 = vmatpush1.msra.mxu0 %v64
    %1427 = vmatprep.subr.mxu0 %v69
    %1428 = vmatpush1.msra.mxu0 %v68
    %1429 = vmatprep.subr.mxu0 %v73
    %1430 = vmatpush1.msra.mxu0 %v72
    %1431 = vmatprep.subr.mxu0 %v77
    %1432 = vmatpush1.msra.mxu0 %v76
    %1433 = vmatprep.subr.mxu0 %v81
    %1434 = vmatpush1.msra.mxu0 %v80
    %1435 = vmatprep.subr.mxu0 %v85
    %1436 = vmatpush1.msra.mxu0 %v84
    %1437 = vmatprep.subr.mxu0 0.0
    %1438 = vmatpush1.msra.mxu0 0.0
    %1439 = vmatprep.subr.mxu0 0.0
    %1440 = vmatpush1.msra.mxu0 0.0
    %1441 = vmatprep.subr.mxu0 0.0
    %1442 = vmatpush1.msra.mxu0 0.0
    %1443 = vmatprep.subr.mxu0 0.0
    %1444 = vmatpush1.msra.mxu0 0.0
    %1445 = vmatprep.subr.mxu0 0.0
    %1446 = vmatpush1.msra.mxu0 0.0
    %1447 = vmatprep.subr.mxu0 0.0
    %1448 = vmatpush1.msra.mxu0 0.0
    %1449 = vmatprep.subr.mxu0 0.0
    %1450 = vmatpush1.msra.mxu0 0.0
    %1451 = vmatprep.subr.mxu0 0.0
    %1452 = vmatpush1.msra.mxu0 0.0
    %1453 = vmatprep.subr.mxu0 0.0
    %1454 = vmatpush1.msra.mxu0 0.0
    %1455 = vmatprep.subr.mxu0 0.0
    %1456 = vmatpush1.msra.mxu0 0.0
    %1457 = vmatprep.subr.mxu0 0.0
    %1458 = vmatpush1.msra.mxu0 0.0
    %1459 = vmatprep.subr.mxu0 0.0
    %1460 = vmatpush1.msra.mxu0 0.0
    %1461 = vmatprep.subr.mxu0 0.0
    %1462 = vmatpush1.msra.mxu0 0.0
    %1463 = vmatprep.subr.mxu0 0.0
    %1464 = vmatpush1.msra.mxu0 0.0
    %1465 = vmatprep.subr.mxu0 0.0
    %1466 = vmatpush1.msra.mxu0 0.0
    %1467 = vmatprep.subr.mxu0 0.0
    %1468 = vmatpush1.msra.mxu0 0.0
    %1469 = vmatprep.mubr.f32.mxu0 0.0
    %1470 = vmatmul.mubr.f32.gmra.mrb[0].mxu0 %v1163
    %v1471 = vpop.f32.mrb[0].mxu0
    %v1472 = vadd.f32 0.0, %v1471
    %v1473 = vpop.f32.mrb[0].mxu0
    %v1474 = vadd.f32 0.0, %v1473
    %1475 = vdwg.mxu0
    %v1480 = vcombine.low %v1401, %v1403
    %v1481 = vcombine.low %v1472, %v1474
    %v1483 = vunpack.c.l.s4 1983009808
    %v1484 = vunpack.c.0.s8 %v1483
    %v1485 = vlaneseq
    %v1486 = vshrl.u32 %v1485, 7
    %v1487 = vsub.s32 %v1484, %v1486
    %v1488 = vrot.slane %v1480, %v1487
    %v1490 = vunpack.c.l.s4 1983009808
    %v1491 = vunpack.c.0.s8 %v1490
    %v1492 = vlaneseq
    %v1493 = vshrl.u32 %v1492, 7
    %v1494 = vsub.s32 %v1491, %v1493
    %v1495 = vrot.slane %v1481, %v1494
    %v1496 = vcombine.low %v1488, %v1495
    %v1498 = vadd.f32 %v1333, %v1496
    %v1499 = vxor.u32 %v1498, 2147483648
    %v1500 = vmul.f32 %v1499, 1.442695
    %v1501 = vpow.pop %v1500
    %v1502 = vadd.f32 %v1501, 1.0
    %v1503 = vrcp.pop %v1502
    %v1504 = vmul.f32 1.0, %v1503
    %v1506 = vrot.slane %v1498, 2
    %v1508 = vxor.u32 %v1506, 2147483648
    %v1509 = vmul.f32 %v1508, 1.442695
    %v1510 = vpow.pop %v1509
    %v1511 = vadd.f32 %v1510, 1.0
    %v1512 = vrcp.pop %v1511
    %v1513 = vmul.f32 1.0, %v1512
    %v1514 = vrot.slane %v1498, 4
    %v1516 = vtanh.pop %v1514
    %v1517 = vrot.slane %v1498, 6
    %v1519 = vxor.u32 %v1517, 2147483648
    %v1520 = vmul.f32 %v1519, 1.442695
    %v1521 = vpow.pop %v1520
    %v1522 = vadd.f32 %v1521, 1.0
    %v1523 = vrcp.pop %v1522
    %v1524 = vmul.f32 1.0, %v1523
    %v1525 = vmul.f32 %v1513, %v1161
    %v1526 = vmul.f32 %v1504, %v1516
    %v1527 = vadd.f32 %v1525, %v1526
    %v1528 = vtanh.pop %v1527
    %v1529 = vmul.f32 %v1524, %v1528
    %1530 = vmatprep.subr.mxu0 %v87
    %1531 = vmatpush1.msra.mxu0 %v86
    %1532 = vmatprep.subr.mxu0 %v91
    %1533 = vmatpush1.msra.mxu0 %v90
    %1534 = vmatprep.subr.mxu0 %v95
    %1535 = vmatpush1.msra.mxu0 %v94
    %1536 = vmatprep.subr.mxu0 %v99
    %1537 = vmatpush1.msra.mxu0 %v98
    %1538 = vmatprep.subr.mxu0 %v103
    %1539 = vmatpush1.msra.mxu0 %v102
    %1540 = vmatprep.subr.mxu0 %v107
    %1541 = vmatpush1.msra.mxu0 %v106
    %1542 = vmatprep.subr.mxu0 %v111
    %1543 = vmatpush1.msra.mxu0 %v110
    %1544 = vmatprep.subr.mxu0 %v115
    %1545 = vmatpush1.msra.mxu0 %v114
    %1546 = vmatprep.subr.mxu0 %v119
    %1547 = vmatpush1.msra.mxu0 %v118
    %1548 = vmatprep.subr.mxu0 %v123
    %1549 = vmatpush1.msra.mxu0 %v122
    %1550 = vmatprep.subr.mxu0 %v127
    %1551 = vmatpush1.msra.mxu0 %v126
    %1552 = vmatprep.subr.mxu0 %v131
    %1553 = vmatpush1.msra.mxu0 %v130
    %1554 = vmatprep.subr.mxu0 %v135
    %1555 = vmatpush1.msra.mxu0 %v134
    %1556 = vmatprep.subr.mxu0 %v139
    %1557 = vmatpush1.msra.mxu0 %v138
    %1558 = vmatprep.subr.mxu0 %v143
    %1559 = vmatpush1.msra.mxu0 %v142
    %1560 = vmatprep.subr.mxu0 %v147
    %1561 = vmatpush1.msra.mxu0 %v146
    %1562 = vmatprep.subr.mxu0 %v151
    %1563 = vmatpush1.msra.mxu0 %v150
    %1564 = vmatprep.subr.mxu0 %v155
    %1565 = vmatpush1.msra.mxu0 %v154
    %1566 = vmatprep.subr.mxu0 %v159
    %1567 = vmatpush1.msra.mxu0 %v158
    %1568 = vmatprep.subr.mxu0 %v163
    %1569 = vmatpush1.msra.mxu0 %v162
    %1570 = vmatprep.subr.mxu0 %v167
    %1571 = vmatpush1.msra.mxu0 %v166
    %1572 = vmatprep.subr.mxu0 %v171
    %1573 = vmatpush1.msra.mxu0 %v170
    %1574 = vmatprep.subr.mxu0 %v175
    %1575 = vmatpush1.msra.mxu0 %v174
    %1576 = vmatprep.subr.mxu0 %v179
    %1577 = vmatpush1.msra.mxu0 %v178
    %1578 = vmatprep.subr.mxu0 %v183
    %1579 = vmatpush1.msra.mxu0 %v182
    %1580 = vmatprep.subr.mxu0 %v187
    %1581 = vmatpush1.msra.mxu0 %v186
    %1582 = vmatprep.subr.mxu0 %v191
    %1583 = vmatpush1.msra.mxu0 %v190
    %1584 = vmatprep.subr.mxu0 %v195
    %1585 = vmatpush1.msra.mxu0 %v194
    %1586 = vmatprep.subr.mxu0 %v199
    %1587 = vmatpush1.msra.mxu0 %v198
    %1588 = vmatprep.subr.mxu0 %v203
    %1589 = vmatpush1.msra.mxu0 %v202
    %1590 = vmatprep.subr.mxu0 %v207
    %1591 = vmatpush1.msra.mxu0 %v206
    %1592 = vmatprep.subr.mxu0 %v211
    %1593 = vmatpush1.msra.mxu0 %v210
    %1594 = vmatprep.mubr.f32.mxu0 %v1329
    %1595 = vmatmul.mubr.f32.gmra.mrb[0].mxu0 %v1529
    %v1596 = vpop.f32.mrb[0].mxu0
    %v1597 = vadd.f32 %v416, %v1596
    %v1598 = vpop.f32.mrb[0].mxu0
    %v1599 = vadd.f32 %v420, %v1598
    %1600 = vdwg.mxu0
    %1601 = vmatprep.subr.mxu0 %v89
    %1602 = vmatpush1.msra.mxu0 %v88
    %1603 = vmatprep.subr.mxu0 %v93
    %1604 = vmatpush1.msra.mxu0 %v92
    %1605 = vmatprep.subr.mxu0 %v97
    %1606 = vmatpush1.msra.mxu0 %v96
    %1607 = vmatprep.subr.mxu0 %v101
    %1608 = vmatpush1.msra.mxu0 %v100
    %1609 = vmatprep.subr.mxu0 %v105
    %1610 = vmatpush1.msra.mxu0 %v104
    %1611 = vmatprep.subr.mxu0 %v109
    %1612 = vmatpush1.msra.mxu0 %v108
    %1613 = vmatprep.subr.mxu0 %v113
    %1614 = vmatpush1.msra.mxu0 %v112
    %1615 = vmatprep.subr.mxu0 %v117
    %1616 = vmatpush1.msra.mxu0 %v116
    %1617 = vmatprep.subr.mxu0 %v121
    %1618 = vmatpush1.msra.mxu0 %v120
    %1619 = vmatprep.subr.mxu0 %v125
    %1620 = vmatpush1.msra.mxu0 %v124
    %1621 = vmatprep.subr.mxu0 %v129
    %1622 = vmatpush1.msra.mxu0 %v128
    %1623 = vmatprep.subr.mxu0 %v133
    %1624 = vmatpush1.msra.mxu0 %v132
    %1625 = vmatprep.subr.mxu0 %v137
    %1626 = vmatpush1.msra.mxu0 %v136
    %1627 = vmatprep.subr.mxu0 %v141
    %1628 = vmatpush1.msra.mxu0 %v140
    %1629 = vmatprep.subr.mxu0 %v145
    %1630 = vmatpush1.msra.mxu0 %v144
    %1631 = vmatprep.subr.mxu0 %v149
    %1632 = vmatpush1.msra.mxu0 %v148
    %1633 = vmatprep.subr.mxu0 %v153
    %1634 = vmatpush1.msra.mxu0 %v152
    %1635 = vmatprep.subr.mxu0 %v157
    %1636 = vmatpush1.msra.mxu0 %v156
    %1637 = vmatprep.subr.mxu0 %v161
    %1638 = vmatpush1.msra.mxu0 %v160
    %1639 = vmatprep.subr.mxu0 %v165
    %1640 = vmatpush1.msra.mxu0 %v164
    %1641 = vmatprep.subr.mxu0 %v169
    %1642 = vmatpush1.msra.mxu0 %v168
    %1643 = vmatprep.subr.mxu0 %v173
    %1644 = vmatpush1.msra.mxu0 %v172
    %1645 = vmatprep.subr.mxu0 %v177
    %1646 = vmatpush1.msra.mxu0 %v176
    %1647 = vmatprep.subr.mxu0 %v181
    %1648 = vmatpush1.msra.mxu0 %v180
    %1649 = vmatprep.subr.mxu0 %v185
    %1650 = vmatpush1.msra.mxu0 %v184
    %1651 = vmatprep.subr.mxu0 %v189
    %1652 = vmatpush1.msra.mxu0 %v188
    %1653 = vmatprep.subr.mxu0 %v193
    %1654 = vmatpush1.msra.mxu0 %v192
    %1655 = vmatprep.subr.mxu0 %v197
    %1656 = vmatpush1.msra.mxu0 %v196
    %1657 = vmatprep.subr.mxu0 %v201
    %1658 = vmatpush1.msra.mxu0 %v200
    %1659 = vmatprep.subr.mxu0 %v205
    %1660 = vmatpush1.msra.mxu0 %v204
    %1661 = vmatprep.subr.mxu0 %v209
    %1662 = vmatpush1.msra.mxu0 %v208
    %1663 = vmatprep.subr.mxu0 %v213
    %1664 = vmatpush1.msra.mxu0 %v212
    %1665 = vmatprep.mubr.f32.mxu0 %v1329
    %1666 = vmatmul.mubr.f32.gmra.mrb[0].mxu0 %v1529
    %v1667 = vpop.f32.mrb[0].mxu0
    %v1668 = vadd.f32 %v424, %v1667
    %v1669 = vpop.f32.mrb[0].mxu0
    %v1670 = vadd.f32 %v428, %v1669
    %1671 = vdwg.mxu0
    %v1672 = vxor.u32 %v1597, 2147483648
    %v1673 = vmul.f32 %v1672, 1.442695
    %v1674 = vpow.pop %v1673
    %v1675 = vadd.f32 %v1674, 1.0
    %v1676 = vrcp.pop %v1675
    %v1677 = vmul.f32 1.0, %v1676
    %v1678 = vxor.u32 %v1599, 2147483648
    %v1679 = vmul.f32 %v1678, 1.442695
    %v1680 = vpow.pop %v1679
    %v1681 = vadd.f32 %v1680, 1.0
    %v1682 = vrcp.pop %v1681
    %v1683 = vmul.f32 1.0, %v1682
    %v1684 = vtanh.pop %v1668
    %v1685 = vxor.u32 %v1670, 2147483648
    %v1686 = vmul.f32 %v1685, 1.442695
    %v1687 = vpow.pop %v1686
    %v1688 = vadd.f32 %v1687, 1.0
    %v1689 = vrcp.pop %v1688
    %v1690 = vmul.f32 1.0, %v1689
    %v1691 = vmul.f32 %v1683, %v1327
    %v1692 = vmul.f32 %v1677, %v1684
    %v1693 = vadd.f32 %v1691, %v1692
    %v1694 = vtanh.pop %v1693
    %v1695 = vmul.f32 %v1690, %v1694
    %s1696 = scalar_lea.vmem %s4, 6
    %1697 = vst [vmem:[%s1696] sm:$0x3] %v1695
    %s1698 = scalar_lea.vmem %s0, 32
    %v1699 = vld [vmem:[%s1698] sm:$0xff]
    %1700 = vmatprep.subr.mxu0 %v23
    %1701 = vmatpush1.msra.mxu0 %v22
    %1702 = vmatprep.subr.mxu0 %v27
    %1703 = vmatpush1.msra.mxu0 %v26
    %1704 = vmatprep.subr.mxu0 %v31
    %1705 = vmatpush1.msra.mxu0 %v30
    %1706 = vmatprep.subr.mxu0 %v35
    %1707 = vmatpush1.msra.mxu0 %v34
    %1708 = vmatprep.subr.mxu0 %v39
    %1709 = vmatpush1.msra.mxu0 %v38
    %1710 = vmatprep.subr.mxu0 %v43
    %1711 = vmatpush1.msra.mxu0 %v42
    %1712 = vmatprep.subr.mxu0 %v47
    %1713 = vmatpush1.msra.mxu0 %v46
    %1714 = vmatprep.subr.mxu0 %v51
    %1715 = vmatpush1.msra.mxu0 %v50
    %1716 = vmatprep.subr.mxu0 %v55
    %1717 = vmatpush1.msra.mxu0 %v54
    %1718 = vmatprep.subr.mxu0 %v59
    %1719 = vmatpush1.msra.mxu0 %v58
    %1720 = vmatprep.subr.mxu0 %v63
    %1721 = vmatpush1.msra.mxu0 %v62
    %1722 = vmatprep.subr.mxu0 %v67
    %1723 = vmatpush1.msra.mxu0 %v66
    %1724 = vmatprep.subr.mxu0 %v71
    %1725 = vmatpush1.msra.mxu0 %v70
    %1726 = vmatprep.subr.mxu0 %v75
    %1727 = vmatpush1.msra.mxu0 %v74
    %1728 = vmatprep.subr.mxu0 %v79
    %1729 = vmatpush1.msra.mxu0 %v78
    %1730 = vmatprep.subr.mxu0 %v83
    %1731 = vmatpush1.msra.mxu0 %v82
    %1732 = vmatprep.subr.mxu0 0.0
    %1733 = vmatpush1.msra.mxu0 0.0
    %1734 = vmatprep.subr.mxu0 0.0
    %1735 = vmatpush1.msra.mxu0 0.0
    %1736 = vmatprep.subr.mxu0 0.0
    %1737 = vmatpush1.msra.mxu0 0.0
    %1738 = vmatprep.subr.mxu0 0.0
    %1739 = vmatpush1.msra.mxu0 0.0
    %1740 = vmatprep.subr.mxu0 0.0
    %1741 = vmatpush1.msra.mxu0 0.0
    %1742 = vmatprep.subr.mxu0 0.0
    %1743 = vmatpush1.msra.mxu0 0.0
    %1744 = vmatprep.subr.mxu0 0.0
    %1745 = vmatpush1.msra.mxu0 0.0
    %1746 = vmatprep.subr.mxu0 0.0
    %1747 = vmatpush1.msra.mxu0 0.0
    %1748 = vmatprep.subr.mxu0 0.0
    %1749 = vmatpush1.msra.mxu0 0.0
    %1750 = vmatprep.subr.mxu0 0.0
    %1751 = vmatpush1.msra.mxu0 0.0
    %1752 = vmatprep.subr.mxu0 0.0
    %1753 = vmatpush1.msra.mxu0 0.0
    %1754 = vmatprep.subr.mxu0 0.0
    %1755 = vmatpush1.msra.mxu0 0.0
    %1756 = vmatprep.subr.mxu0 0.0
    %1757 = vmatpush1.msra.mxu0 0.0
    %1758 = vmatprep.subr.mxu0 0.0
    %1759 = vmatpush1.msra.mxu0 0.0
    %1760 = vmatprep.subr.mxu0 0.0
    %1761 = vmatpush1.msra.mxu0 0.0
    %1762 = vmatprep.subr.mxu0 0.0
    %1763 = vmatpush1.msra.mxu0 0.0
    %1764 = vmatprep.mubr.f32.mxu0 0.0
    %1765 = vmatmul.mubr.f32.gmra.mrb[0].mxu0 %v1529
    %v1766 = vpop.f32.mrb[0].mxu0
    %v1767 = vadd.f32 0.0, %v1766
    %v1768 = vpop.f32.mrb[0].mxu0
    %v1769 = vadd.f32 0.0, %v1768
    %1770 = vdwg.mxu0
    %1771 = vmatprep.subr.mxu0 %v25
    %1772 = vmatpush1.msra.mxu0 %v24
    %1773 = vmatprep.subr.mxu0 %v29
    %1774 = vmatpush1.msra.mxu0 %v28
    %1775 = vmatprep.subr.mxu0 %v33
    %1776 = vmatpush1.msra.mxu0 %v32
    %1777 = vmatprep.subr.mxu0 %v37
    %1778 = vmatpush1.msra.mxu0 %v36
    %1779 = vmatprep.subr.mxu0 %v41
    %1780 = vmatpush1.msra.mxu0 %v40
    %1781 = vmatprep.subr.mxu0 %v45
    %1782 = vmatpush1.msra.mxu0 %v44
    %1783 = vmatprep.subr.mxu0 %v49
    %1784 = vmatpush1.msra.mxu0 %v48
    %1785 = vmatprep.subr.mxu0 %v53
    %1786 = vmatpush1.msra.mxu0 %v52
    %1787 = vmatprep.subr.mxu0 %v57
    %1788 = vmatpush1.msra.mxu0 %v56
    %1789 = vmatprep.subr.mxu0 %v61
    %1790 = vmatpush1.msra.mxu0 %v60
    %1791 = vmatprep.subr.mxu0 %v65
    %1792 = vmatpush1.msra.mxu0 %v64
    %1793 = vmatprep.subr.mxu0 %v69
    %1794 = vmatpush1.msra.mxu0 %v68
    %1795 = vmatprep.subr.mxu0 %v73
    %1796 = vmatpush1.msra.mxu0 %v72
    %1797 = vmatprep.subr.mxu0 %v77
    %1798 = vmatpush1.msra.mxu0 %v76
    %1799 = vmatprep.subr.mxu0 %v81
    %1800 = vmatpush1.msra.mxu0 %v80
    %1801 = vmatprep.subr.mxu0 %v85
    %1802 = vmatpush1.msra.mxu0 %v84
    %1803 = vmatprep.subr.mxu0 0.0
    %1804 = vmatpush1.msra.mxu0 0.0
    %1805 = vmatprep.subr.mxu0 0.0
    %1806 = vmatpush1.msra.mxu0 0.0
    %1807 = vmatprep.subr.mxu0 0.0
    %1808 = vmatpush1.msra.mxu0 0.0
    %1809 = vmatprep.subr.mxu0 0.0
    %1810 = vmatpush1.msra.mxu0 0.0
    %1811 = vmatprep.subr.mxu0 0.0
    %1812 = vmatpush1.msra.mxu0 0.0
    %1813 = vmatprep.subr.mxu0 0.0
    %1814 = vmatpush1.msra.mxu0 0.0
    %1815 = vmatprep.subr.mxu0 0.0
    %1816 = vmatpush1.msra.mxu0 0.0
    %1817 = vmatprep.subr.mxu0 0.0
    %1818 = vmatpush1.msra.mxu0 0.0
    %1819 = vmatprep.subr.mxu0 0.0
    %1820 = vmatpush1.msra.mxu0 0.0
    %1821 = vmatprep.subr.mxu0 0.0
    %1822 = vmatpush1.msra.mxu0 0.0
    %1823 = vmatprep.subr.mxu0 0.0
    %1824 = vmatpush1.msra.mxu0 0.0
    %1825 = vmatprep.subr.mxu0 0.0
    %1826 = vmatpush1.msra.mxu0 0.0
    %1827 = vmatprep.subr.mxu0 0.0
    %1828 = vmatpush1.msra.mxu0 0.0
    %1829 = vmatprep.subr.mxu0 0.0
    %1830 = vmatpush1.msra.mxu0 0.0
    %1831 = vmatprep.subr.mxu0 0.0
    %1832 = vmatpush1.msra.mxu0 0.0
    %1833 = vmatprep.subr.mxu0 0.0
    %1834 = vmatpush1.msra.mxu0 0.0
    %1835 = vmatprep.mubr.f32.mxu0 0.0
    %1836 = vmatmul.mubr.f32.gmra.mrb[0].mxu0 %v1529
    %v1837 = vpop.f32.mrb[0].mxu0
    %v1838 = vadd.f32 0.0, %v1837
    %v1839 = vpop.f32.mrb[0].mxu0
    %v1840 = vadd.f32 0.0, %v1839
    %1841 = vdwg.mxu0
    %v1846 = vcombine.low %v1767, %v1769
    %v1847 = vcombine.low %v1838, %v1840
    %v1849 = vunpack.c.l.s4 1983009808
    %v1850 = vunpack.c.0.s8 %v1849
    %v1851 = vlaneseq
    %v1852 = vshrl.u32 %v1851, 7
    %v1853 = vsub.s32 %v1850, %v1852
    %v1854 = vrot.slane %v1846, %v1853
    %v1856 = vunpack.c.l.s4 1983009808
    %v1857 = vunpack.c.0.s8 %v1856
    %v1858 = vlaneseq
    %v1859 = vshrl.u32 %v1858, 7
    %v1860 = vsub.s32 %v1857, %v1859
    %v1861 = vrot.slane %v1847, %v1860
    %v1862 = vcombine.low %v1854, %v1861
    %v1864 = vadd.f32 %v1699, %v1862
    %v1865 = vxor.u32 %v1864, 2147483648
    %v1866 = vmul.f32 %v1865, 1.442695
    %v1867 = vpow.pop %v1866
    %v1868 = vadd.f32 %v1867, 1.0
    %v1869 = vrcp.pop %v1868
    %v1870 = vmul.f32 1.0, %v1869
    %v1872 = vrot.slane %v1864, 2
    %v1874 = vxor.u32 %v1872, 2147483648
    %v1875 = vmul.f32 %v1874, 1.442695
    %v1876 = vpow.pop %v1875
    %v1877 = vadd.f32 %v1876, 1.0
    %v1878 = vrcp.pop %v1877
    %v1879 = vmul.f32 1.0, %v1878
    %v1880 = vrot.slane %v1864, 4
    %v1882 = vtanh.pop %v1880
    %v1883 = vrot.slane %v1864, 6
    %v1885 = vxor.u32 %v1883, 2147483648
    %v1886 = vmul.f32 %v1885, 1.442695
    %v1887 = vpow.pop %v1886
    %v1888 = vadd.f32 %v1887, 1.0
    %v1889 = vrcp.pop %v1888
    %v1890 = vmul.f32 1.0, %v1889
    %v1891 = vmul.f32 %v1879, %v1527
    %v1892 = vmul.f32 %v1870, %v1882
    %v1893 = vadd.f32 %v1891, %v1892
    %v1894 = vtanh.pop %v1893
    %v1895 = vmul.f32 %v1890, %v1894
    %1896 = vmatprep.subr.mxu0 %v87
    %1897 = vmatpush1.msra.mxu0 %v86
    %1898 = vmatprep.subr.mxu0 %v91
    %1899 = vmatpush1.msra.mxu0 %v90
    %1900 = vmatprep.subr.mxu0 %v95
    %1901 = vmatpush1.msra.mxu0 %v94
    %1902 = vmatprep.subr.mxu0 %v99
    %1903 = vmatpush1.msra.mxu0 %v98
    %1904 = vmatprep.subr.mxu0 %v103
    %1905 = vmatpush1.msra.mxu0 %v102
    %1906 = vmatprep.subr.mxu0 %v107
    %1907 = vmatpush1.msra.mxu0 %v106
    %1908 = vmatprep.subr.mxu0 %v111
    %1909 = vmatpush1.msra.mxu0 %v110
    %1910 = vmatprep.subr.mxu0 %v115
    %1911 = vmatpush1.msra.mxu0 %v114
    %1912 = vmatprep.subr.mxu0 %v119
    %1913 = vmatpush1.msra.mxu0 %v118
    %1914 = vmatprep.subr.mxu0 %v123
    %1915 = vmatpush1.msra.mxu0 %v122
    %1916 = vmatprep.subr.mxu0 %v127
    %1917 = vmatpush1.msra.mxu0 %v126
    %1918 = vmatprep.subr.mxu0 %v131
    %1919 = vmatpush1.msra.mxu0 %v130
    %1920 = vmatprep.subr.mxu0 %v135
    %1921 = vmatpush1.msra.mxu0 %v134
    %1922 = vmatprep.subr.mxu0 %v139
    %1923 = vmatpush1.msra.mxu0 %v138
    %1924 = vmatprep.subr.mxu0 %v143
    %1925 = vmatpush1.msra.mxu0 %v142
    %1926 = vmatprep.subr.mxu0 %v147
    %1927 = vmatpush1.msra.mxu0 %v146
    %1928 = vmatprep.subr.mxu0 %v151
    %1929 = vmatpush1.msra.mxu0 %v150
    %1930 = vmatprep.subr.mxu0 %v155
    %1931 = vmatpush1.msra.mxu0 %v154
    %1932 = vmatprep.subr.mxu0 %v159
    %1933 = vmatpush1.msra.mxu0 %v158
    %1934 = vmatprep.subr.mxu0 %v163
    %1935 = vmatpush1.msra.mxu0 %v162
    %1936 = vmatprep.subr.mxu0 %v167
    %1937 = vmatpush1.msra.mxu0 %v166
    %1938 = vmatprep.subr.mxu0 %v171
    %1939 = vmatpush1.msra.mxu0 %v170
    %1940 = vmatprep.subr.mxu0 %v175
    %1941 = vmatpush1.msra.mxu0 %v174
    %1942 = vmatprep.subr.mxu0 %v179
    %1943 = vmatpush1.msra.mxu0 %v178
    %1944 = vmatprep.subr.mxu0 %v183
    %1945 = vmatpush1.msra.mxu0 %v182
    %1946 = vmatprep.subr.mxu0 %v187
    %1947 = vmatpush1.msra.mxu0 %v186
    %1948 = vmatprep.subr.mxu0 %v191
    %1949 = vmatpush1.msra.mxu0 %v190
    %1950 = vmatprep.subr.mxu0 %v195
    %1951 = vmatpush1.msra.mxu0 %v194
    %1952 = vmatprep.subr.mxu0 %v199
    %1953 = vmatpush1.msra.mxu0 %v198
    %1954 = vmatprep.subr.mxu0 %v203
    %1955 = vmatpush1.msra.mxu0 %v202
    %1956 = vmatprep.subr.mxu0 %v207
    %1957 = vmatpush1.msra.mxu0 %v206
    %1958 = vmatprep.subr.mxu0 %v211
    %1959 = vmatpush1.msra.mxu0 %v210
    %1960 = vmatprep.mubr.f32.mxu0 %v1695
    %1961 = vmatmul.mubr.f32.gmra.mrb[0].mxu0 %v1895
    %v1962 = vpop.f32.mrb[0].mxu0
    %v1963 = vadd.f32 %v416, %v1962
    %v1964 = vpop.f32.mrb[0].mxu0
    %v1965 = vadd.f32 %v420, %v1964
    %1966 = vdwg.mxu0
    %1967 = vmatprep.subr.mxu0 %v89
    %1968 = vmatpush1.msra.mxu0 %v88
    %1969 = vmatprep.subr.mxu0 %v93
    %1970 = vmatpush1.msra.mxu0 %v92
    %1971 = vmatprep.subr.mxu0 %v97
    %1972 = vmatpush1.msra.mxu0 %v96
    %1973 = vmatprep.subr.mxu0 %v101
    %1974 = vmatpush1.msra.mxu0 %v100
    %1975 = vmatprep.subr.mxu0 %v105
    %1976 = vmatpush1.msra.mxu0 %v104
    %1977 = vmatprep.subr.mxu0 %v109
    %1978 = vmatpush1.msra.mxu0 %v108
    %1979 = vmatprep.subr.mxu0 %v113
    %1980 = vmatpush1.msra.mxu0 %v112
    %1981 = vmatprep.subr.mxu0 %v117
    %1982 = vmatpush1.msra.mxu0 %v116
    %1983 = vmatprep.subr.mxu0 %v121
    %1984 = vmatpush1.msra.mxu0 %v120
    %1985 = vmatprep.subr.mxu0 %v125
    %1986 = vmatpush1.msra.mxu0 %v124
    %1987 = vmatprep.subr.mxu0 %v129
    %1988 = vmatpush1.msra.mxu0 %v128
    %1989 = vmatprep.subr.mxu0 %v133
    %1990 = vmatpush1.msra.mxu0 %v132
    %1991 = vmatprep.subr.mxu0 %v137
    %1992 = vmatpush1.msra.mxu0 %v136
    %1993 = vmatprep.subr.mxu0 %v141
    %1994 = vmatpush1.msra.mxu0 %v140
    %1995 = vmatprep.subr.mxu0 %v145
    %1996 = vmatpush1.msra.mxu0 %v144
    %1997 = vmatprep.subr.mxu0 %v149
    %1998 = vmatpush1.msra.mxu0 %v148
    %1999 = vmatprep.subr.mxu0 %v153
    %2000 = vmatpush1.msra.mxu0 %v152
    %2001 = vmatprep.subr.mxu0 %v157
    %2002 = vmatpush1.msra.mxu0 %v156
    %2003 = vmatprep.subr.mxu0 %v161
    %2004 = vmatpush1.msra.mxu0 %v160
    %2005 = vmatprep.subr.mxu0 %v165
    %2006 = vmatpush1.msra.mxu0 %v164
    %2007 = vmatprep.subr.mxu0 %v169
    %2008 = vmatpush1.msra.mxu0 %v168
    %2009 = vmatprep.subr.mxu0 %v173
    %2010 = vmatpush1.msra.mxu0 %v172
    %2011 = vmatprep.subr.mxu0 %v177
    %2012 = vmatpush1.msra.mxu0 %v176
    %2013 = vmatprep.subr.mxu0 %v181
    %2014 = vmatpush1.msra.mxu0 %v180
    %2015 = vmatprep.subr.mxu0 %v185
    %2016 = vmatpush1.msra.mxu0 %v184
    %2017 = vmatprep.subr.mxu0 %v189
    %2018 = vmatpush1.msra.mxu0 %v188
    %2019 = vmatprep.subr.mxu0 %v193
    %2020 = vmatpush1.msra.mxu0 %v192
    %2021 = vmatprep.subr.mxu0 %v197
    %2022 = vmatpush1.msra.mxu0 %v196
    %2023 = vmatprep.subr.mxu0 %v201
    %2024 = vmatpush1.msra.mxu0 %v200
    %2025 = vmatprep.subr.mxu0 %v205
    %2026 = vmatpush1.msra.mxu0 %v204
    %2027 = vmatprep.subr.mxu0 %v209
    %2028 = vmatpush1.msra.mxu0 %v208
    %2029 = vmatprep.subr.mxu0 %v213
    %2030 = vmatpush1.msra.mxu0 %v212
    %2031 = vmatprep.mubr.f32.mxu0 %v1695
    %2032 = vmatmul.mubr.f32.gmra.mrb[0].mxu0 %v1895
    %v2033 = vpop.f32.mrb[0].mxu0
    %v2034 = vadd.f32 %v424, %v2033
    %v2035 = vpop.f32.mrb[0].mxu0
    %v2036 = vadd.f32 %v428, %v2035
    %2037 = vdwg.mxu0
    %v2038 = vxor.u32 %v1963, 2147483648
    %v2039 = vmul.f32 %v2038, 1.442695
    %v2040 = vpow.pop %v2039
    %v2041 = vadd.f32 %v2040, 1.0
    %v2042 = vrcp.pop %v2041
    %v2043 = vmul.f32 1.0, %v2042
    %v2044 = vxor.u32 %v1965, 2147483648
    %v2045 = vmul.f32 %v2044, 1.442695
    %v2046 = vpow.pop %v2045
    %v2047 = vadd.f32 %v2046, 1.0
    %v2048 = vrcp.pop %v2047
    %v2049 = vmul.f32 1.0, %v2048
    %v2050 = vtanh.pop %v2034
    %v2051 = vxor.u32 %v2036, 2147483648
    %v2052 = vmul.f32 %v2051, 1.442695
    %v2053 = vpow.pop %v2052
    %v2054 = vadd.f32 %v2053, 1.0
    %v2055 = vrcp.pop %v2054
    %v2056 = vmul.f32 1.0, %v2055
    %v2057 = vmul.f32 %v2049, %v1693
    %v2058 = vmul.f32 %v2043, %v2050
    %v2059 = vadd.f32 %v2057, %v2058
    %v2060 = vtanh.pop %v2059
    %v2061 = vmul.f32 %v2056, %v2060
    %s2062 = scalar_lea.vmem %s4, 8
    %2063 = vst [vmem:[%s2062] sm:$0x3] %v2061
    %s2064 = scalar_lea.vmem %s0, 40
    %v2065 = vld [vmem:[%s2064] sm:$0xff]
    %2066 = vmatprep.subr.mxu0 %v23
    %2067 = vmatpush1.msra.mxu0 %v22
    %2068 = vmatprep.subr.mxu0 %v27
    %2069 = vmatpush1.msra.mxu0 %v26
    %2070 = vmatprep.subr.mxu0 %v31
    %2071 = vmatpush1.msra.mxu0 %v30
    %2072 = vmatprep.subr.mxu0 %v35
    %2073 = vmatpush1.msra.mxu0 %v34
    %2074 = vmatprep.subr.mxu0 %v39
    %2075 = vmatpush1.msra.mxu0 %v38
    %2076 = vmatprep.subr.mxu0 %v43
    %2077 = vmatpush1.msra.mxu0 %v42
    %2078 = vmatprep.subr.mxu0 %v47
    %2079 = vmatpush1.msra.mxu0 %v46
    %2080 = vmatprep.subr.mxu0 %v51
    %2081 = vmatpush1.msra.mxu0 %v50
    %2082 = vmatprep.subr.mxu0 %v55
    %2083 = vmatpush1.msra.mxu0 %v54
    %2084 = vmatprep.subr.mxu0 %v59
    %2085 = vmatpush1.msra.mxu0 %v58
    %2086 = vmatprep.subr.mxu0 %v63
    %2087 = vmatpush1.msra.mxu0 %v62
    %2088 = vmatprep.subr.mxu0 %v67
    %2089 = vmatpush1.msra.mxu0 %v66
    %2090 = vmatprep.subr.mxu0 %v71
    %2091 = vmatpush1.msra.mxu0 %v70
    %2092 = vmatprep.subr.mxu0 %v75
    %2093 = vmatpush1.msra.mxu0 %v74
    %2094 = vmatprep.subr.mxu0 %v79
    %2095 = vmatpush1.msra.mxu0 %v78
    %2096 = vmatprep.subr.mxu0 %v83
    %2097 = vmatpush1.msra.mxu0 %v82
    %2098 = vmatprep.subr.mxu0 0.0
    %2099 = vmatpush1.msra.mxu0 0.0
    %2100 = vmatprep.subr.mxu0 0.0
    %2101 = vmatpush1.msra.mxu0 0.0
    %2102 = vmatprep.subr.mxu0 0.0
    %2103 = vmatpush1.msra.mxu0 0.0
    %2104 = vmatprep.subr.mxu0 0.0
    %2105 = vmatpush1.msra.mxu0 0.0
    %2106 = vmatprep.subr.mxu0 0.0
    %2107 = vmatpush1.msra.mxu0 0.0
    %2108 = vmatprep.subr.mxu0 0.0
    %2109 = vmatpush1.msra.mxu0 0.0
    %2110 = vmatprep.subr.mxu0 0.0
    %2111 = vmatpush1.msra.mxu0 0.0
    %2112 = vmatprep.subr.mxu0 0.0
    %2113 = vmatpush1.msra.mxu0 0.0
    %2114 = vmatprep.subr.mxu0 0.0
    %2115 = vmatpush1.msra.mxu0 0.0
    %2116 = vmatprep.subr.mxu0 0.0
    %2117 = vmatpush1.msra.mxu0 0.0
    %2118 = vmatprep.subr.mxu0 0.0
    %2119 = vmatpush1.msra.mxu0 0.0
    %2120 = vmatprep.subr.mxu0 0.0
    %2121 = vmatpush1.msra.mxu0 0.0
    %2122 = vmatprep.subr.mxu0 0.0
    %2123 = vmatpush1.msra.mxu0 0.0
    %2124 = vmatprep.subr.mxu0 0.0
    %2125 = vmatpush1.msra.mxu0 0.0
    %2126 = vmatprep.subr.mxu0 0.0
    %2127 = vmatpush1.msra.mxu0 0.0
    %2128 = vmatprep.subr.mxu0 0.0
    %2129 = vmatpush1.msra.mxu0 0.0
    %2130 = vmatprep.mubr.f32.mxu0 0.0
    %2131 = vmatmul.mubr.f32.gmra.mrb[0].mxu0 %v1895
    %v2132 = vpop.f32.mrb[0].mxu0
    %v2133 = vadd.f32 0.0, %v2132
    %v2134 = vpop.f32.mrb[0].mxu0
    %v2135 = vadd.f32 0.0, %v2134
    %2136 = vdwg.mxu0
    %2137 = vmatprep.subr.mxu0 %v25
    %2138 = vmatpush1.msra.mxu0 %v24
    %2139 = vmatprep.subr.mxu0 %v29
    %2140 = vmatpush1.msra.mxu0 %v28
    %2141 = vmatprep.subr.mxu0 %v33
    %2142 = vmatpush1.msra.mxu0 %v32
    %2143 = vmatprep.subr.mxu0 %v37
    %2144 = vmatpush1.msra.mxu0 %v36
    %2145 = vmatprep.subr.mxu0 %v41
    %2146 = vmatpush1.msra.mxu0 %v40
    %2147 = vmatprep.subr.mxu0 %v45
    %2148 = vmatpush1.msra.mxu0 %v44
    %2149 = vmatprep.subr.mxu0 %v49
    %2150 = vmatpush1.msra.mxu0 %v48
    %2151 = vmatprep.subr.mxu0 %v53
    %2152 = vmatpush1.msra.mxu0 %v52
    %2153 = vmatprep.subr.mxu0 %v57
    %2154 = vmatpush1.msra.mxu0 %v56
    %2155 = vmatprep.subr.mxu0 %v61
    %2156 = vmatpush1.msra.mxu0 %v60
    %2157 = vmatprep.subr.mxu0 %v65
    %2158 = vmatpush1.msra.mxu0 %v64
    %2159 = vmatprep.subr.mxu0 %v69
    %2160 = vmatpush1.msra.mxu0 %v68
    %2161 = vmatprep.subr.mxu0 %v73
    %2162 = vmatpush1.msra.mxu0 %v72
    %2163 = vmatprep.subr.mxu0 %v77
    %2164 = vmatpush1.msra.mxu0 %v76
    %2165 = vmatprep.subr.mxu0 %v81
    %2166 = vmatpush1.msra.mxu0 %v80
    %2167 = vmatprep.subr.mxu0 %v85
    %2168 = vmatpush1.msra.mxu0 %v84
    %2169 = vmatprep.subr.mxu0 0.0
    %2170 = vmatpush1.msra.mxu0 0.0
    %2171 = vmatprep.subr.mxu0 0.0
    %2172 = vmatpush1.msra.mxu0 0.0
    %2173 = vmatprep.subr.mxu0 0.0
    %2174 = vmatpush1.msra.mxu0 0.0
    %2175 = vmatprep.subr.mxu0 0.0
    %2176 = vmatpush1.msra.mxu0 0.0
    %2177 = vmatprep.subr.mxu0 0.0
    %2178 = vmatpush1.msra.mxu0 0.0
    %2179 = vmatprep.subr.mxu0 0.0
    %2180 = vmatpush1.msra.mxu0 0.0
    %2181 = vmatprep.subr.mxu0 0.0
    %2182 = vmatpush1.msra.mxu0 0.0
    %2183 = vmatprep.subr.mxu0 0.0
    %2184 = vmatpush1.msra.mxu0 0.0
    %2185 = vmatprep.subr.mxu0 0.0
    %2186 = vmatpush1.msra.mxu0 0.0
    %2187 = vmatprep.subr.mxu0 0.0
    %2188 = vmatpush1.msra.mxu0 0.0
    %2189 = vmatprep.subr.mxu0 0.0
    %2190 = vmatpush1.msra.mxu0 0.0
    %2191 = vmatprep.subr.mxu0 0.0
    %2192 = vmatpush1.msra.mxu0 0.0
    %2193 = vmatprep.subr.mxu0 0.0
    %2194 = vmatpush1.msra.mxu0 0.0
    %2195 = vmatprep.subr.mxu0 0.0
    %2196 = vmatpush1.msra.mxu0 0.0
    %2197 = vmatprep.subr.mxu0 0.0
    %2198 = vmatpush1.msra.mxu0 0.0
    %2199 = vmatprep.subr.mxu0 0.0
    %2200 = vmatpush1.msra.mxu0 0.0
    %2201 = vmatprep.mubr.f32.mxu0 0.0
    %2202 = vmatmul.mubr.f32.gmra.mrb[0].mxu0 %v1895
    %v2203 = vpop.f32.mrb[0].mxu0
    %v2204 = vadd.f32 0.0, %v2203
    %v2205 = vpop.f32.mrb[0].mxu0
    %v2206 = vadd.f32 0.0, %v2205
    %2207 = vdwg.mxu0
    %v2212 = vcombine.low %v2133, %v2135
    %v2213 = vcombine.low %v2204, %v2206
    %v2215 = vunpack.c.l.s4 1983009808
    %v2216 = vunpack.c.0.s8 %v2215
    %v2217 = vlaneseq
    %v2218 = vshrl.u32 %v2217, 7
    %v2219 = vsub.s32 %v2216, %v2218
    %v2220 = vrot.slane %v2212, %v2219
    %v2222 = vunpack.c.l.s4 1983009808
    %v2223 = vunpack.c.0.s8 %v2222
    %v2224 = vlaneseq
    %v2225 = vshrl.u32 %v2224, 7
    %v2226 = vsub.s32 %v2223, %v2225
    %v2227 = vrot.slane %v2213, %v2226
    %v2228 = vcombine.low %v2220, %v2227
    %v2230 = vadd.f32 %v2065, %v2228
    %v2231 = vxor.u32 %v2230, 2147483648
    %v2232 = vmul.f32 %v2231, 1.442695
    %v2233 = vpow.pop %v2232
    %v2234 = vadd.f32 %v2233, 1.0
    %v2235 = vrcp.pop %v2234
    %v2236 = vmul.f32 1.0, %v2235
    %v2238 = vrot.slane %v2230, 2
    %v2240 = vxor.u32 %v2238, 2147483648
    %v2241 = vmul.f32 %v2240, 1.442695
    %v2242 = vpow.pop %v2241
    %v2243 = vadd.f32 %v2242, 1.0
    %v2244 = vrcp.pop %v2243
    %v2245 = vmul.f32 1.0, %v2244
    %v2246 = vrot.slane %v2230, 4
    %v2248 = vtanh.pop %v2246
    %v2249 = vrot.slane %v2230, 6
    %v2251 = vxor.u32 %v2249, 2147483648
    %v2252 = vmul.f32 %v2251, 1.442695
    %v2253 = vpow.pop %v2252
    %v2254 = vadd.f32 %v2253, 1.0
    %v2255 = vrcp.pop %v2254
    %v2256 = vmul.f32 1.0, %v2255
    %v2257 = vmul.f32 %v2245, %v1893
    %v2258 = vmul.f32 %v2236, %v2248
    %v2259 = vadd.f32 %v2257, %v2258
    %v2260 = vtanh.pop %v2259
    %v2261 = vmul.f32 %v2256, %v2260
    %2262 = vmatprep.subr.mxu0 %v87
    %2263 = vmatpush1.msra.mxu0 %v86
    %2264 = vmatprep.subr.mxu0 %v91
    %2265 = vmatpush1.msra.mxu0 %v90
    %2266 = vmatprep.subr.mxu0 %v95
    %2267 = vmatpush1.msra.mxu0 %v94
    %2268 = vmatprep.subr.mxu0 %v99
    %2269 = vmatpush1.msra.mxu0 %v98
    %2270 = vmatprep.subr.mxu0 %v103
    %2271 = vmatpush1.msra.mxu0 %v102
    %2272 = vmatprep.subr.mxu0 %v107
    %2273 = vmatpush1.msra.mxu0 %v106
    %2274 = vmatprep.subr.mxu0 %v111
    %2275 = vmatpush1.msra.mxu0 %v110
    %2276 = vmatprep.subr.mxu0 %v115
    %2277 = vmatpush1.msra.mxu0 %v114
    %2278 = vmatprep.subr.mxu0 %v119
    %2279 = vmatpush1.msra.mxu0 %v118
    %2280 = vmatprep.subr.mxu0 %v123
    %2281 = vmatpush1.msra.mxu0 %v122
    %2282 = vmatprep.subr.mxu0 %v127
    %2283 = vmatpush1.msra.mxu0 %v126
    %2284 = vmatprep.subr.mxu0 %v131
    %2285 = vmatpush1.msra.mxu0 %v130
    %2286 = vmatprep.subr.mxu0 %v135
    %2287 = vmatpush1.msra.mxu0 %v134
    %2288 = vmatprep.subr.mxu0 %v139
    %2289 = vmatpush1.msra.mxu0 %v138
    %2290 = vmatprep.subr.mxu0 %v143
    %2291 = vmatpush1.msra.mxu0 %v142
    %2292 = vmatprep.subr.mxu0 %v147
    %2293 = vmatpush1.msra.mxu0 %v146
    %2294 = vmatprep.subr.mxu0 %v151
    %2295 = vmatpush1.msra.mxu0 %v150
    %2296 = vmatprep.subr.mxu0 %v155
    %2297 = vmatpush1.msra.mxu0 %v154
    %2298 = vmatprep.subr.mxu0 %v159
    %2299 = vmatpush1.msra.mxu0 %v158
    %2300 = vmatprep.subr.mxu0 %v163
    %2301 = vmatpush1.msra.mxu0 %v162
    %2302 = vmatprep.subr.mxu0 %v167
    %2303 = vmatpush1.msra.mxu0 %v166
    %2304 = vmatprep.subr.mxu0 %v171
    %2305 = vmatpush1.msra.mxu0 %v170
    %2306 = vmatprep.subr.mxu0 %v175
    %2307 = vmatpush1.msra.mxu0 %v174
    %2308 = vmatprep.subr.mxu0 %v179
    %2309 = vmatpush1.msra.mxu0 %v178
    %2310 = vmatprep.subr.mxu0 %v183
    %2311 = vmatpush1.msra.mxu0 %v182
    %2312 = vmatprep.subr.mxu0 %v187
    %2313 = vmatpush1.msra.mxu0 %v186
    %2314 = vmatprep.subr.mxu0 %v191
    %2315 = vmatpush1.msra.mxu0 %v190
    %2316 = vmatprep.subr.mxu0 %v195
    %2317 = vmatpush1.msra.mxu0 %v194
    %2318 = vmatprep.subr.mxu0 %v199
    %2319 = vmatpush1.msra.mxu0 %v198
    %2320 = vmatprep.subr.mxu0 %v203
    %2321 = vmatpush1.msra.mxu0 %v202
    %2322 = vmatprep.subr.mxu0 %v207
    %2323 = vmatpush1.msra.mxu0 %v206
    %2324 = vmatprep.subr.mxu0 %v211
    %2325 = vmatpush1.msra.mxu0 %v210
    %2326 = vmatprep.mubr.f32.mxu0 %v2061
    %2327 = vmatmul.mubr.f32.gmra.mrb[0].mxu0 %v2261
    %v2328 = vpop.f32.mrb[0].mxu0
    %v2329 = vadd.f32 %v416, %v2328
    %v2330 = vpop.f32.mrb[0].mxu0
    %v2331 = vadd.f32 %v420, %v2330
    %2332 = vdwg.mxu0
    %2333 = vmatprep.subr.mxu0 %v89
    %2334 = vmatpush1.msra.mxu0 %v88
    %2335 = vmatprep.subr.mxu0 %v93
    %2336 = vmatpush1.msra.mxu0 %v92
    %2337 = vmatprep.subr.mxu0 %v97
    %2338 = vmatpush1.msra.mxu0 %v96
    %2339 = vmatprep.subr.mxu0 %v101
    %2340 = vmatpush1.msra.mxu0 %v100
    %2341 = vmatprep.subr.mxu0 %v105
    %2342 = vmatpush1.msra.mxu0 %v104
    %2343 = vmatprep.subr.mxu0 %v109
    %2344 = vmatpush1.msra.mxu0 %v108
    %2345 = vmatprep.subr.mxu0 %v113
    %2346 = vmatpush1.msra.mxu0 %v112
    %2347 = vmatprep.subr.mxu0 %v117
    %2348 = vmatpush1.msra.mxu0 %v116
    %2349 = vmatprep.subr.mxu0 %v121
    %2350 = vmatpush1.msra.mxu0 %v120
    %2351 = vmatprep.subr.mxu0 %v125
    %2352 = vmatpush1.msra.mxu0 %v124
    %2353 = vmatprep.subr.mxu0 %v129
    %2354 = vmatpush1.msra.mxu0 %v128
    %2355 = vmatprep.subr.mxu0 %v133
    %2356 = vmatpush1.msra.mxu0 %v132
    %2357 = vmatprep.subr.mxu0 %v137
    %2358 = vmatpush1.msra.mxu0 %v136
    %2359 = vmatprep.subr.mxu0 %v141
    %2360 = vmatpush1.msra.mxu0 %v140
    %2361 = vmatprep.subr.mxu0 %v145
    %2362 = vmatpush1.msra.mxu0 %v144
    %2363 = vmatprep.subr.mxu0 %v149
    %2364 = vmatpush1.msra.mxu0 %v148
    %2365 = vmatprep.subr.mxu0 %v153
    %2366 = vmatpush1.msra.mxu0 %v152
    %2367 = vmatprep.subr.mxu0 %v157
    %2368 = vmatpush1.msra.mxu0 %v156
    %2369 = vmatprep.subr.mxu0 %v161
    %2370 = vmatpush1.msra.mxu0 %v160
    %2371 = vmatprep.subr.mxu0 %v165
    %2372 = vmatpush1.msra.mxu0 %v164
    %2373 = vmatprep.subr.mxu0 %v169
    %2374 = vmatpush1.msra.mxu0 %v168
    %2375 = vmatprep.subr.mxu0 %v173
    %2376 = vmatpush1.msra.mxu0 %v172
    %2377 = vmatprep.subr.mxu0 %v177
    %2378 = vmatpush1.msra.mxu0 %v176
    %2379 = vmatprep.subr.mxu0 %v181
    %2380 = vmatpush1.msra.mxu0 %v180
    %2381 = vmatprep.subr.mxu0 %v185
    %2382 = vmatpush1.msra.mxu0 %v184
    %2383 = vmatprep.subr.mxu0 %v189
    %2384 = vmatpush1.msra.mxu0 %v188
    %2385 = vmatprep.subr.mxu0 %v193
    %2386 = vmatpush1.msra.mxu0 %v192
    %2387 = vmatprep.subr.mxu0 %v197
    %2388 = vmatpush1.msra.mxu0 %v196
    %2389 = vmatprep.subr.mxu0 %v201
    %2390 = vmatpush1.msra.mxu0 %v200
    %2391 = vmatprep.subr.mxu0 %v205
    %2392 = vmatpush1.msra.mxu0 %v204
    %2393 = vmatprep.subr.mxu0 %v209
    %2394 = vmatpush1.msra.mxu0 %v208
    %2395 = vmatprep.subr.mxu0 %v213
    %2396 = vmatpush1.msra.mxu0 %v212
    %2397 = vmatprep.mubr.f32.mxu0 %v2061
    %2398 = vmatmul.mubr.f32.gmra.mrb[0].mxu0 %v2261
    %v2399 = vpop.f32.mrb[0].mxu0
    %v2400 = vadd.f32 %v424, %v2399
    %v2401 = vpop.f32.mrb[0].mxu0
    %v2402 = vadd.f32 %v428, %v2401
    %2403 = vdwg.mxu0
    %v2404 = vxor.u32 %v2329, 2147483648
    %v2405 = vmul.f32 %v2404, 1.442695
    %v2406 = vpow.pop %v2405
    %v2407 = vadd.f32 %v2406, 1.0
    %v2408 = vrcp.pop %v2407
    %v2409 = vmul.f32 1.0, %v2408
    %v2410 = vxor.u32 %v2331, 2147483648
    %v2411 = vmul.f32 %v2410, 1.442695
    %v2412 = vpow.pop %v2411
    %v2413 = vadd.f32 %v2412, 1.0
    %v2414 = vrcp.pop %v2413
    %v2415 = vmul.f32 1.0, %v2414
    %v2416 = vtanh.pop %v2400
    %v2417 = vxor.u32 %v2402, 2147483648
    %v2418 = vmul.f32 %v2417, 1.442695
    %v2419 = vpow.pop %v2418
    %v2420 = vadd.f32 %v2419, 1.0
    %v2421 = vrcp.pop %v2420
    %v2422 = vmul.f32 1.0, %v2421
    %v2423 = vmul.f32 %v2415, %v2059
    %v2424 = vmul.f32 %v2409, %v2416
    %v2425 = vadd.f32 %v2423, %v2424
    %v2426 = vtanh.pop %v2425
    %v2427 = vmul.f32 %v2422, %v2426
    %s2428 = scalar_lea.vmem %s4, 10
    %2429 = vst [vmem:[%s2428] sm:$0x3] %v2427
    %s2430 = scalar_lea.vmem %s0, 48
    %v2431 = vld [vmem:[%s2430] sm:$0xff]
    %2432 = vmatprep.subr.mxu0 %v23
    %2433 = vmatpush1.msra.mxu0 %v22
    %2434 = vmatprep.subr.mxu0 %v27
    %2435 = vmatpush1.msra.mxu0 %v26
    %2436 = vmatprep.subr.mxu0 %v31
    %2437 = vmatpush1.msra.mxu0 %v30
    %2438 = vmatprep.subr.mxu0 %v35
    %2439 = vmatpush1.msra.mxu0 %v34
    %2440 = vmatprep.subr.mxu0 %v39
    %2441 = vmatpush1.msra.mxu0 %v38
    %2442 = vmatprep.subr.mxu0 %v43
    %2443 = vmatpush1.msra.mxu0 %v42
    %2444 = vmatprep.subr.mxu0 %v47
    %2445 = vmatpush1.msra.mxu0 %v46
    %2446 = vmatprep.subr.mxu0 %v51
    %2447 = vmatpush1.msra.mxu0 %v50
    %2448 = vmatprep.subr.mxu0 %v55
    %2449 = vmatpush1.msra.mxu0 %v54
    %2450 = vmatprep.subr.mxu0 %v59
    %2451 = vmatpush1.msra.mxu0 %v58
    %2452 = vmatprep.subr.mxu0 %v63
    %2453 = vmatpush1.msra.mxu0 %v62
    %2454 = vmatprep.subr.mxu0 %v67
    %2455 = vmatpush1.msra.mxu0 %v66
    %2456 = vmatprep.subr.mxu0 %v71
    %2457 = vmatpush1.msra.mxu0 %v70
    %2458 = vmatprep.subr.mxu0 %v75
    %2459 = vmatpush1.msra.mxu0 %v74
    %2460 = vmatprep.subr.mxu0 %v79
    %2461 = vmatpush1.msra.mxu0 %v78
    %2462 = vmatprep.subr.mxu0 %v83
    %2463 = vmatpush1.msra.mxu0 %v82
    %2464 = vmatprep.subr.mxu0 0.0
    %2465 = vmatpush1.msra.mxu0 0.0
    %2466 = vmatprep.subr.mxu0 0.0
    %2467 = vmatpush1.msra.mxu0 0.0
    %2468 = vmatprep.subr.mxu0 0.0
    %2469 = vmatpush1.msra.mxu0 0.0
    %2470 = vmatprep.subr.mxu0 0.0
    %2471 = vmatpush1.msra.mxu0 0.0
    %2472 = vmatprep.subr.mxu0 0.0
    %2473 = vmatpush1.msra.mxu0 0.0
    %2474 = vmatprep.subr.mxu0 0.0
    %2475 = vmatpush1.msra.mxu0 0.0
    %2476 = vmatprep.subr.mxu0 0.0
    %2477 = vmatpush1.msra.mxu0 0.0
    %2478 = vmatprep.subr.mxu0 0.0
    %2479 = vmatpush1.msra.mxu0 0.0
    %2480 = vmatprep.subr.mxu0 0.0
    %2481 = vmatpush1.msra.mxu0 0.0
    %2482 = vmatprep.subr.mxu0 0.0
    %2483 = vmatpush1.msra.mxu0 0.0
    %2484 = vmatprep.subr.mxu0 0.0
    %2485 = vmatpush1.msra.mxu0 0.0
    %2486 = vmatprep.subr.mxu0 0.0
    %2487 = vmatpush1.msra.mxu0 0.0
    %2488 = vmatprep.subr.mxu0 0.0
    %2489 = vmatpush1.msra.mxu0 0.0
    %2490 = vmatprep.subr.mxu0 0.0
    %2491 = vmatpush1.msra.mxu0 0.0
    %2492 = vmatprep.subr.mxu0 0.0
    %2493 = vmatpush1.msra.mxu0 0.0
    %2494 = vmatprep.subr.mxu0 0.0
    %2495 = vmatpush1.msra.mxu0 0.0
    %2496 = vmatprep.mubr.f32.mxu0 0.0
    %2497 = vmatmul.mubr.f32.gmra.mrb[0].mxu0 %v2261
    %v2498 = vpop.f32.mrb[0].mxu0
    %v2499 = vadd.f32 0.0, %v2498
    %v2500 = vpop.f32.mrb[0].mxu0
    %v2501 = vadd.f32 0.0, %v2500
    %2502 = vdwg.mxu0
    %2503 = vmatprep.subr.mxu0 %v25
    %2504 = vmatpush1.msra.mxu0 %v24
    %2505 = vmatprep.subr.mxu0 %v29
    %2506 = vmatpush1.msra.mxu0 %v28
    %2507 = vmatprep.subr.mxu0 %v33
    %2508 = vmatpush1.msra.mxu0 %v32
    %2509 = vmatprep.subr.mxu0 %v37
    %2510 = vmatpush1.msra.mxu0 %v36
    %2511 = vmatprep.subr.mxu0 %v41
    %2512 = vmatpush1.msra.mxu0 %v40
    %2513 = vmatprep.subr.mxu0 %v45
    %2514 = vmatpush1.msra.mxu0 %v44
    %2515 = vmatprep.subr.mxu0 %v49
    %2516 = vmatpush1.msra.mxu0 %v48
    %2517 = vmatprep.subr.mxu0 %v53
    %2518 = vmatpush1.msra.mxu0 %v52
    %2519 = vmatprep.subr.mxu0 %v57
    %2520 = vmatpush1.msra.mxu0 %v56
    %2521 = vmatprep.subr.mxu0 %v61
    %2522 = vmatpush1.msra.mxu0 %v60
    %2523 = vmatprep.subr.mxu0 %v65
    %2524 = vmatpush1.msra.mxu0 %v64
    %2525 = vmatprep.subr.mxu0 %v69
    %2526 = vmatpush1.msra.mxu0 %v68
    %2527 = vmatprep.subr.mxu0 %v73
    %2528 = vmatpush1.msra.mxu0 %v72
    %2529 = vmatprep.subr.mxu0 %v77
    %2530 = vmatpush1.msra.mxu0 %v76
    %2531 = vmatprep.subr.mxu0 %v81
    %2532 = vmatpush1.msra.mxu0 %v80
    %2533 = vmatprep.subr.mxu0 %v85
    %2534 = vmatpush1.msra.mxu0 %v84
    %2535 = vmatprep.subr.mxu0 0.0
    %2536 = vmatpush1.msra.mxu0 0.0
    %2537 = vmatprep.subr.mxu0 0.0
    %2538 = vmatpush1.msra.mxu0 0.0
    %2539 = vmatprep.subr.mxu0 0.0
    %2540 = vmatpush1.msra.mxu0 0.0
    %2541 = vmatprep.subr.mxu0 0.0
    %2542 = vmatpush1.msra.mxu0 0.0
    %2543 = vmatprep.subr.mxu0 0.0
    %2544 = vmatpush1.msra.mxu0 0.0
    %2545 = vmatprep.subr.mxu0 0.0
    %2546 = vmatpush1.msra.mxu0 0.0
    %2547 = vmatprep.subr.mxu0 0.0
    %2548 = vmatpush1.msra.mxu0 0.0
    %2549 = vmatprep.subr.mxu0 0.0
    %2550 = vmatpush1.msra.mxu0 0.0
    %2551 = vmatprep.subr.mxu0 0.0
    %2552 = vmatpush1.msra.mxu0 0.0
    %2553 = vmatprep.subr.mxu0 0.0
    %2554 = vmatpush1.msra.mxu0 0.0
    %2555 = vmatprep.subr.mxu0 0.0
    %2556 = vmatpush1.msra.mxu0 0.0
    %2557 = vmatprep.subr.mxu0 0.0
    %2558 = vmatpush1.msra.mxu0 0.0
    %2559 = vmatprep.subr.mxu0 0.0
    %2560 = vmatpush1.msra.mxu0 0.0
    %2561 = vmatprep.subr.mxu0 0.0
    %2562 = vmatpush1.msra.mxu0 0.0
    %2563 = vmatprep.subr.mxu0 0.0
    %2564 = vmatpush1.msra.mxu0 0.0
    %2565 = vmatprep.subr.mxu0 0.0
    %2566 = vmatpush1.msra.mxu0 0.0
    %2567 = vmatprep.mubr.f32.mxu0 0.0
    %2568 = vmatmul.mubr.f32.gmra.mrb[0].mxu0 %v2261
    %v2569 = vpop.f32.mrb[0].mxu0
    %v2570 = vadd.f32 0.0, %v2569
    %v2571 = vpop.f32.mrb[0].mxu0
    %v2572 = vadd.f32 0.0, %v2571
    %2573 = vdwg.mxu0
    %v2578 = vcombine.low %v2499, %v2501
    %v2579 = vcombine.low %v2570, %v2572
    %v2581 = vunpack.c.l.s4 1983009808
    %v2582 = vunpack.c.0.s8 %v2581
    %v2583 = vlaneseq
    %v2584 = vshrl.u32 %v2583, 7
    %v2585 = vsub.s32 %v2582, %v2584
    %v2586 = vrot.slane %v2578, %v2585
    %v2588 = vunpack.c.l.s4 1983009808
    %v2589 = vunpack.c.0.s8 %v2588
    %v2590 = vlaneseq
    %v2591 = vshrl.u32 %v2590, 7
    %v2592 = vsub.s32 %v2589, %v2591
    %v2593 = vrot.slane %v2579, %v2592
    %v2594 = vcombine.low %v2586, %v2593
    %v2596 = vadd.f32 %v2431, %v2594
    %v2597 = vxor.u32 %v2596, 2147483648
    %v2598 = vmul.f32 %v2597, 1.442695
    %v2599 = vpow.pop %v2598
    %v2600 = vadd.f32 %v2599, 1.0
    %v2601 = vrcp.pop %v2600
    %v2602 = vmul.f32 1.0, %v2601
    %v2604 = vrot.slane %v2596, 2
    %v2606 = vxor.u32 %v2604, 2147483648
    %v2607 = vmul.f32 %v2606, 1.442695
    %v2608 = vpow.pop %v2607
    %v2609 = vadd.f32 %v2608, 1.0
    %v2610 = vrcp.pop %v2609
    %v2611 = vmul.f32 1.0, %v2610
    %v2612 = vrot.slane %v2596, 4
    %v2614 = vtanh.pop %v2612
    %v2615 = vrot.slane %v2596, 6
    %v2617 = vxor.u32 %v2615, 2147483648
    %v2618 = vmul.f32 %v2617, 1.442695
    %v2619 = vpow.pop %v2618
    %v2620 = vadd.f32 %v2619, 1.0
    %v2621 = vrcp.pop %v2620
    %v2622 = vmul.f32 1.0, %v2621
    %v2623 = vmul.f32 %v2611, %v2259
    %v2624 = vmul.f32 %v2602, %v2614
    %v2625 = vadd.f32 %v2623, %v2624
    %v2626 = vtanh.pop %v2625
    %v2627 = vmul.f32 %v2622, %v2626
    %2628 = vmatprep.subr.mxu0 %v87
    %2629 = vmatpush1.msra.mxu0 %v86
    %2630 = vmatprep.subr.mxu0 %v91
    %2631 = vmatpush1.msra.mxu0 %v90
    %2632 = vmatprep.subr.mxu0 %v95
    %2633 = vmatpush1.msra.mxu0 %v94
    %2634 = vmatprep.subr.mxu0 %v99
    %2635 = vmatpush1.msra.mxu0 %v98
    %2636 = vmatprep.subr.mxu0 %v103
    %2637 = vmatpush1.msra.mxu0 %v102
    %2638 = vmatprep.subr.mxu0 %v107
    %2639 = vmatpush1.msra.mxu0 %v106
    %2640 = vmatprep.subr.mxu0 %v111
    %2641 = vmatpush1.msra.mxu0 %v110
    %2642 = vmatprep.subr.mxu0 %v115
    %2643 = vmatpush1.msra.mxu0 %v114
    %2644 = vmatprep.subr.mxu0 %v119
    %2645 = vmatpush1.msra.mxu0 %v118
    %2646 = vmatprep.subr.mxu0 %v123
    %2647 = vmatpush1.msra.mxu0 %v122
    %2648 = vmatprep.subr.mxu0 %v127
    %2649 = vmatpush1.msra.mxu0 %v126
    %2650 = vmatprep.subr.mxu0 %v131
    %2651 = vmatpush1.msra.mxu0 %v130
    %2652 = vmatprep.subr.mxu0 %v135
    %2653 = vmatpush1.msra.mxu0 %v134
    %2654 = vmatprep.subr.mxu0 %v139
    %2655 = vmatpush1.msra.mxu0 %v138
    %2656 = vmatprep.subr.mxu0 %v143
    %2657 = vmatpush1.msra.mxu0 %v142
    %2658 = vmatprep.subr.mxu0 %v147
    %2659 = vmatpush1.msra.mxu0 %v146
    %2660 = vmatprep.subr.mxu0 %v151
    %2661 = vmatpush1.msra.mxu0 %v150
    %2662 = vmatprep.subr.mxu0 %v155
    %2663 = vmatpush1.msra.mxu0 %v154
    %2664 = vmatprep.subr.mxu0 %v159
    %2665 = vmatpush1.msra.mxu0 %v158
    %2666 = vmatprep.subr.mxu0 %v163
    %2667 = vmatpush1.msra.mxu0 %v162
    %2668 = vmatprep.subr.mxu0 %v167
    %2669 = vmatpush1.msra.mxu0 %v166
    %2670 = vmatprep.subr.mxu0 %v171
    %2671 = vmatpush1.msra.mxu0 %v170
    %2672 = vmatprep.subr.mxu0 %v175
    %2673 = vmatpush1.msra.mxu0 %v174
    %2674 = vmatprep.subr.mxu0 %v179
    %2675 = vmatpush1.msra.mxu0 %v178
    %2676 = vmatprep.subr.mxu0 %v183
    %2677 = vmatpush1.msra.mxu0 %v182
    %2678 = vmatprep.subr.mxu0 %v187
    %2679 = vmatpush1.msra.mxu0 %v186
    %2680 = vmatprep.subr.mxu0 %v191
    %2681 = vmatpush1.msra.mxu0 %v190
    %2682 = vmatprep.subr.mxu0 %v195
    %2683 = vmatpush1.msra.mxu0 %v194
    %2684 = vmatprep.subr.mxu0 %v199
    %2685 = vmatpush1.msra.mxu0 %v198
    %2686 = vmatprep.subr.mxu0 %v203
    %2687 = vmatpush1.msra.mxu0 %v202
    %2688 = vmatprep.subr.mxu0 %v207
    %2689 = vmatpush1.msra.mxu0 %v206
    %2690 = vmatprep.subr.mxu0 %v211
    %2691 = vmatpush1.msra.mxu0 %v210
    %2692 = vmatprep.mubr.f32.mxu0 %v2427
    %2693 = vmatmul.mubr.f32.gmra.mrb[0].mxu0 %v2627
    %v2694 = vpop.f32.mrb[0].mxu0
    %v2695 = vadd.f32 %v416, %v2694
    %v2696 = vpop.f32.mrb[0].mxu0
    %v2697 = vadd.f32 %v420, %v2696
    %2698 = vdwg.mxu0
    %2699 = vmatprep.subr.mxu0 %v89
    %2700 = vmatpush1.msra.mxu0 %v88
    %2701 = vmatprep.subr.mxu0 %v93
    %2702 = vmatpush1.msra.mxu0 %v92
    %2703 = vmatprep.subr.mxu0 %v97
    %2704 = vmatpush1.msra.mxu0 %v96
    %2705 = vmatprep.subr.mxu0 %v101
    %2706 = vmatpush1.msra.mxu0 %v100
    %2707 = vmatprep.subr.mxu0 %v105
    %2708 = vmatpush1.msra.mxu0 %v104
    %2709 = vmatprep.subr.mxu0 %v109
    %2710 = vmatpush1.msra.mxu0 %v108
    %2711 = vmatprep.subr.mxu0 %v113
    %2712 = vmatpush1.msra.mxu0 %v112
    %2713 = vmatprep.subr.mxu0 %v117
    %2714 = vmatpush1.msra.mxu0 %v116
    %2715 = vmatprep.subr.mxu0 %v121
    %2716 = vmatpush1.msra.mxu0 %v120
    %2717 = vmatprep.subr.mxu0 %v125
    %2718 = vmatpush1.msra.mxu0 %v124
    %2719 = vmatprep.subr.mxu0 %v129
    %2720 = vmatpush1.msra.mxu0 %v128
    %2721 = vmatprep.subr.mxu0 %v133
    %2722 = vmatpush1.msra.mxu0 %v132
    %2723 = vmatprep.subr.mxu0 %v137
    %2724 = vmatpush1.msra.mxu0 %v136
    %2725 = vmatprep.subr.mxu0 %v141
    %2726 = vmatpush1.msra.mxu0 %v140
    %2727 = vmatprep.subr.mxu0 %v145
    %2728 = vmatpush1.msra.mxu0 %v144
    %2729 = vmatprep.subr.mxu0 %v149
    %2730 = vmatpush1.msra.mxu0 %v148
    %2731 = vmatprep.subr.mxu0 %v153
    %2732 = vmatpush1.msra.mxu0 %v152
    %2733 = vmatprep.subr.mxu0 %v157
    %2734 = vmatpush1.msra.mxu0 %v156
    %2735 = vmatprep.subr.mxu0 %v161
    %2736 = vmatpush1.msra.mxu0 %v160
    %2737 = vmatprep.subr.mxu0 %v165
    %2738 = vmatpush1.msra.mxu0 %v164
    %2739 = vmatprep.subr.mxu0 %v169
    %2740 = vmatpush1.msra.mxu0 %v168
    %2741 = vmatprep.subr.mxu0 %v173
    %2742 = vmatpush1.msra.mxu0 %v172
    %2743 = vmatprep.subr.mxu0 %v177
    %2744 = vmatpush1.msra.mxu0 %v176
    %2745 = vmatprep.subr.mxu0 %v181
    %2746 = vmatpush1.msra.mxu0 %v180
    %2747 = vmatprep.subr.mxu0 %v185
    %2748 = vmatpush1.msra.mxu0 %v184
    %2749 = vmatprep.subr.mxu0 %v189
    %2750 = vmatpush1.msra.mxu0 %v188
    %2751 = vmatprep.subr.mxu0 %v193
    %2752 = vmatpush1.msra.mxu0 %v192
    %2753 = vmatprep.subr.mxu0 %v197
    %2754 = vmatpush1.msra.mxu0 %v196
    %2755 = vmatprep.subr.mxu0 %v201
    %2756 = vmatpush1.msra.mxu0 %v200
    %2757 = vmatprep.subr.mxu0 %v205
    %2758 = vmatpush1.msra.mxu0 %v204
    %2759 = vmatprep.subr.mxu0 %v209
    %2760 = vmatpush1.msra.mxu0 %v208
    %2761 = vmatprep.subr.mxu0 %v213
    %2762 = vmatpush1.msra.mxu0 %v212
    %2763 = vmatprep.mubr.f32.mxu0 %v2427
    %2764 = vmatmul.mubr.f32.gmra.mrb[0].mxu0 %v2627
    %v2765 = vpop.f32.mrb[0].mxu0
    %v2766 = vadd.f32 %v424, %v2765
    %v2767 = vpop.f32.mrb[0].mxu0
    %v2768 = vadd.f32 %v428, %v2767
    %2769 = vdwg.mxu0
    %v2770 = vxor.u32 %v2695, 2147483648
    %v2771 = vmul.f32 %v2770, 1.442695
    %v2772 = vpow.pop %v2771
    %v2773 = vadd.f32 %v2772, 1.0
    %v2774 = vrcp.pop %v2773
    %v2775 = vmul.f32 1.0, %v2774
    %v2776 = vxor.u32 %v2697, 2147483648
    %v2777 = vmul.f32 %v2776, 1.442695
    %v2778 = vpow.pop %v2777
    %v2779 = vadd.f32 %v2778, 1.0
    %v2780 = vrcp.pop %v2779
    %v2781 = vmul.f32 1.0, %v2780
    %v2782 = vtanh.pop %v2766
    %v2783 = vxor.u32 %v2768, 2147483648
    %v2784 = vmul.f32 %v2783, 1.442695
    %v2785 = vpow.pop %v2784
    %v2786 = vadd.f32 %v2785, 1.0
    %v2787 = vrcp.pop %v2786
    %v2788 = vmul.f32 1.0, %v2787
    %v2789 = vmul.f32 %v2781, %v2425
    %v2790 = vmul.f32 %v2775, %v2782
    %v2791 = vadd.f32 %v2789, %v2790
    %v2792 = vtanh.pop %v2791
    %v2793 = vmul.f32 %v2788, %v2792
    %s2794 = scalar_lea.vmem %s4, 12
    %2795 = vst [vmem:[%s2794] sm:$0x3] %v2793
    %s2796 = scalar_lea.vmem %s0, 56
    %v2797 = vld [vmem:[%s2796] sm:$0xff]
    %2798 = vmatprep.subr.mxu0 %v23
    %2799 = vmatpush1.msra.mxu0 %v22
    %2800 = vmatprep.subr.mxu0 %v27
    %2801 = vmatpush1.msra.mxu0 %v26
    %2802 = vmatprep.subr.mxu0 %v31
    %2803 = vmatpush1.msra.mxu0 %v30
    %2804 = vmatprep.subr.mxu0 %v35
    %2805 = vmatpush1.msra.mxu0 %v34
    %2806 = vmatprep.subr.mxu0 %v39
    %2807 = vmatpush1.msra.mxu0 %v38
    %2808 = vmatprep.subr.mxu0 %v43
    %2809 = vmatpush1.msra.mxu0 %v42
    %2810 = vmatprep.subr.mxu0 %v47
    %2811 = vmatpush1.msra.mxu0 %v46
    %2812 = vmatprep.subr.mxu0 %v51
    %2813 = vmatpush1.msra.mxu0 %v50
    %2814 = vmatprep.subr.mxu0 %v55
    %2815 = vmatpush1.msra.mxu0 %v54
    %2816 = vmatprep.subr.mxu0 %v59
    %2817 = vmatpush1.msra.mxu0 %v58
    %2818 = vmatprep.subr.mxu0 %v63
    %2819 = vmatpush1.msra.mxu0 %v62
    %2820 = vmatprep.subr.mxu0 %v67
    %2821 = vmatpush1.msra.mxu0 %v66
    %2822 = vmatprep.subr.mxu0 %v71
    %2823 = vmatpush1.msra.mxu0 %v70
    %2824 = vmatprep.subr.mxu0 %v75
    %2825 = vmatpush1.msra.mxu0 %v74
    %2826 = vmatprep.subr.mxu0 %v79
    %2827 = vmatpush1.msra.mxu0 %v78
    %2828 = vmatprep.subr.mxu0 %v83
    %2829 = vmatpush1.msra.mxu0 %v82
    %2830 = vmatprep.subr.mxu0 0.0
    %2831 = vmatpush1.msra.mxu0 0.0
    %2832 = vmatprep.subr.mxu0 0.0
    %2833 = vmatpush1.msra.mxu0 0.0
    %2834 = vmatprep.subr.mxu0 0.0
    %2835 = vmatpush1.msra.mxu0 0.0
    %2836 = vmatprep.subr.mxu0 0.0
    %2837 = vmatpush1.msra.mxu0 0.0
    %2838 = vmatprep.subr.mxu0 0.0
    %2839 = vmatpush1.msra.mxu0 0.0
    %2840 = vmatprep.subr.mxu0 0.0
    %2841 = vmatpush1.msra.mxu0 0.0
    %2842 = vmatprep.subr.mxu0 0.0
    %2843 = vmatpush1.msra.mxu0 0.0
    %2844 = vmatprep.subr.mxu0 0.0
    %2845 = vmatpush1.msra.mxu0 0.0
    %2846 = vmatprep.subr.mxu0 0.0
    %2847 = vmatpush1.msra.mxu0 0.0
    %2848 = vmatprep.subr.mxu0 0.0
    %2849 = vmatpush1.msra.mxu0 0.0
    %2850 = vmatprep.subr.mxu0 0.0
    %2851 = vmatpush1.msra.mxu0 0.0
    %2852 = vmatprep.subr.mxu0 0.0
    %2853 = vmatpush1.msra.mxu0 0.0
    %2854 = vmatprep.subr.mxu0 0.0
    %2855 = vmatpush1.msra.mxu0 0.0
    %2856 = vmatprep.subr.mxu0 0.0
    %2857 = vmatpush1.msra.mxu0 0.0
    %2858 = vmatprep.subr.mxu0 0.0
    %2859 = vmatpush1.msra.mxu0 0.0
    %2860 = vmatprep.subr.mxu0 0.0
    %2861 = vmatpush1.msra.mxu0 0.0
    %2862 = vmatprep.mubr.f32.mxu0 0.0
    %2863 = vmatmul.mubr.f32.gmra.mrb[0].mxu0 %v2627
    %v2864 = vpop.f32.mrb[0].mxu0
    %v2865 = vadd.f32 0.0, %v2864
    %v2866 = vpop.f32.mrb[0].mxu0
    %v2867 = vadd.f32 0.0, %v2866
    %2868 = vdwg.mxu0
    %2869 = vmatprep.subr.mxu0 %v25
    %2870 = vmatpush1.msra.mxu0 %v24
    %2871 = vmatprep.subr.mxu0 %v29
    %2872 = vmatpush1.msra.mxu0 %v28
    %2873 = vmatprep.subr.mxu0 %v33
    %2874 = vmatpush1.msra.mxu0 %v32
    %2875 = vmatprep.subr.mxu0 %v37
    %2876 = vmatpush1.msra.mxu0 %v36
    %2877 = vmatprep.subr.mxu0 %v41
    %2878 = vmatpush1.msra.mxu0 %v40
    %2879 = vmatprep.subr.mxu0 %v45
    %2880 = vmatpush1.msra.mxu0 %v44
    %2881 = vmatprep.subr.mxu0 %v49
    %2882 = vmatpush1.msra.mxu0 %v48
    %2883 = vmatprep.subr.mxu0 %v53
    %2884 = vmatpush1.msra.mxu0 %v52
    %2885 = vmatprep.subr.mxu0 %v57
    %2886 = vmatpush1.msra.mxu0 %v56
    %2887 = vmatprep.subr.mxu0 %v61
    %2888 = vmatpush1.msra.mxu0 %v60
    %2889 = vmatprep.subr.mxu0 %v65
    %2890 = vmatpush1.msra.mxu0 %v64
    %2891 = vmatprep.subr.mxu0 %v69
    %2892 = vmatpush1.msra.mxu0 %v68
    %2893 = vmatprep.subr.mxu0 %v73
    %2894 = vmatpush1.msra.mxu0 %v72
    %2895 = vmatprep.subr.mxu0 %v77
    %2896 = vmatpush1.msra.mxu0 %v76
    %2897 = vmatprep.subr.mxu0 %v81
    %2898 = vmatpush1.msra.mxu0 %v80
    %2899 = vmatprep.subr.mxu0 %v85
    %2900 = vmatpush1.msra.mxu0 %v84
    %2901 = vmatprep.subr.mxu0 0.0
    %2902 = vmatpush1.msra.mxu0 0.0
    %2903 = vmatprep.subr.mxu0 0.0
    %2904 = vmatpush1.msra.mxu0 0.0
    %2905 = vmatprep.subr.mxu0 0.0
    %2906 = vmatpush1.msra.mxu0 0.0
    %2907 = vmatprep.subr.mxu0 0.0
    %2908 = vmatpush1.msra.mxu0 0.0
    %2909 = vmatprep.subr.mxu0 0.0
    %2910 = vmatpush1.msra.mxu0 0.0
    %2911 = vmatprep.subr.mxu0 0.0
    %2912 = vmatpush1.msra.mxu0 0.0
    %2913 = vmatprep.subr.mxu0 0.0
    %2914 = vmatpush1.msra.mxu0 0.0
    %2915 = vmatprep.subr.mxu0 0.0
    %2916 = vmatpush1.msra.mxu0 0.0
    %2917 = vmatprep.subr.mxu0 0.0
    %2918 = vmatpush1.msra.mxu0 0.0
    %2919 = vmatprep.subr.mxu0 0.0
    %2920 = vmatpush1.msra.mxu0 0.0
    %2921 = vmatprep.subr.mxu0 0.0
    %2922 = vmatpush1.msra.mxu0 0.0
    %2923 = vmatprep.subr.mxu0 0.0
    %2924 = vmatpush1.msra.mxu0 0.0
    %2925 = vmatprep.subr.mxu0 0.0
    %2926 = vmatpush1.msra.mxu0 0.0
    %2927 = vmatprep.subr.mxu0 0.0
    %2928 = vmatpush1.msra.mxu0 0.0
    %2929 = vmatprep.subr.mxu0 0.0
    %2930 = vmatpush1.msra.mxu0 0.0
    %2931 = vmatprep.subr.mxu0 0.0
    %2932 = vmatpush1.msra.mxu0 0.0
    %2933 = vmatprep.mubr.f32.mxu0 0.0
    %2934 = vmatmul.mubr.f32.gmra.mrb[0].mxu0 %v2627
    %v2935 = vpop.f32.mrb[0].mxu0
    %v2936 = vadd.f32 0.0, %v2935
    %v2937 = vpop.f32.mrb[0].mxu0
    %v2938 = vadd.f32 0.0, %v2937
    %2939 = vdwg.mxu0
    %v2944 = vcombine.low %v2865, %v2867
    %v2945 = vcombine.low %v2936, %v2938
    %v2947 = vunpack.c.l.s4 1983009808
    %v2948 = vunpack.c.0.s8 %v2947
    %v2949 = vlaneseq
    %v2950 = vshrl.u32 %v2949, 7
    %v2951 = vsub.s32 %v2948, %v2950
    %v2952 = vrot.slane %v2944, %v2951
    %v2954 = vunpack.c.l.s4 1983009808
    %v2955 = vunpack.c.0.s8 %v2954
    %v2956 = vlaneseq
    %v2957 = vshrl.u32 %v2956, 7
    %v2958 = vsub.s32 %v2955, %v2957
    %v2959 = vrot.slane %v2945, %v2958
    %v2960 = vcombine.low %v2952, %v2959
    %v2962 = vadd.f32 %v2797, %v2960
    %v2963 = vxor.u32 %v2962, 2147483648
    %v2964 = vmul.f32 %v2963, 1.442695
    %v2965 = vpow.pop %v2964
    %v2966 = vadd.f32 %v2965, 1.0
    %v2967 = vrcp.pop %v2966
    %v2968 = vmul.f32 1.0, %v2967
    %v2970 = vrot.slane %v2962, 2
    %v2972 = vxor.u32 %v2970, 2147483648
    %v2973 = vmul.f32 %v2972, 1.442695
    %v2974 = vpow.pop %v2973
    %v2975 = vadd.f32 %v2974, 1.0
    %v2976 = vrcp.pop %v2975
    %v2977 = vmul.f32 1.0, %v2976
    %v2978 = vrot.slane %v2962, 4
    %v2980 = vtanh.pop %v2978
    %v2981 = vrot.slane %v2962, 6
    %v2983 = vxor.u32 %v2981, 2147483648
    %v2984 = vmul.f32 %v2983, 1.442695
    %v2985 = vpow.pop %v2984
    %v2986 = vadd.f32 %v2985, 1.0
    %v2987 = vrcp.pop %v2986
    %v2988 = vmul.f32 1.0, %v2987
    %v2989 = vmul.f32 %v2977, %v2625
    %v2990 = vmul.f32 %v2968, %v2980
    %v2991 = vadd.f32 %v2989, %v2990
    %v2992 = vtanh.pop %v2991
    %v2993 = vmul.f32 %v2988, %v2992
    %2994 = vmatprep.subr.mxu0 %v87
    %2995 = vmatpush1.msra.mxu0 %v86
    %2996 = vmatprep.subr.mxu0 %v91
    %2997 = vmatpush1.msra.mxu0 %v90
    %2998 = vmatprep.subr.mxu0 %v95
    %2999 = vmatpush1.msra.mxu0 %v94
    %3000 = vmatprep.subr.mxu0 %v99
    %3001 = vmatpush1.msra.mxu0 %v98
    %3002 = vmatprep.subr.mxu0 %v103
    %3003 = vmatpush1.msra.mxu0 %v102
    %3004 = vmatprep.subr.mxu0 %v107
    %3005 = vmatpush1.msra.mxu0 %v106
    %3006 = vmatprep.subr.mxu0 %v111
    %3007 = vmatpush1.msra.mxu0 %v110
    %3008 = vmatprep.subr.mxu0 %v115
    %3009 = vmatpush1.msra.mxu0 %v114
    %3010 = vmatprep.subr.mxu0 %v119
    %3011 = vmatpush1.msra.mxu0 %v118
    %3012 = vmatprep.subr.mxu0 %v123
    %3013 = vmatpush1.msra.mxu0 %v122
    %3014 = vmatprep.subr.mxu0 %v127
    %3015 = vmatpush1.msra.mxu0 %v126
    %3016 = vmatprep.subr.mxu0 %v131
    %3017 = vmatpush1.msra.mxu0 %v130
    %3018 = vmatprep.subr.mxu0 %v135
    %3019 = vmatpush1.msra.mxu0 %v134
    %3020 = vmatprep.subr.mxu0 %v139
    %3021 = vmatpush1.msra.mxu0 %v138
    %3022 = vmatprep.subr.mxu0 %v143
    %3023 = vmatpush1.msra.mxu0 %v142
    %3024 = vmatprep.subr.mxu0 %v147
    %3025 = vmatpush1.msra.mxu0 %v146
    %3026 = vmatprep.subr.mxu0 %v151
    %3027 = vmatpush1.msra.mxu0 %v150
    %3028 = vmatprep.subr.mxu0 %v155
    %3029 = vmatpush1.msra.mxu0 %v154
    %3030 = vmatprep.subr.mxu0 %v159
    %3031 = vmatpush1.msra.mxu0 %v158
    %3032 = vmatprep.subr.mxu0 %v163
    %3033 = vmatpush1.msra.mxu0 %v162
    %3034 = vmatprep.subr.mxu0 %v167
    %3035 = vmatpush1.msra.mxu0 %v166
    %3036 = vmatprep.subr.mxu0 %v171
    %3037 = vmatpush1.msra.mxu0 %v170
    %3038 = vmatprep.subr.mxu0 %v175
    %3039 = vmatpush1.msra.mxu0 %v174
    %3040 = vmatprep.subr.mxu0 %v179
    %3041 = vmatpush1.msra.mxu0 %v178
    %3042 = vmatprep.subr.mxu0 %v183
    %3043 = vmatpush1.msra.mxu0 %v182
    %3044 = vmatprep.subr.mxu0 %v187
    %3045 = vmatpush1.msra.mxu0 %v186
    %3046 = vmatprep.subr.mxu0 %v191
    %3047 = vmatpush1.msra.mxu0 %v190
    %3048 = vmatprep.subr.mxu0 %v195
    %3049 = vmatpush1.msra.mxu0 %v194
    %3050 = vmatprep.subr.mxu0 %v199
    %3051 = vmatpush1.msra.mxu0 %v198
    %3052 = vmatprep.subr.mxu0 %v203
    %3053 = vmatpush1.msra.mxu0 %v202
    %3054 = vmatprep.subr.mxu0 %v207
    %3055 = vmatpush1.msra.mxu0 %v206
    %3056 = vmatprep.subr.mxu0 %v211
    %3057 = vmatpush1.msra.mxu0 %v210
    %3058 = vmatprep.mubr.f32.mxu0 %v2793
    %3059 = vmatmul.mubr.f32.gmra.mrb[0].mxu0 %v2993
    %v3060 = vpop.f32.mrb[0].mxu0
    %v3061 = vadd.f32 %v416, %v3060
    %v3062 = vpop.f32.mrb[0].mxu0
    %v3063 = vadd.f32 %v420, %v3062
    %3064 = vdwg.mxu0
    %3065 = vmatprep.subr.mxu0 %v89
    %3066 = vmatpush1.msra.mxu0 %v88
    %3067 = vmatprep.subr.mxu0 %v93
    %3068 = vmatpush1.msra.mxu0 %v92
    %3069 = vmatprep.subr.mxu0 %v97
    %3070 = vmatpush1.msra.mxu0 %v96
    %3071 = vmatprep.subr.mxu0 %v101
    %3072 = vmatpush1.msra.mxu0 %v100
    %3073 = vmatprep.subr.mxu0 %v105
    %3074 = vmatpush1.msra.mxu0 %v104
    %3075 = vmatprep.subr.mxu0 %v109
    %3076 = vmatpush1.msra.mxu0 %v108
    %3077 = vmatprep.subr.mxu0 %v113
    %3078 = vmatpush1.msra.mxu0 %v112
    %3079 = vmatprep.subr.mxu0 %v117
    %3080 = vmatpush1.msra.mxu0 %v116
    %3081 = vmatprep.subr.mxu0 %v121
    %3082 = vmatpush1.msra.mxu0 %v120
    %3083 = vmatprep.subr.mxu0 %v125
    %3084 = vmatpush1.msra.mxu0 %v124
    %3085 = vmatprep.subr.mxu0 %v129
    %3086 = vmatpush1.msra.mxu0 %v128
    %3087 = vmatprep.subr.mxu0 %v133
    %3088 = vmatpush1.msra.mxu0 %v132
    %3089 = vmatprep.subr.mxu0 %v137
    %3090 = vmatpush1.msra.mxu0 %v136
    %3091 = vmatprep.subr.mxu0 %v141
    %3092 = vmatpush1.msra.mxu0 %v140
    %3093 = vmatprep.subr.mxu0 %v145
    %3094 = vmatpush1.msra.mxu0 %v144
    %3095 = vmatprep.subr.mxu0 %v149
    %3096 = vmatpush1.msra.mxu0 %v148
    %3097 = vmatprep.subr.mxu0 %v153
    %3098 = vmatpush1.msra.mxu0 %v152
    %3099 = vmatprep.subr.mxu0 %v157
    %3100 = vmatpush1.msra.mxu0 %v156
    %3101 = vmatprep.subr.mxu0 %v161
    %3102 = vmatpush1.msra.mxu0 %v160
    %3103 = vmatprep.subr.mxu0 %v165
    %3104 = vmatpush1.msra.mxu0 %v164
    %3105 = vmatprep.subr.mxu0 %v169
    %3106 = vmatpush1.msra.mxu0 %v168
    %3107 = vmatprep.subr.mxu0 %v173
    %3108 = vmatpush1.msra.mxu0 %v172
    %3109 = vmatprep.subr.mxu0 %v177
    %3110 = vmatpush1.msra.mxu0 %v176
    %3111 = vmatprep.subr.mxu0 %v181
    %3112 = vmatpush1.msra.mxu0 %v180
    %3113 = vmatprep.subr.mxu0 %v185
    %3114 = vmatpush1.msra.mxu0 %v184
    %3115 = vmatprep.subr.mxu0 %v189
    %3116 = vmatpush1.msra.mxu0 %v188
    %3117 = vmatprep.subr.mxu0 %v193
    %3118 = vmatpush1.msra.mxu0 %v192
    %3119 = vmatprep.subr.mxu0 %v197
    %3120 = vmatpush1.msra.mxu0 %v196
    %3121 = vmatprep.subr.mxu0 %v201
    %3122 = vmatpush1.msra.mxu0 %v200
    %3123 = vmatprep.subr.mxu0 %v205
    %3124 = vmatpush1.msra.mxu0 %v204
    %3125 = vmatprep.subr.mxu0 %v209
    %3126 = vmatpush1.msra.mxu0 %v208
    %3127 = vmatprep.subr.mxu0 %v213
    %3128 = vmatpush1.msra.mxu0 %v212
    %3129 = vmatprep.mubr.f32.mxu0 %v2793
    %3130 = vmatmul.mubr.f32.gmra.mrb[0].mxu0 %v2993
    %v3131 = vpop.f32.mrb[0].mxu0
    %v3132 = vadd.f32 %v424, %v3131
    %v3133 = vpop.f32.mrb[0].mxu0
    %v3134 = vadd.f32 %v428, %v3133
    %3135 = vdwg.mxu0
    %v3136 = vxor.u32 %v3061, 2147483648
    %v3137 = vmul.f32 %v3136, 1.442695
    %v3138 = vpow.pop %v3137
    %v3139 = vadd.f32 %v3138, 1.0
    %v3140 = vrcp.pop %v3139
    %v3141 = vmul.f32 1.0, %v3140
    %v3142 = vxor.u32 %v3063, 2147483648
    %v3143 = vmul.f32 %v3142, 1.442695
    %v3144 = vpow.pop %v3143
    %v3145 = vadd.f32 %v3144, 1.0
    %v3146 = vrcp.pop %v3145
    %v3147 = vmul.f32 1.0, %v3146
    %v3148 = vtanh.pop %v3132
    %v3149 = vxor.u32 %v3134, 2147483648
    %v3150 = vmul.f32 %v3149, 1.442695
    %v3151 = vpow.pop %v3150
    %v3152 = vadd.f32 %v3151, 1.0
    %v3153 = vrcp.pop %v3152
    %v3154 = vmul.f32 1.0, %v3153
    %v3155 = vmul.f32 %v3147, %v2791
    %v3156 = vmul.f32 %v3141, %v3148
    %v3157 = vadd.f32 %v3155, %v3156
    %v3158 = vtanh.pop %v3157
    %v3159 = vmul.f32 %v3154, %v3158
    %s3160 = scalar_lea.vmem %s4, 14
    %3161 = vst [vmem:[%s3160] sm:$0x3] %v3159
    %3162 = vst [vmem:[#allocation2] sm:$0x3] %v2993
    %s3163 = scalar_lea.vmem [#allocation2], 2
    %3164 = vst [vmem:[%s3163] sm:$0x3] %v3159
    %3165 = vst [vmem:[#allocation4] sm:$0x3] %v2991
    %s3166 = scalar_lea.vmem [#allocation4], 2
    %3167 = vst [vmem:[%s3166] sm:$0x3] %v3157
    // Predicated region
    $region18: #{lstmnet_forward.1} parent=1 // pred_check
      _
    $region19: #{lstmnet_forward.1} parent=1 // pred_check_branch
      %3169 = sbr.rel (0) target = $region21
    $region20: #{lstmnet_forward.1} parent=1 // pred_region
      _
    $region21: #{lstmnet_forward.1} parent=1 // pred_fallthru
      _
    // Predicated region
    $region22: #{lstmnet_forward.1} parent=1 // pred_check
      _
    $region23: #{lstmnet_forward.1} parent=1 // pred_check_branch
      %3171 = sbr.rel (0) target = $region25
    $region24: #{lstmnet_forward.1} parent=1 // pred_region
      %s3173 = ssub.s32 64, 64
      %3174 = vsyncadd [#allocation3], %s3173
      %s3175 = sshll.u32 [#allocation2], 4
      %s3176 = int_to_ptr.vmem [resolvable:$true] %s3175
      %3181 = dma.vmem_to_hbm [thread:$0]  %s3176, 64, %s5, [#allocation3], 32, 32, 2
    $region25: #{lstmnet_forward.1} parent=1 // pred_fallthru
      _
    // Predicated region
    $region26: #{lstmnet_forward.1} parent=1 // pred_check
      _
    $region27: #{lstmnet_forward.1} parent=1 // pred_check_branch
      %3183 = sbr.rel (0) target = $region29
    $region28: #{lstmnet_forward.1} parent=1 // pred_region
      %s3185 = ssub.s32 64, 64
      %3186 = vsyncadd [#allocation5], %s3185
      %s3187 = sshll.u32 [#allocation4], 4
      %s3188 = int_to_ptr.vmem [resolvable:$true] %s3187
      %3193 = dma.vmem_to_hbm [thread:$0]  %s3188, 64, %s6, [#allocation5], 32, 32, 2
    $region29: #{lstmnet_forward.1} parent=1 // pred_fallthru
      _
    // Predicated region
    $region30: #{lstmnet_forward.1} parent=1 // pred_check
      _
    $region31: #{lstmnet_forward.1} parent=1 // pred_check_branch
      %3195 = sbr.rel (0) target = $region33
    $region32: #{lstmnet_forward.1} parent=1 // pred_region
      _
    $region33: #{lstmnet_forward.1} parent=1 // pred_fallthru
      _
    // Predicated region
    $region34: #{lstmnet_forward.1} parent=1 // pred_check
      _
    $region35: #{lstmnet_forward.1} parent=1 // pred_check_branch
      %3197 = sbr.rel (0) target = $region37
    $region36: #{lstmnet_forward.1} parent=1 // pred_region
      %3198 = dma.done [#allocation3], 64
    $region37: #{lstmnet_forward.1} parent=1 // pred_fallthru
      _
    // Predicated region
    $region38: #{lstmnet_forward.1} parent=1 // pred_check
      _
    $region39: #{lstmnet_forward.1} parent=1 // pred_check_branch
      %3200 = sbr.rel (0) target = $region41
    $region40: #{lstmnet_forward.1} parent=1 // pred_region
      %3201 = dma.done [#allocation5], 64
    $region41: #{lstmnet_forward.1} parent=1 // pred_fallthru
      _
    %3202 = vsyncpa [#allocation3], 1
    %3203 = vsyncpa [#allocation5], 1

</llo_original>
